<compile_context>
chip_gen: v7x
topology: tpu7x:2x2x1
jax: 0.10.0
libtpu: 0.0.40
codegen_flags: <defaults>
</compile_context>

<pallas_src>
import jax
import jax.numpy as jnp
import numpy as np
from jax import lax
from jax.experimental import pallas as pl
from jax.experimental.pallas import tpu as pltpu


# --------------------------------------------------------------------------- #
# Fused BiGRU + attention kernel (one pallas_call, batch grid)                 #
# --------------------------------------------------------------------------- #
def attention4_kernel(xx_ref, start_ref, end_ref,
                      wi_ref, wh_ref, bi_ref, bhn_ref,
                      w1a_ref, w1b_ref, b1_ref, u_ref, w2_ref, b2_ref,
                      out_ref, xh_ref):
    Bt, S, E2 = xx_ref.shape
    H2, P3 = wh_ref.shape            # 2H, 3 * padded-gate-width
    P = P3 // 3
    H = H2 // 2
    A = u_ref.shape[0]
    L = w2_ref.shape[1]

    # ---- single hoisted input projection: all 3 gates x both directions ---- #
    # xx lanes [0:E] hold x[t], lanes [E:2E] hold x[S-1-t]; wi's block structure
    # routes them to forward / backward gate lanes, so `gi` already carries the
    # per-direction time selection (no per-step select, no in-kernel flip).
    gi = (jnp.dot(xx_ref[...].reshape(Bt * S, E2), wi_ref[...],
                  preferred_element_type=jnp.float32)
          + bi_ref[...]).reshape(Bt, S, 3 * P)

    wh = wh_ref[...]                 # (2H, 3P) block-diagonal, 128-lane gate blocks
    bhn = bhn_ref[...]               # (1, 2H)  n-gate hidden bias (stays inside r*(..))

    # ---- interleaved bidirectional recurrence ---- #
    # h lanes [0:H] = forward state at time i, lanes [H:2H] = backward state at
    # time S-1-i. One merged hidden matmul per step; r/z/n result slices start on
    # 128-lane tile boundaries; no loads/stores inside the serial body.
    # TODO(synk): for production S use lax.fori_loop(..., unroll=4..8) with a
    #             scratch-carried h instead of a full static unroll.
    h = jnp.zeros((Bt, H2), jnp.float32)
    hs = []
    for i in range(S):
        g = gi[:, i, :]                                                 # (Bt, 3P)
        hh = jnp.dot(h, wh, preferred_element_type=jnp.float32)         # (Bt, 3P)
        r = jax.nn.sigmoid(g[:, 0:H2] + hh[:, 0:H2])
        z = jax.nn.sigmoid(g[:, P:P + H2] + hh[:, P:P + H2])
        n = jnp.tanh(g[:, 2 * P:2 * P + H2] + r * (hh[:, 2 * P:2 * P + H2] + bhn))
        h = (1.0 - z) * n + z * h
        hs.append(h)

    # ---- time-align the backward half once, after the recurrence ---- #
    is_fwd = lax.broadcasted_iota(jnp.int32, (Bt, H2), 1) < H
    for t in range(S):
        xh_ref[:, t, :] = jnp.where(is_fwd, hs[t], hs[S - 1 - t])
    x = xh_ref[...]                                                     # (Bt, S, 2H)

    # ---- target span mean (exact divide; assumes start <= end) ---- #
    start = start_ref[...]                                              # (Bt,1,1) i32
    end = end_ref[...]
    pos = lax.broadcasted_iota(jnp.int32, (Bt, S, 1), 1)
    mask = jnp.logical_and(pos >= start, pos <= end)                    # (Bt, S, 1)
    cnt = (end - start + 1).astype(jnp.float32)                         # (Bt, 1, 1)
    target = (jnp.sum(jnp.where(mask, x, 0.0), axis=1, keepdims=True) / cnt
              ).reshape(Bt, H2)                                         # (Bt, 2H)

    # ---- tanh(W1 [x_t ; target]) with the big matmul flattened over Bt*S ---- #
    xw = jnp.dot(x.reshape(Bt * S, H2), w1a_ref[...],
                 preferred_element_type=jnp.float32)                    # (Bt*S, A)
    tw = jnp.dot(target, w1b_ref[...], preferred_element_type=jnp.float32)  # (Bt, A)
    hid = jnp.tanh(xw.reshape(Bt, S, A) + tw[:, None, :] + b1_ref[...])     # (Bt,S,A)

    # ---- batched attention: beta / softmax over the sequence / context ---- #
    u_b = jnp.broadcast_to(u_ref[...][None, :, :], (Bt, A, A))
    beta = lax.dot_general(u_b, hid,
                           dimension_numbers=(((2,), (2,)), ((0,), (0,))),
                           preferred_element_type=jnp.float32)          # (Bt, A, S)
    beta = beta - jnp.max(beta, axis=-1, keepdims=True)
    p = jnp.exp(beta)
    alfa = p * pl.reciprocal(jnp.sum(p, axis=-1, keepdims=True), approx=True)
    ctx = lax.dot_general(alfa, x,
                          dimension_numbers=(((2,), (1,)), ((0,), (0,))),
                          preferred_element_type=jnp.float32)           # (Bt, A, 2H)
    res = (jnp.dot(ctx.reshape(Bt * A, H2), w2_ref[...],
                   preferred_element_type=jnp.float32)
           + b2_ref[...]).reshape(Bt, A, L)
    # TODO(synk): a lane-dense (Bt, A*L) store would need an in-kernel
    #             sublane->lane reshape; at A*L*4 = 512 B per block it is noise.
    out_ref[...] = res


# --------------------------------------------------------------------------- #
# Weight packing (XLA glue, done once per call under jit)                      #
# --------------------------------------------------------------------------- #
def _split_gates(w, H):
    # PyTorch GRU gate order: r, z, n
    return [w[:, g * H:(g + 1) * H] for g in range(3)]


def _pad_lanes(w, P):
    r, c = w.shape
    if c == P:
        return w
    return jnp.concatenate([w, jnp.zeros((r, P - c), w.dtype)], axis=1)


def _build_fused_params(params):
    H = params["w_hh_f"].shape[0]
    E = params["w_ih_f"].shape[0]
    H2 = 2 * H
    P = ((H2 + 127) // 128) * 128          # per-gate lane width, tile aligned

    wif = _split_gates(params["w_ih_f"], H)
    wib = _split_gates(params["w_ih_b"], H)
    whf = _split_gates(params["w_hh_f"], H)
    whb = _split_gates(params["w_hh_b"], H)
    bif = _split_gates(params["b_ih_f"], H)
    bib = _split_gates(params["b_ih_b"], H)
    bhf = _split_gates(params["b_hh_f"], H)
    bhb = _split_gates(params["b_hh_b"], H)

    zE = jnp.zeros((E, H), jnp.float32)
    zH = jnp.zeros((H, H), jnp.float32)

    wi_cols, wh_cols, bi_cols = [], [], []
    for g in range(3):
        # Input weights: rows [0:E] multiply x[t] (forward lanes), rows [E:2E]
        # multiply x[S-1-t] (backward lanes) -> the direction/time selection is
        # baked into a single matmul.
        wi_blk = jnp.concatenate(
            [jnp.concatenate([wif[g], zE], axis=1),
             jnp.concatenate([zE, wib[g]], axis=1)], axis=0)            # (2E, 2H)
        wi_cols.append(_pad_lanes(wi_blk, P))
        # Hidden weights: block diagonal keeps the two directions independent.
        wh_blk = jnp.concatenate(
            [jnp.concatenate([whf[g], zH], axis=1),
             jnp.concatenate([zH, whb[g]], axis=1)], axis=0)            # (2H, 2H)
        wh_cols.append(_pad_lanes(wh_blk, P))
        # r/z hidden biases fold into the input-side bias; the n-gate hidden
        # bias must stay inside r * (h @ W_hn + b_hn).
        bf = bif[g] + (bhf[g] if g < 2 else 0.0)
        bb = bib[g] + (bhb[g] if g < 2 else 0.0)
        bi_cols.append(_pad_lanes(jnp.concatenate([bf, bb], axis=1), P))

    wi_big = jnp.concatenate(wi_cols, axis=1)          # (2E, 3P)
    wh_big = jnp.concatenate(wh_cols, axis=1)          # (2H, 3P)
    bi_big = jnp.concatenate(bi_cols, axis=1)          # (1, 3P)
    bhn = jnp.concatenate([bhf[2], bhb[2]], axis=1)    # (1, 2H)
    return wi_big, wh_big, bi_big, bhn, H2, P


def _pick_block(B, block_b=8):
    """Largest divisor of B that is <= block_b and leaves >= 2 grid steps."""
    cap = max(1, min(block_b, B // 2)) if B >= 2 else 1
    for bt in range(cap, 0, -1):
        if B % bt == 0:
            return bt
    return 1


# --------------------------------------------------------------------------- #
# Full forward                                                                 #
# --------------------------------------------------------------------------- #
def attention4_forward(params, tokens, target_start, target_end, max_norm,
                       *, block_b=8):
    # Embedding gather + max_norm renorm (XLA glue).
    emb = jnp.take(params["embedding"], tokens, axis=0)                 # (B, S, E)
    norm = jnp.linalg.norm(emb, axis=-1, keepdims=True)
    emb = (emb * jnp.where(norm > max_norm, max_norm / (norm + 1e-7), 1.0)
           ).astype(jnp.float32)
    B, S, E = emb.shape

    # Doubled input: lanes [0:E] = x[t], lanes [E:2E] = x[S-1-t], so the kernel's
    # single input projection produces direction-selected gate inputs directly.
    xx = jnp.concatenate([emb, emb[:, ::-1, :]], axis=-1)               # (B, S, 2E)

    wi_big, wh_big, bi_big, bhn, H2, P = _build_fused_params(params)
    w1 = params["w1"]
    w1a, w1b = w1[:H2, :], w1[H2:, :]
    b1, u, w2, b2 = params["b1"], params["u"], params["w2"], params["b2"]
    A, L = u.shape[0], w2.shape[1]

    start3 = target_start.reshape(B, 1, 1).astype(jnp.int32)
    end3 = target_end.reshape(B, 1, 1).astype(jnp.int32)

    Bt = _pick_block(B, block_b)        # >=2 grid steps when possible (v7x megacore)
    grid = (B // Bt,)

    full = lambda i: (0, 0)
    batched3 = lambda i: (i, 0, 0)

    return pl.pallas_call(
        attention4_kernel,
        out_shape=jax.ShapeDtypeStruct((B, A, L), jnp.float32),
        grid=grid,
        in_specs=[
            pl.BlockSpec((Bt, S, 2 * E), batched3),     # doubled embedded input
            pl.BlockSpec((Bt, 1, 1), batched3),         # target_start
            pl.BlockSpec((Bt, 1, 1), batched3),         # target_end
            pl.BlockSpec((2 * E, 3 * P), full),         # fused input weights
            pl.BlockSpec((H2, 3 * P), full),            # fused hidden weights
            pl.BlockSpec((1, 3 * P), full),             # fused input-side biases
            pl.BlockSpec((1, H2), full),                # n-gate hidden bias
            pl.BlockSpec((H2, A), full),                # W1 (hidden part)
            pl.BlockSpec((H2, A), full),                # W1 (target part)
            pl.BlockSpec((1, A), full),                 # b1
            pl.BlockSpec((A, A), full),                 # u
            pl.BlockSpec((H2, L), full),                # W2
            pl.BlockSpec((1, L), full),                 # b2
        ],
        out_specs=pl.BlockSpec((Bt, A, L), batched3),
        scratch_shapes=[pltpu.VMEM((Bt, S, H2), jnp.float32)],          # hidden states
        compiler_params=pltpu.CompilerParams(
            dimension_semantics=("parallel",),
            vmem_limit_bytes=32 * 1024 * 1024),
    )(xx, start3, end3, wi_big, wh_big, bi_big, bhn,
      w1a, w1b, b1, u, w2, b2)


# --------------------------------------------------------------------------- #
# Pure-JAX reference (same math) for a correctness check                       #
# --------------------------------------------------------------------------- #
def reference_forward(params, tokens, target_start, target_end, max_norm):
    emb = jnp.take(params["embedding"], tokens, axis=0)
    norm = jnp.linalg.norm(emb, axis=-1, keepdims=True)
    emb = emb * jnp.where(norm > max_norm, max_norm / (norm + 1e-7), 1.0)
    B, S, _ = emb.shape
    H = params["w_hh_f"].shape[0]

    def cell(h, xt, w_ih, w_hh, b_ih, b_hh):
        gi = xt @ w_ih + b_ih
        gh = h @ w_hh + b_hh
        r = jax.nn.sigmoid(gi[:, :H] + gh[:, :H])
        z = jax.nn.sigmoid(gi[:, H:2 * H] + gh[:, H:2 * H])
        n = jnp.tanh(gi[:, 2 * H:] + r * gh[:, 2 * H:])
        return (1.0 - z) * n + z * h

    xs = jnp.transpose(emb, (1, 0, 2))
    _, outf = lax.scan(lambda h, xt: (lambda h2: (h2, h2))(
        cell(h, xt, params["w_ih_f"], params["w_hh_f"], params["b_ih_f"], params["b_hh_f"])),
        jnp.zeros((B, H), jnp.float32), xs)
    _, outb = lax.scan(lambda h, xt: (lambda h2: (h2, h2))(
        cell(h, xt, params["w_ih_b"], params["w_hh_b"], params["b_ih_b"], params["b_hh_b"])),
        jnp.zeros((B, H), jnp.float32), xs[::-1])
    x = jnp.transpose(jnp.concatenate([outf, outb[::-1]], axis=-1), (1, 0, 2))  # (B,S,2H)

    pos = jnp.arange(S)[None, :, None]
    mask = (pos >= target_start[:, None, None]) & (pos <= target_end[:, None, None])
    cnt = (target_end - target_start + 1).astype(jnp.float32)[:, None]
    target = jnp.sum(jnp.where(mask, x, 0.0), axis=1) / cnt                     # (B, 2H)

    feat = jnp.concatenate([x, jnp.broadcast_to(target[:, None, :], x.shape)], axis=-1)
    hid = jnp.tanh(feat @ params["w1"] + params["b1"])                          # (B, S, A)
    beta = jnp.einsum("ij,bsj->bis", params["u"], hid)                          # (B, A, S)
    alfa = jax.nn.softmax(beta, axis=-1)
    ctx = jnp.einsum("bis,bsh->bih", alfa, x)                                   # (B, A, 2H)
    return ctx @ params["w2"] + params["b2"]                                    # (B, A, L)


# --------------------------------------------------------------------------- #
if __name__ == "__main__":
    B, S = 2, 8
    EMBED_NUM, E = 50, 32
    H = 32            # hidden_size -> GRU output 2H = 64, concat feature 4H = 128
    A = 32            # attention_size
    L = 4             # label_num
    MAX_NORM = 5.0

    key = jax.random.PRNGKey(0)
    ks = jax.random.split(key, 16)

    def nrm(k, shape, s=0.1):
        return (s * jax.random.normal(k, shape)).astype(jnp.float32)

    params = {
        "embedding": nrm(ks[0], (EMBED_NUM, E), 1.0),
        # GRU weights stored transposed for x @ W layout; gate order (r, z, n)
        "w_ih_f": nrm(ks[1], (E, 3 * H)), "w_hh_f": nrm(ks[2], (H, 3 * H)),
        "b_ih_f": nrm(ks[3], (1, 3 * H), 0.01), "b_hh_f": nrm(ks[4], (1, 3 * H), 0.01),
        "w_ih_b": nrm(ks[5], (E, 3 * H)), "w_hh_b": nrm(ks[6], (H, 3 * H)),
        "b_ih_b": nrm(ks[7], (1, 3 * H), 0.01), "b_hh_b": nrm(ks[8], (1, 3 * H), 0.01),
        # linear_1: (4H -> A), u: (A, A), linear_2: (2H -> L)
        "w1": nrm(ks[9], (4 * H, A)), "b1": nrm(ks[10], (1, A), 0.01),
        "u": nrm(ks[11], (A, A)),
        "w2": nrm(ks[12], (2 * H, L)), "b2": nrm(ks[13], (1, L), 0.01),
    }

    tokens = jax.random.randint(ks[14], (B, S), 0, EMBED_NUM, dtype=jnp.int32)
    target_start = jnp.array([1, 2], dtype=jnp.int32)
    target_end = jnp.array([4, 6], dtype=jnp.int32)

    fwd = jax.jit(lambda p, t, s, e: attention4_forward(p, t, s, e, MAX_NORM))
    out = jax.block_until_ready(fwd(params, tokens, target_start, target_end))

    ref = jax.block_until_ready(
        reference_forward(params, tokens, target_start, target_end, MAX_NORM))

    assert out.shape == (B, A, L), out.shape
    assert np.all(np.isfinite(np.asarray(out)))
    np.testing.assert_allclose(np.asarray(out), np.asarray(ref), atol=3e-2, rtol=3e-2)
    print("KERNEL_OK")
</pallas_src>

<mosaic_0001>
module attributes {stable_mosaic.version = 11 : i64} {
  func.func @attention4_kernel(%arg0: i32, %arg1: memref<1x8x64xf32, #tpu.memory_space<vmem>>, %arg2: memref<1x1x1xi32, #tpu.memory_space<vmem>>, %arg3: memref<1x1x1xi32, #tpu.memory_space<vmem>>, %arg4: memref<64x384xf32, #tpu.memory_space<vmem>>, %arg5: memref<64x384xf32, #tpu.memory_space<vmem>>, %arg6: memref<1x384xf32, #tpu.memory_space<vmem>>, %arg7: memref<1x64xf32, #tpu.memory_space<vmem>>, %arg8: memref<64x32xf32, #tpu.memory_space<vmem>>, %arg9: memref<64x32xf32, #tpu.memory_space<vmem>>, %arg10: memref<1x32xf32, #tpu.memory_space<vmem>>, %arg11: memref<32x32xf32, #tpu.memory_space<vmem>>, %arg12: memref<64x4xf32, #tpu.memory_space<vmem>>, %arg13: memref<1x4xf32, #tpu.memory_space<vmem>>, %arg14: memref<1x32x4xf32, #tpu.memory_space<vmem>>, %arg15: memref<1x8x64xf32, #tpu.memory_space<vmem>>) attributes {dimension_semantics = [#tpu.dimension_semantics<parallel>], iteration_bounds = array<i64: 2>, scalar_prefetch = 0 : i64, scratch_operands = 1 : i64, tpu.core_type = #tpu.core_type<tc>, window_params = [{transform_indices = @transform_0, window_bounds = array<i64: 1, 8, 64>}, {transform_indices = @transform_1, window_bounds = array<i64: 1, 1, 1>}, {transform_indices = @transform_2, window_bounds = array<i64: 1, 1, 1>}, {pipeline_mode = #tpu.pipeline_mode<synchronous>, transform_indices = @transform_3, window_bounds = array<i64: 64, 384>}, {pipeline_mode = #tpu.pipeline_mode<synchronous>, transform_indices = @transform_4, window_bounds = array<i64: 64, 384>}, {pipeline_mode = #tpu.pipeline_mode<synchronous>, transform_indices = @transform_5, window_bounds = array<i64: 1, 384>}, {pipeline_mode = #tpu.pipeline_mode<synchronous>, transform_indices = @transform_6, window_bounds = array<i64: 1, 64>}, {pipeline_mode = #tpu.pipeline_mode<synchronous>, transform_indices = @transform_7, window_bounds = array<i64: 64, 32>}, {pipeline_mode = #tpu.pipeline_mode<synchronous>, transform_indices = @transform_8, window_bounds = array<i64: 64, 32>}, {pipeline_mode = #tpu.pipeline_mode<synchronous>, transform_indices = @transform_9, window_bounds = array<i64: 1, 32>}, {pipeline_mode = #tpu.pipeline_mode<synchronous>, transform_indices = @transform_10, window_bounds = array<i64: 32, 32>}, {pipeline_mode = #tpu.pipeline_mode<synchronous>, transform_indices = @transform_11, window_bounds = array<i64: 64, 4>}, {pipeline_mode = #tpu.pipeline_mode<synchronous>, transform_indices = @transform_12, window_bounds = array<i64: 1, 4>}, {transform_indices = @transform_13, window_bounds = array<i64: 1, 32, 4>}]} {
    %c0 = arith.constant 0 : index
    %c0_0 = arith.constant 0 : index
    %c0_1 = arith.constant 0 : index
    %0 = vector.load %arg1[%c0, %c0_0, %c0_1] : memref<1x8x64xf32, #tpu.memory_space<vmem>>, vector<1x8x64xf32>
    %1 = vector.shape_cast %0 : vector<1x8x64xf32> to vector<8x64xf32>
    %c0_2 = arith.constant 0 : index
    %c0_3 = arith.constant 0 : index
    %2 = vector.load %arg4[%c0_2, %c0_3] : memref<64x384xf32, #tpu.memory_space<vmem>>, vector<64x384xf32>
    %cst = arith.constant dense<0.000000e+00> : vector<8x384xf32>
    %3 = tpu.matmul %1, %2, %cst {dimension_numbers = #tpu.dot_dimension_numbers<[1], [0], [0], [1], [0, 0, 1, 1], [], []>} : vector<8x64xf32>, vector<64x384xf32>, vector<8x384xf32> -> vector<8x384xf32>
    %c0_4 = arith.constant 0 : index
    %c0_5 = arith.constant 0 : index
    %4 = vector.load %arg6[%c0_4, %c0_5] : memref<1x384xf32, #tpu.memory_space<vmem>>, vector<1x384xf32>
    %5 = vector.broadcast %4 : vector<1x384xf32> to vector<8x384xf32>
    %6 = arith.addf %3, %5 : vector<8x384xf32>
    %7 = vector.shape_cast %6 : vector<8x384xf32> to vector<1x8x384xf32>
    %c0_6 = arith.constant 0 : index
    %c0_7 = arith.constant 0 : index
    %8 = vector.load %arg5[%c0_6, %c0_7] : memref<64x384xf32, #tpu.memory_space<vmem>>, vector<64x384xf32>
    %c0_8 = arith.constant 0 : index
    %c0_9 = arith.constant 0 : index
    %9 = vector.load %arg7[%c0_8, %c0_9] : memref<1x64xf32, #tpu.memory_space<vmem>>, vector<1x64xf32>
    %cst_10 = arith.constant 0.000000e+00 : f32
    %10 = vector.broadcast %cst_10 : f32 to vector<1x64xf32>
    %11 = vector.extract_strided_slice %7 {offsets = [0, 0, 0], sizes = [1, 1, 384], strides = [1, 1, 1]} : vector<1x8x384xf32> to vector<1x1x384xf32>
    %12 = vector.shape_cast %11 : vector<1x1x384xf32> to vector<1x384xf32>
    %cst_11 = arith.constant dense<0.000000e+00> : vector<1x384xf32>
    %13 = tpu.matmul %10, %8, %cst_11 {dimension_numbers = #tpu.dot_dimension_numbers<[1], [0], [0], [1], [0, 0, 1, 1], [], []>} : vector<1x64xf32>, vector<64x384xf32>, vector<1x384xf32> -> vector<1x384xf32>
    %14 = vector.extract_strided_slice %12 {offsets = [0, 0], sizes = [1, 64], strides = [1, 1]} : vector<1x384xf32> to vector<1x64xf32>
    %15 = vector.extract_strided_slice %13 {offsets = [0, 0], sizes = [1, 64], strides = [1, 1]} : vector<1x384xf32> to vector<1x64xf32>
    %16 = arith.addf %14, %15 : vector<1x64xf32>
    %17 = arith.negf %16 : vector<1x64xf32>
    %18 = math.exp %17 : vector<1x64xf32>
    %cst_12 = arith.constant 1.000000e+00 : f32
    %19 = vector.broadcast %cst_12 : f32 to vector<1x64xf32>
    %20 = arith.addf %19, %18 : vector<1x64xf32>
    %21 = arith.divf %19, %20 : vector<1x64xf32>
    %22 = vector.extract_strided_slice %12 {offsets = [0, 128], sizes = [1, 64], strides = [1, 1]} : vector<1x384xf32> to vector<1x64xf32>
    %23 = vector.extract_strided_slice %13 {offsets = [0, 128], sizes = [1, 64], strides = [1, 1]} : vector<1x384xf32> to vector<1x64xf32>
    %24 = arith.addf %22, %23 : vector<1x64xf32>
    %25 = arith.negf %24 : vector<1x64xf32>
    %26 = math.exp %25 : vector<1x64xf32>
    %cst_13 = arith.constant 1.000000e+00 : f32
    %27 = vector.broadcast %cst_13 : f32 to vector<1x64xf32>
    %28 = arith.addf %27, %26 : vector<1x64xf32>
    %29 = arith.divf %27, %28 : vector<1x64xf32>
    %30 = vector.extract_strided_slice %12 {offsets = [0, 256], sizes = [1, 64], strides = [1, 1]} : vector<1x384xf32> to vector<1x64xf32>
    %31 = vector.extract_strided_slice %13 {offsets = [0, 256], sizes = [1, 64], strides = [1, 1]} : vector<1x384xf32> to vector<1x64xf32>
    %32 = arith.addf %31, %9 : vector<1x64xf32>
    %33 = arith.mulf %21, %32 : vector<1x64xf32>
    %34 = arith.addf %30, %33 : vector<1x64xf32>
    %35 = math.tanh %34 : vector<1x64xf32>
    %cst_14 = arith.constant 1.000000e+00 : f32
    %36 = vector.broadcast %cst_14 : f32 to vector<1x64xf32>
    %37 = arith.subf %36, %29 : vector<1x64xf32>
    %38 = arith.mulf %37, %35 : vector<1x64xf32>
    %39 = arith.mulf %29, %10 : vector<1x64xf32>
    %40 = arith.addf %38, %39 : vector<1x64xf32>
    %41 = vector.extract_strided_slice %7 {offsets = [0, 1, 0], sizes = [1, 1, 384], strides = [1, 1, 1]} : vector<1x8x384xf32> to vector<1x1x384xf32>
    %42 = vector.shape_cast %41 : vector<1x1x384xf32> to vector<1x384xf32>
    %cst_15 = arith.constant dense<0.000000e+00> : vector<1x384xf32>
    %43 = tpu.matmul %40, %8, %cst_15 {dimension_numbers = #tpu.dot_dimension_numbers<[1], [0], [0], [1], [0, 0, 1, 1], [], []>} : vector<1x64xf32>, vector<64x384xf32>, vector<1x384xf32> -> vector<1x384xf32>
    %44 = vector.extract_strided_slice %42 {offsets = [0, 0], sizes = [1, 64], strides = [1, 1]} : vector<1x384xf32> to vector<1x64xf32>
    %45 = vector.extract_strided_slice %43 {offsets = [0, 0], sizes = [1, 64], strides = [1, 1]} : vector<1x384xf32> to vector<1x64xf32>
    %46 = arith.addf %44, %45 : vector<1x64xf32>
    %47 = arith.negf %46 : vector<1x64xf32>
    %48 = math.exp %47 : vector<1x64xf32>
    %cst_16 = arith.constant 1.000000e+00 : f32
    %49 = vector.broadcast %cst_16 : f32 to vector<1x64xf32>
    %50 = arith.addf %49, %48 : vector<1x64xf32>
    %51 = arith.divf %49, %50 : vector<1x64xf32>
    %52 = vector.extract_strided_slice %42 {offsets = [0, 128], sizes = [1, 64], strides = [1, 1]} : vector<1x384xf32> to vector<1x64xf32>
    %53 = vector.extract_strided_slice %43 {offsets = [0, 128], sizes = [1, 64], strides = [1, 1]} : vector<1x384xf32> to vector<1x64xf32>
    %54 = arith.addf %52, %53 : vector<1x64xf32>
    %55 = arith.negf %54 : vector<1x64xf32>
    %56 = math.exp %55 : vector<1x64xf32>
    %cst_17 = arith.constant 1.000000e+00 : f32
    %57 = vector.broadcast %cst_17 : f32 to vector<1x64xf32>
    %58 = arith.addf %57, %56 : vector<1x64xf32>
    %59 = arith.divf %57, %58 : vector<1x64xf32>
    %60 = vector.extract_strided_slice %42 {offsets = [0, 256], sizes = [1, 64], strides = [1, 1]} : vector<1x384xf32> to vector<1x64xf32>
    %61 = vector.extract_strided_slice %43 {offsets = [0, 256], sizes = [1, 64], strides = [1, 1]} : vector<1x384xf32> to vector<1x64xf32>
    %62 = arith.addf %61, %9 : vector<1x64xf32>
    %63 = arith.mulf %51, %62 : vector<1x64xf32>
    %64 = arith.addf %60, %63 : vector<1x64xf32>
    %65 = math.tanh %64 : vector<1x64xf32>
    %cst_18 = arith.constant 1.000000e+00 : f32
    %66 = vector.broadcast %cst_18 : f32 to vector<1x64xf32>
    %67 = arith.subf %66, %59 : vector<1x64xf32>
    %68 = arith.mulf %67, %65 : vector<1x64xf32>
    %69 = arith.mulf %59, %40 : vector<1x64xf32>
    %70 = arith.addf %68, %69 : vector<1x64xf32>
    %71 = vector.extract_strided_slice %7 {offsets = [0, 2, 0], sizes = [1, 1, 384], strides = [1, 1, 1]} : vector<1x8x384xf32> to vector<1x1x384xf32>
    %72 = vector.shape_cast %71 : vector<1x1x384xf32> to vector<1x384xf32>
    %cst_19 = arith.constant dense<0.000000e+00> : vector<1x384xf32>
    %73 = tpu.matmul %70, %8, %cst_19 {dimension_numbers = #tpu.dot_dimension_numbers<[1], [0], [0], [1], [0, 0, 1, 1], [], []>} : vector<1x64xf32>, vector<64x384xf32>, vector<1x384xf32> -> vector<1x384xf32>
    %74 = vector.extract_strided_slice %72 {offsets = [0, 0], sizes = [1, 64], strides = [1, 1]} : vector<1x384xf32> to vector<1x64xf32>
    %75 = vector.extract_strided_slice %73 {offsets = [0, 0], sizes = [1, 64], strides = [1, 1]} : vector<1x384xf32> to vector<1x64xf32>
    %76 = arith.addf %74, %75 : vector<1x64xf32>
    %77 = arith.negf %76 : vector<1x64xf32>
    %78 = math.exp %77 : vector<1x64xf32>
    %cst_20 = arith.constant 1.000000e+00 : f32
    %79 = vector.broadcast %cst_20 : f32 to vector<1x64xf32>
    %80 = arith.addf %79, %78 : vector<1x64xf32>
    %81 = arith.divf %79, %80 : vector<1x64xf32>
    %82 = vector.extract_strided_slice %72 {offsets = [0, 128], sizes = [1, 64], strides = [1, 1]} : vector<1x384xf32> to vector<1x64xf32>
    %83 = vector.extract_strided_slice %73 {offsets = [0, 128], sizes = [1, 64], strides = [1, 1]} : vector<1x384xf32> to vector<1x64xf32>
    %84 = arith.addf %82, %83 : vector<1x64xf32>
    %85 = arith.negf %84 : vector<1x64xf32>
    %86 = math.exp %85 : vector<1x64xf32>
    %cst_21 = arith.constant 1.000000e+00 : f32
    %87 = vector.broadcast %cst_21 : f32 to vector<1x64xf32>
    %88 = arith.addf %87, %86 : vector<1x64xf32>
    %89 = arith.divf %87, %88 : vector<1x64xf32>
    %90 = vector.extract_strided_slice %72 {offsets = [0, 256], sizes = [1, 64], strides = [1, 1]} : vector<1x384xf32> to vector<1x64xf32>
    %91 = vector.extract_strided_slice %73 {offsets = [0, 256], sizes = [1, 64], strides = [1, 1]} : vector<1x384xf32> to vector<1x64xf32>
    %92 = arith.addf %91, %9 : vector<1x64xf32>
    %93 = arith.mulf %81, %92 : vector<1x64xf32>
    %94 = arith.addf %90, %93 : vector<1x64xf32>
    %95 = math.tanh %94 : vector<1x64xf32>
    %cst_22 = arith.constant 1.000000e+00 : f32
    %96 = vector.broadcast %cst_22 : f32 to vector<1x64xf32>
    %97 = arith.subf %96, %89 : vector<1x64xf32>
    %98 = arith.mulf %97, %95 : vector<1x64xf32>
    %99 = arith.mulf %89, %70 : vector<1x64xf32>
    %100 = arith.addf %98, %99 : vector<1x64xf32>
    %101 = vector.extract_strided_slice %7 {offsets = [0, 3, 0], sizes = [1, 1, 384], strides = [1, 1, 1]} : vector<1x8x384xf32> to vector<1x1x384xf32>
    %102 = vector.shape_cast %101 : vector<1x1x384xf32> to vector<1x384xf32>
    %cst_23 = arith.constant dense<0.000000e+00> : vector<1x384xf32>
    %103 = tpu.matmul %100, %8, %cst_23 {dimension_numbers = #tpu.dot_dimension_numbers<[1], [0], [0], [1], [0, 0, 1, 1], [], []>} : vector<1x64xf32>, vector<64x384xf32>, vector<1x384xf32> -> vector<1x384xf32>
    %104 = vector.extract_strided_slice %102 {offsets = [0, 0], sizes = [1, 64], strides = [1, 1]} : vector<1x384xf32> to vector<1x64xf32>
    %105 = vector.extract_strided_slice %103 {offsets = [0, 0], sizes = [1, 64], strides = [1, 1]} : vector<1x384xf32> to vector<1x64xf32>
    %106 = arith.addf %104, %105 : vector<1x64xf32>
    %107 = arith.negf %106 : vector<1x64xf32>
    %108 = math.exp %107 : vector<1x64xf32>
    %cst_24 = arith.constant 1.000000e+00 : f32
    %109 = vector.broadcast %cst_24 : f32 to vector<1x64xf32>
    %110 = arith.addf %109, %108 : vector<1x64xf32>
    %111 = arith.divf %109, %110 : vector<1x64xf32>
    %112 = vector.extract_strided_slice %102 {offsets = [0, 128], sizes = [1, 64], strides = [1, 1]} : vector<1x384xf32> to vector<1x64xf32>
    %113 = vector.extract_strided_slice %103 {offsets = [0, 128], sizes = [1, 64], strides = [1, 1]} : vector<1x384xf32> to vector<1x64xf32>
    %114 = arith.addf %112, %113 : vector<1x64xf32>
    %115 = arith.negf %114 : vector<1x64xf32>
    %116 = math.exp %115 : vector<1x64xf32>
    %cst_25 = arith.constant 1.000000e+00 : f32
    %117 = vector.broadcast %cst_25 : f32 to vector<1x64xf32>
    %118 = arith.addf %117, %116 : vector<1x64xf32>
    %119 = arith.divf %117, %118 : vector<1x64xf32>
    %120 = vector.extract_strided_slice %102 {offsets = [0, 256], sizes = [1, 64], strides = [1, 1]} : vector<1x384xf32> to vector<1x64xf32>
    %121 = vector.extract_strided_slice %103 {offsets = [0, 256], sizes = [1, 64], strides = [1, 1]} : vector<1x384xf32> to vector<1x64xf32>
    %122 = arith.addf %121, %9 : vector<1x64xf32>
    %123 = arith.mulf %111, %122 : vector<1x64xf32>
    %124 = arith.addf %120, %123 : vector<1x64xf32>
    %125 = math.tanh %124 : vector<1x64xf32>
    %cst_26 = arith.constant 1.000000e+00 : f32
    %126 = vector.broadcast %cst_26 : f32 to vector<1x64xf32>
    %127 = arith.subf %126, %119 : vector<1x64xf32>
    %128 = arith.mulf %127, %125 : vector<1x64xf32>
    %129 = arith.mulf %119, %100 : vector<1x64xf32>
    %130 = arith.addf %128, %129 : vector<1x64xf32>
    %131 = vector.extract_strided_slice %7 {offsets = [0, 4, 0], sizes = [1, 1, 384], strides = [1, 1, 1]} : vector<1x8x384xf32> to vector<1x1x384xf32>
    %132 = vector.shape_cast %131 : vector<1x1x384xf32> to vector<1x384xf32>
    %cst_27 = arith.constant dense<0.000000e+00> : vector<1x384xf32>
    %133 = tpu.matmul %130, %8, %cst_27 {dimension_numbers = #tpu.dot_dimension_numbers<[1], [0], [0], [1], [0, 0, 1, 1], [], []>} : vector<1x64xf32>, vector<64x384xf32>, vector<1x384xf32> -> vector<1x384xf32>
    %134 = vector.extract_strided_slice %132 {offsets = [0, 0], sizes = [1, 64], strides = [1, 1]} : vector<1x384xf32> to vector<1x64xf32>
    %135 = vector.extract_strided_slice %133 {offsets = [0, 0], sizes = [1, 64], strides = [1, 1]} : vector<1x384xf32> to vector<1x64xf32>
    %136 = arith.addf %134, %135 : vector<1x64xf32>
    %137 = arith.negf %136 : vector<1x64xf32>
    %138 = math.exp %137 : vector<1x64xf32>
    %cst_28 = arith.constant 1.000000e+00 : f32
    %139 = vector.broadcast %cst_28 : f32 to vector<1x64xf32>
    %140 = arith.addf %139, %138 : vector<1x64xf32>
    %141 = arith.divf %139, %140 : vector<1x64xf32>
    %142 = vector.extract_strided_slice %132 {offsets = [0, 128], sizes = [1, 64], strides = [1, 1]} : vector<1x384xf32> to vector<1x64xf32>
    %143 = vector.extract_strided_slice %133 {offsets = [0, 128], sizes = [1, 64], strides = [1, 1]} : vector<1x384xf32> to vector<1x64xf32>
    %144 = arith.addf %142, %143 : vector<1x64xf32>
    %145 = arith.negf %144 : vector<1x64xf32>
    %146 = math.exp %145 : vector<1x64xf32>
    %cst_29 = arith.constant 1.000000e+00 : f32
    %147 = vector.broadcast %cst_29 : f32 to vector<1x64xf32>
    %148 = arith.addf %147, %146 : vector<1x64xf32>
    %149 = arith.divf %147, %148 : vector<1x64xf32>
    %150 = vector.extract_strided_slice %132 {offsets = [0, 256], sizes = [1, 64], strides = [1, 1]} : vector<1x384xf32> to vector<1x64xf32>
    %151 = vector.extract_strided_slice %133 {offsets = [0, 256], sizes = [1, 64], strides = [1, 1]} : vector<1x384xf32> to vector<1x64xf32>
    %152 = arith.addf %151, %9 : vector<1x64xf32>
    %153 = arith.mulf %141, %152 : vector<1x64xf32>
    %154 = arith.addf %150, %153 : vector<1x64xf32>
    %155 = math.tanh %154 : vector<1x64xf32>
    %cst_30 = arith.constant 1.000000e+00 : f32
    %156 = vector.broadcast %cst_30 : f32 to vector<1x64xf32>
    %157 = arith.subf %156, %149 : vector<1x64xf32>
    %158 = arith.mulf %157, %155 : vector<1x64xf32>
    %159 = arith.mulf %149, %130 : vector<1x64xf32>
    %160 = arith.addf %158, %159 : vector<1x64xf32>
    %161 = vector.extract_strided_slice %7 {offsets = [0, 5, 0], sizes = [1, 1, 384], strides = [1, 1, 1]} : vector<1x8x384xf32> to vector<1x1x384xf32>
    %162 = vector.shape_cast %161 : vector<1x1x384xf32> to vector<1x384xf32>
    %cst_31 = arith.constant dense<0.000000e+00> : vector<1x384xf32>
    %163 = tpu.matmul %160, %8, %cst_31 {dimension_numbers = #tpu.dot_dimension_numbers<[1], [0], [0], [1], [0, 0, 1, 1], [], []>} : vector<1x64xf32>, vector<64x384xf32>, vector<1x384xf32> -> vector<1x384xf32>
    %164 = vector.extract_strided_slice %162 {offsets = [0, 0], sizes = [1, 64], strides = [1, 1]} : vector<1x384xf32> to vector<1x64xf32>
    %165 = vector.extract_strided_slice %163 {offsets = [0, 0], sizes = [1, 64], strides = [1, 1]} : vector<1x384xf32> to vector<1x64xf32>
    %166 = arith.addf %164, %165 : vector<1x64xf32>
    %167 = arith.negf %166 : vector<1x64xf32>
    %168 = math.exp %167 : vector<1x64xf32>
    %cst_32 = arith.constant 1.000000e+00 : f32
    %169 = vector.broadcast %cst_32 : f32 to vector<1x64xf32>
    %170 = arith.addf %169, %168 : vector<1x64xf32>
    %171 = arith.divf %169, %170 : vector<1x64xf32>
    %172 = vector.extract_strided_slice %162 {offsets = [0, 128], sizes = [1, 64], strides = [1, 1]} : vector<1x384xf32> to vector<1x64xf32>
    %173 = vector.extract_strided_slice %163 {offsets = [0, 128], sizes = [1, 64], strides = [1, 1]} : vector<1x384xf32> to vector<1x64xf32>
    %174 = arith.addf %172, %173 : vector<1x64xf32>
    %175 = arith.negf %174 : vector<1x64xf32>
    %176 = math.exp %175 : vector<1x64xf32>
    %cst_33 = arith.constant 1.000000e+00 : f32
    %177 = vector.broadcast %cst_33 : f32 to vector<1x64xf32>
    %178 = arith.addf %177, %176 : vector<1x64xf32>
    %179 = arith.divf %177, %178 : vector<1x64xf32>
    %180 = vector.extract_strided_slice %162 {offsets = [0, 256], sizes = [1, 64], strides = [1, 1]} : vector<1x384xf32> to vector<1x64xf32>
    %181 = vector.extract_strided_slice %163 {offsets = [0, 256], sizes = [1, 64], strides = [1, 1]} : vector<1x384xf32> to vector<1x64xf32>
    %182 = arith.addf %181, %9 : vector<1x64xf32>
    %183 = arith.mulf %171, %182 : vector<1x64xf32>
    %184 = arith.addf %180, %183 : vector<1x64xf32>
    %185 = math.tanh %184 : vector<1x64xf32>
    %cst_34 = arith.constant 1.000000e+00 : f32
    %186 = vector.broadcast %cst_34 : f32 to vector<1x64xf32>
    %187 = arith.subf %186, %179 : vector<1x64xf32>
    %188 = arith.mulf %187, %185 : vector<1x64xf32>
    %189 = arith.mulf %179, %160 : vector<1x64xf32>
    %190 = arith.addf %188, %189 : vector<1x64xf32>
    %191 = vector.extract_strided_slice %7 {offsets = [0, 6, 0], sizes = [1, 1, 384], strides = [1, 1, 1]} : vector<1x8x384xf32> to vector<1x1x384xf32>
    %192 = vector.shape_cast %191 : vector<1x1x384xf32> to vector<1x384xf32>
    %cst_35 = arith.constant dense<0.000000e+00> : vector<1x384xf32>
    %193 = tpu.matmul %190, %8, %cst_35 {dimension_numbers = #tpu.dot_dimension_numbers<[1], [0], [0], [1], [0, 0, 1, 1], [], []>} : vector<1x64xf32>, vector<64x384xf32>, vector<1x384xf32> -> vector<1x384xf32>
    %194 = vector.extract_strided_slice %192 {offsets = [0, 0], sizes = [1, 64], strides = [1, 1]} : vector<1x384xf32> to vector<1x64xf32>
    %195 = vector.extract_strided_slice %193 {offsets = [0, 0], sizes = [1, 64], strides = [1, 1]} : vector<1x384xf32> to vector<1x64xf32>
    %196 = arith.addf %194, %195 : vector<1x64xf32>
    %197 = arith.negf %196 : vector<1x64xf32>
    %198 = math.exp %197 : vector<1x64xf32>
    %cst_36 = arith.constant 1.000000e+00 : f32
    %199 = vector.broadcast %cst_36 : f32 to vector<1x64xf32>
    %200 = arith.addf %199, %198 : vector<1x64xf32>
    %201 = arith.divf %199, %200 : vector<1x64xf32>
    %202 = vector.extract_strided_slice %192 {offsets = [0, 128], sizes = [1, 64], strides = [1, 1]} : vector<1x384xf32> to vector<1x64xf32>
    %203 = vector.extract_strided_slice %193 {offsets = [0, 128], sizes = [1, 64], strides = [1, 1]} : vector<1x384xf32> to vector<1x64xf32>
    %204 = arith.addf %202, %203 : vector<1x64xf32>
    %205 = arith.negf %204 : vector<1x64xf32>
    %206 = math.exp %205 : vector<1x64xf32>
    %cst_37 = arith.constant 1.000000e+00 : f32
    %207 = vector.broadcast %cst_37 : f32 to vector<1x64xf32>
    %208 = arith.addf %207, %206 : vector<1x64xf32>
    %209 = arith.divf %207, %208 : vector<1x64xf32>
    %210 = vector.extract_strided_slice %192 {offsets = [0, 256], sizes = [1, 64], strides = [1, 1]} : vector<1x384xf32> to vector<1x64xf32>
    %211 = vector.extract_strided_slice %193 {offsets = [0, 256], sizes = [1, 64], strides = [1, 1]} : vector<1x384xf32> to vector<1x64xf32>
    %212 = arith.addf %211, %9 : vector<1x64xf32>
    %213 = arith.mulf %201, %212 : vector<1x64xf32>
    %214 = arith.addf %210, %213 : vector<1x64xf32>
    %215 = math.tanh %214 : vector<1x64xf32>
    %cst_38 = arith.constant 1.000000e+00 : f32
    %216 = vector.broadcast %cst_38 : f32 to vector<1x64xf32>
    %217 = arith.subf %216, %209 : vector<1x64xf32>
    %218 = arith.mulf %217, %215 : vector<1x64xf32>
    %219 = arith.mulf %209, %190 : vector<1x64xf32>
    %220 = arith.addf %218, %219 : vector<1x64xf32>
    %221 = vector.extract_strided_slice %7 {offsets = [0, 7, 0], sizes = [1, 1, 384], strides = [1, 1, 1]} : vector<1x8x384xf32> to vector<1x1x384xf32>
    %222 = vector.shape_cast %221 : vector<1x1x384xf32> to vector<1x384xf32>
    %cst_39 = arith.constant dense<0.000000e+00> : vector<1x384xf32>
    %223 = tpu.matmul %220, %8, %cst_39 {dimension_numbers = #tpu.dot_dimension_numbers<[1], [0], [0], [1], [0, 0, 1, 1], [], []>} : vector<1x64xf32>, vector<64x384xf32>, vector<1x384xf32> -> vector<1x384xf32>
    %224 = vector.extract_strided_slice %222 {offsets = [0, 0], sizes = [1, 64], strides = [1, 1]} : vector<1x384xf32> to vector<1x64xf32>
    %225 = vector.extract_strided_slice %223 {offsets = [0, 0], sizes = [1, 64], strides = [1, 1]} : vector<1x384xf32> to vector<1x64xf32>
    %226 = arith.addf %224, %225 : vector<1x64xf32>
    %227 = arith.negf %226 : vector<1x64xf32>
    %228 = math.exp %227 : vector<1x64xf32>
    %cst_40 = arith.constant 1.000000e+00 : f32
    %229 = vector.broadcast %cst_40 : f32 to vector<1x64xf32>
    %230 = arith.addf %229, %228 : vector<1x64xf32>
    %231 = arith.divf %229, %230 : vector<1x64xf32>
    %232 = vector.extract_strided_slice %222 {offsets = [0, 128], sizes = [1, 64], strides = [1, 1]} : vector<1x384xf32> to vector<1x64xf32>
    %233 = vector.extract_strided_slice %223 {offsets = [0, 128], sizes = [1, 64], strides = [1, 1]} : vector<1x384xf32> to vector<1x64xf32>
    %234 = arith.addf %232, %233 : vector<1x64xf32>
    %235 = arith.negf %234 : vector<1x64xf32>
    %236 = math.exp %235 : vector<1x64xf32>
    %cst_41 = arith.constant 1.000000e+00 : f32
    %237 = vector.broadcast %cst_41 : f32 to vector<1x64xf32>
    %238 = arith.addf %237, %236 : vector<1x64xf32>
    %239 = arith.divf %237, %238 : vector<1x64xf32>
    %240 = vector.extract_strided_slice %222 {offsets = [0, 256], sizes = [1, 64], strides = [1, 1]} : vector<1x384xf32> to vector<1x64xf32>
    %241 = vector.extract_strided_slice %223 {offsets = [0, 256], sizes = [1, 64], strides = [1, 1]} : vector<1x384xf32> to vector<1x64xf32>
    %242 = arith.addf %241, %9 : vector<1x64xf32>
    %243 = arith.mulf %231, %242 : vector<1x64xf32>
    %244 = arith.addf %240, %243 : vector<1x64xf32>
    %245 = math.tanh %244 : vector<1x64xf32>
    %cst_42 = arith.constant 1.000000e+00 : f32
    %246 = vector.broadcast %cst_42 : f32 to vector<1x64xf32>
    %247 = arith.subf %246, %239 : vector<1x64xf32>
    %248 = arith.mulf %247, %245 : vector<1x64xf32>
    %249 = arith.mulf %239, %220 : vector<1x64xf32>
    %250 = arith.addf %248, %249 : vector<1x64xf32>
    %251 = tpu.iota {dimensions = array<i32: 1>} : vector<1x64xi32>
    %c32_i32 = arith.constant 32 : i32
    %252 = vector.broadcast %c32_i32 : i32 to vector<1x64xi32>
    %253 = arith.cmpi slt, %251, %252 : vector<1x64xi32>
    %254 = arith.select %253, %40, %250 : vector<1x64xi1>, vector<1x64xf32>
    %c0_43 = arith.constant 0 : index
    %c0_44 = arith.constant 0 : index
    %c0_45 = arith.constant 0 : index
    %255 = vector.load %arg15[%c0_43, %c0_44, %c0_45] : memref<1x8x64xf32, #tpu.memory_space<vmem>>, vector<1x1x64xf32>
    %256 = vector.shape_cast %255 : vector<1x1x64xf32> to vector<1x64xf32>
    %257 = vector.shape_cast %254 : vector<1x64xf32> to vector<1x1x64xf32>
    tpu.vector_store %arg15[%c0_43, %c0_44, %c0_45], %257 {strides = array<i32>} : memref<1x8x64xf32, #tpu.memory_space<vmem>>, vector<1x1x64xf32>,
    %258 = arith.select %253, %70, %220 : vector<1x64xi1>, vector<1x64xf32>
    %c0_46 = arith.constant 0 : index
    %c1 = arith.constant 1 : index
    %c0_47 = arith.constant 0 : index
    %259 = vector.load %arg15[%c0_46, %c1, %c0_47] : memref<1x8x64xf32, #tpu.memory_space<vmem>>, vector<1x1x64xf32>
    %260 = vector.shape_cast %259 : vector<1x1x64xf32> to vector<1x64xf32>
    %261 = vector.shape_cast %258 : vector<1x64xf32> to vector<1x1x64xf32>
    tpu.vector_store %arg15[%c0_46, %c1, %c0_47], %261 {strides = array<i32>} : memref<1x8x64xf32, #tpu.memory_space<vmem>>, vector<1x1x64xf32>,
    %262 = arith.select %253, %100, %190 : vector<1x64xi1>, vector<1x64xf32>
    %c0_48 = arith.constant 0 : index
    %c2 = arith.constant 2 : index
    %c0_49 = arith.constant 0 : index
    %263 = vector.load %arg15[%c0_48, %c2, %c0_49] : memref<1x8x64xf32, #tpu.memory_space<vmem>>, vector<1x1x64xf32>
    %264 = vector.shape_cast %263 : vector<1x1x64xf32> to vector<1x64xf32>
    %265 = vector.shape_cast %262 : vector<1x64xf32> to vector<1x1x64xf32>
    tpu.vector_store %arg15[%c0_48, %c2, %c0_49], %265 {strides = array<i32>} : memref<1x8x64xf32, #tpu.memory_space<vmem>>, vector<1x1x64xf32>,
    %266 = arith.select %253, %130, %160 : vector<1x64xi1>, vector<1x64xf32>
    %c0_50 = arith.constant 0 : index
    %c3 = arith.constant 3 : index
    %c0_51 = arith.constant 0 : index
    %267 = vector.load %arg15[%c0_50, %c3, %c0_51] : memref<1x8x64xf32, #tpu.memory_space<vmem>>, vector<1x1x64xf32>
    %268 = vector.shape_cast %267 : vector<1x1x64xf32> to vector<1x64xf32>
    %269 = vector.shape_cast %266 : vector<1x64xf32> to vector<1x1x64xf32>
    tpu.vector_store %arg15[%c0_50, %c3, %c0_51], %269 {strides = array<i32>} : memref<1x8x64xf32, #tpu.memory_space<vmem>>, vector<1x1x64xf32>,
    %270 = arith.select %253, %160, %130 : vector<1x64xi1>, vector<1x64xf32>
    %c0_52 = arith.constant 0 : index
    %c4 = arith.constant 4 : index
    %c0_53 = arith.constant 0 : index
    %271 = vector.load %arg15[%c0_52, %c4, %c0_53] : memref<1x8x64xf32, #tpu.memory_space<vmem>>, vector<1x1x64xf32>
    %272 = vector.shape_cast %271 : vector<1x1x64xf32> to vector<1x64xf32>
    %273 = vector.shape_cast %270 : vector<1x64xf32> to vector<1x1x64xf32>
    tpu.vector_store %arg15[%c0_52, %c4, %c0_53], %273 {strides = array<i32>} : memref<1x8x64xf32, #tpu.memory_space<vmem>>, vector<1x1x64xf32>,
    %274 = arith.select %253, %190, %100 : vector<1x64xi1>, vector<1x64xf32>
    %c0_54 = arith.constant 0 : index
    %c5 = arith.constant 5 : index
    %c0_55 = arith.constant 0 : index
    %275 = vector.load %arg15[%c0_54, %c5, %c0_55] : memref<1x8x64xf32, #tpu.memory_space<vmem>>, vector<1x1x64xf32>
    %276 = vector.shape_cast %275 : vector<1x1x64xf32> to vector<1x64xf32>
    %277 = vector.shape_cast %274 : vector<1x64xf32> to vector<1x1x64xf32>
    tpu.vector_store %arg15[%c0_54, %c5, %c0_55], %277 {strides = array<i32>} : memref<1x8x64xf32, #tpu.memory_space<vmem>>, vector<1x1x64xf32>,
    %278 = arith.select %253, %220, %70 : vector<1x64xi1>, vector<1x64xf32>
    %c0_56 = arith.constant 0 : index
    %c6 = arith.constant 6 : index
    %c0_57 = arith.constant 0 : index
    %279 = vector.load %arg15[%c0_56, %c6, %c0_57] : memref<1x8x64xf32, #tpu.memory_space<vmem>>, vector<1x1x64xf32>
    %280 = vector.shape_cast %279 : vector<1x1x64xf32> to vector<1x64xf32>
    %281 = vector.shape_cast %278 : vector<1x64xf32> to vector<1x1x64xf32>
    tpu.vector_store %arg15[%c0_56, %c6, %c0_57], %281 {strides = array<i32>} : memref<1x8x64xf32, #tpu.memory_space<vmem>>, vector<1x1x64xf32>,
    %282 = arith.select %253, %250, %40 : vector<1x64xi1>, vector<1x64xf32>
    %c0_58 = arith.constant 0 : index
    %c7 = arith.constant 7 : index
    %c0_59 = arith.constant 0 : index
    %283 = vector.load %arg15[%c0_58, %c7, %c0_59] : memref<1x8x64xf32, #tpu.memory_space<vmem>>, vector<1x1x64xf32>
    %284 = vector.shape_cast %283 : vector<1x1x64xf32> to vector<1x64xf32>
    %285 = vector.shape_cast %282 : vector<1x64xf32> to vector<1x1x64xf32>
    tpu.vector_store %arg15[%c0_58, %c7, %c0_59], %285 {strides = array<i32>} : memref<1x8x64xf32, #tpu.memory_space<vmem>>, vector<1x1x64xf32>,
    %c0_60 = arith.constant 0 : index
    %c0_61 = arith.constant 0 : index
    %c0_62 = arith.constant 0 : index
    %286 = vector.load %arg15[%c0_60, %c0_61, %c0_62] : memref<1x8x64xf32, #tpu.memory_space<vmem>>, vector<1x8x64xf32>
    %c0_63 = arith.constant 0 : index
    %c0_64 = arith.constant 0 : index
    %c0_65 = arith.constant 0 : index
    %287 = vector.load %arg2[%c0_63, %c0_64, %c0_65] : memref<1x1x1xi32, #tpu.memory_space<vmem>>, vector<1x1x1xi32>
    %c0_66 = arith.constant 0 : index
    %c0_67 = arith.constant 0 : index
    %c0_68 = arith.constant 0 : index
    %288 = vector.load %arg3[%c0_66, %c0_67, %c0_68] : memref<1x1x1xi32, #tpu.memory_space<vmem>>, vector<1x1x1xi32>
    %289 = tpu.iota {dimensions = array<i32: 1>} : vector<1x8x1xi32>
    %290 = vector.broadcast %287 : vector<1x1x1xi32> to vector<1x8x1xi32>
    %291 = arith.cmpi sge, %289, %290 : vector<1x8x1xi32>
    %292 = vector.broadcast %288 : vector<1x1x1xi32> to vector<1x8x1xi32>
    %293 = arith.cmpi sle, %289, %292 : vector<1x8x1xi32>
    %294 = arith.andi %291, %293 : vector<1x8x1xi1>
    %295 = arith.subi %288, %287 : vector<1x1x1xi32>
    %c1_i32 = arith.constant 1 : i32
    %296 = vector.broadcast %c1_i32 : i32 to vector<1x1x1xi32>
    %297 = arith.addi %295, %296 : vector<1x1x1xi32>
    %298 = arith.sitofp %297 : vector<1x1x1xi32> to vector<1x1x1xf32>
    %cst_69 = arith.constant 0.000000e+00 : f32
    %299 = vector.shape_cast %294 : vector<1x8x1xi1> to vector<1x8x1xi1>
    %300 = vector.broadcast %299 : vector<1x8x1xi1> to vector<1x8x64xi1>
    %301 = vector.broadcast %cst_69 : f32 to vector<1x8x64xf32>
    %302 = arith.select %300, %286, %301 : vector<1x8x64xi1>, vector<1x8x64xf32>
    %cst_70 = arith.constant dense<0.000000e+00> : vector<1x64xf32>
    %303 = vector.multi_reduction <add>, %302, %cst_70 [1] : vector<1x8x64xf32> to vector<1x64xf32>
    %304 = vector.shape_cast %303 : vector<1x64xf32> to vector<1x1x64xf32>
    %305 = vector.broadcast %298 : vector<1x1x1xf32> to vector<1x1x64xf32>
    %306 = arith.divf %304, %305 : vector<1x1x64xf32>
    %307 = vector.shape_cast %306 : vector<1x1x64xf32> to vector<1x64xf32>
    %308 = vector.shape_cast %286 : vector<1x8x64xf32> to vector<8x64xf32>
    %c0_71 = arith.constant 0 : index
    %c0_72 = arith.constant 0 : index
    %309 = vector.load %arg8[%c0_71, %c0_72] : memref<64x32xf32, #tpu.memory_space<vmem>>, vector<64x32xf32>
    %cst_73 = arith.constant dense<0.000000e+00> : vector<8x32xf32>
    %310 = tpu.matmul %308, %309, %cst_73 {dimension_numbers = #tpu.dot_dimension_numbers<[1], [0], [0], [1], [0, 0, 1, 1], [], []>} : vector<8x64xf32>, vector<64x32xf32>, vector<8x32xf32> -> vector<8x32xf32>
    %c0_74 = arith.constant 0 : index
    %c0_75 = arith.constant 0 : index
    %311 = vector.load %arg9[%c0_74, %c0_75] : memref<64x32xf32, #tpu.memory_space<vmem>>, vector<64x32xf32>
    %cst_76 = arith.constant dense<0.000000e+00> : vector<1x32xf32>
    %312 = tpu.matmul %307, %311, %cst_76 {dimension_numbers = #tpu.dot_dimension_numbers<[1], [0], [0], [1], [0, 0, 1, 1], [], []>} : vector<1x64xf32>, vector<64x32xf32>, vector<1x32xf32> -> vector<1x32xf32>
    %313 = vector.shape_cast %310 : vector<8x32xf32> to vector<1x8x32xf32>
    %314 = vector.shape_cast %312 : vector<1x32xf32> to vector<1x1x32xf32>
    %315 = vector.broadcast %314 : vector<1x1x32xf32> to vector<1x8x32xf32>
    %316 = arith.addf %313, %315 : vector<1x8x32xf32>
    %c0_77 = arith.constant 0 : index
    %c0_78 = arith.constant 0 : index
    %317 = vector.load %arg10[%c0_77, %c0_78] : memref<1x32xf32, #tpu.memory_space<vmem>>, vector<1x32xf32>
    %318 = vector.shape_cast %317 : vector<1x32xf32> to vector<1x1x32xf32>
    %319 = vector.broadcast %318 : vector<1x1x32xf32> to vector<1x8x32xf32>
    %320 = arith.addf %316, %319 : vector<1x8x32xf32>
    %321 = math.tanh %320 : vector<1x8x32xf32>
    %c0_79 = arith.constant 0 : index
    %c0_80 = arith.constant 0 : index
    %322 = vector.load %arg11[%c0_79, %c0_80] : memref<32x32xf32, #tpu.memory_space<vmem>>, vector<32x32xf32>
    %323 = vector.shape_cast %322 : vector<32x32xf32> to vector<1x32x32xf32>
    %cst_81 = arith.constant dense<0.000000e+00> : vector<1x32x8xf32>
    %324 = tpu.matmul %323, %321, %cst_81 {dimension_numbers = #tpu.dot_dimension_numbers<[2], [2], [1], [1], [0, 0, 0, 1, 1, 1], [0], [0]>} : vector<1x32x32xf32>, vector<1x8x32xf32>, vector<1x32x8xf32> -> vector<1x32x8xf32>
    %cst_82 = arith.constant dense<0xFF800000> : vector<1x32xf32>
    %325 = vector.multi_reduction <maximumf>, %324, %cst_82 [2] : vector<1x32x8xf32> to vector<1x32xf32>
    %326 = vector.shape_cast %325 : vector<1x32xf32> to vector<1x32x1xf32>
    %327 = vector.broadcast %326 : vector<1x32x1xf32> to vector<1x32x8xf32>
    %328 = arith.subf %324, %327 : vector<1x32x8xf32>
    %329 = math.exp %328 : vector<1x32x8xf32>
    %cst_83 = arith.constant dense<0.000000e+00> : vector<1x32xf32>
    %330 = vector.multi_reduction <add>, %329, %cst_83 [2] : vector<1x32x8xf32> to vector<1x32xf32>
    %331 = vector.shape_cast %330 : vector<1x32xf32> to vector<1x32x1xf32>
    %332 = tpu.reciprocal %331 {approx = true} : vector<1x32x1xf32> -> vector<1x32x1xf32>
    %333 = vector.broadcast %332 : vector<1x32x1xf32> to vector<1x32x8xf32>
    %334 = arith.mulf %329, %333 : vector<1x32x8xf32>
    %cst_84 = arith.constant dense<0.000000e+00> : vector<1x32x64xf32>
    %335 = tpu.matmul %334, %286, %cst_84 {dimension_numbers = #tpu.dot_dimension_numbers<[2], [1], [1], [2], [0, 0, 0, 1, 1, 2], [0], [0]>} : vector<1x32x8xf32>, vector<1x8x64xf32>, vector<1x32x64xf32> -> vector<1x32x64xf32>
    %336 = vector.shape_cast %335 : vector<1x32x64xf32> to vector<32x64xf32>
    %c0_85 = arith.constant 0 : index
    %c0_86 = arith.constant 0 : index
    %337 = vector.load %arg12[%c0_85, %c0_86] : memref<64x4xf32, #tpu.memory_space<vmem>>, vector<64x4xf32>
    %cst_87 = arith.constant dense<0.000000e+00> : vector<32x4xf32>
    %338 = tpu.matmul %336, %337, %cst_87 {dimension_numbers = #tpu.dot_dimension_numbers<[1], [0], [0], [1], [0, 0, 1, 1], [], []>} : vector<32x64xf32>, vector<64x4xf32>, vector<32x4xf32> -> vector<32x4xf32>
    %c0_88 = arith.constant 0 : index
    %c0_89 = arith.constant 0 : index
    %339 = vector.load %arg13[%c0_88, %c0_89] : memref<1x4xf32, #tpu.memory_space<vmem>>, vector<1x4xf32>
    %340 = vector.broadcast %339 : vector<1x4xf32> to vector<32x4xf32>
    %341 = arith.addf %338, %340 : vector<32x4xf32>
    %342 = vector.shape_cast %341 : vector<32x4xf32> to vector<1x32x4xf32>
    %c0_90 = arith.constant 0 : index
    %c0_91 = arith.constant 0 : index
    %c0_92 = arith.constant 0 : index
    %343 = vector.load %arg14[%c0_90, %c0_91, %c0_92] : memref<1x32x4xf32, #tpu.memory_space<vmem>>, vector<1x32x4xf32>
    tpu.vector_store %arg14[%c0_90, %c0_91, %c0_92], %342 {strides = array<i32>} : memref<1x32x4xf32, #tpu.memory_space<vmem>>, vector<1x32x4xf32>,
    return
  }
  func.func @transform_0(%arg0: i32) -> (i32, i32, i32) {
    %c0_i32 = arith.constant 0 : i32
    %c0_i32_0 = arith.constant 0 : i32
    %c0_i32_1 = arith.constant 0 : i32
    return %arg0, %c0_i32, %c0_i32_0 : i32, i32, i32
  }
  func.func @transform_1(%arg0: i32) -> (i32, i32, i32) {
    %c0_i32 = arith.constant 0 : i32
    %c0_i32_0 = arith.constant 0 : i32
    %c0_i32_1 = arith.constant 0 : i32
    return %arg0, %c0_i32, %c0_i32_0 : i32, i32, i32
  }
  func.func @transform_2(%arg0: i32) -> (i32, i32, i32) {
    %c0_i32 = arith.constant 0 : i32
    %c0_i32_0 = arith.constant 0 : i32
    %c0_i32_1 = arith.constant 0 : i32
    return %arg0, %c0_i32, %c0_i32_0 : i32, i32, i32
  }
  func.func @transform_3(%arg0: i32) -> (i32, i32) {
    %c0_i32 = arith.constant 0 : i32
    %c0_i32_0 = arith.constant 0 : i32
    %c0_i32_1 = arith.constant 0 : i32
    return %c0_i32, %c0_i32_0 : i32, i32
  }
  func.func @transform_4(%arg0: i32) -> (i32, i32) {
    %c0_i32 = arith.constant 0 : i32
    %c0_i32_0 = arith.constant 0 : i32
    %c0_i32_1 = arith.constant 0 : i32
    return %c0_i32, %c0_i32_0 : i32, i32
  }
  func.func @transform_5(%arg0: i32) -> (i32, i32) {
    %c0_i32 = arith.constant 0 : i32
    %c0_i32_0 = arith.constant 0 : i32
    %c0_i32_1 = arith.constant 0 : i32
    return %c0_i32, %c0_i32_0 : i32, i32
  }
  func.func @transform_6(%arg0: i32) -> (i32, i32) {
    %c0_i32 = arith.constant 0 : i32
    %c0_i32_0 = arith.constant 0 : i32
    %c0_i32_1 = arith.constant 0 : i32
    return %c0_i32, %c0_i32_0 : i32, i32
  }
  func.func @transform_7(%arg0: i32) -> (i32, i32) {
    %c0_i32 = arith.constant 0 : i32
    %c0_i32_0 = arith.constant 0 : i32
    %c0_i32_1 = arith.constant 0 : i32
    return %c0_i32, %c0_i32_0 : i32, i32
  }
  func.func @transform_8(%arg0: i32) -> (i32, i32) {
    %c0_i32 = arith.constant 0 : i32
    %c0_i32_0 = arith.constant 0 : i32
    %c0_i32_1 = arith.constant 0 : i32
    return %c0_i32, %c0_i32_0 : i32, i32
  }
  func.func @transform_9(%arg0: i32) -> (i32, i32) {
    %c0_i32 = arith.constant 0 : i32
    %c0_i32_0 = arith.constant 0 : i32
    %c0_i32_1 = arith.constant 0 : i32
    return %c0_i32, %c0_i32_0 : i32, i32
  }
  func.func @transform_10(%arg0: i32) -> (i32, i32) {
    %c0_i32 = arith.constant 0 : i32
    %c0_i32_0 = arith.constant 0 : i32
    %c0_i32_1 = arith.constant 0 : i32
    return %c0_i32, %c0_i32_0 : i32, i32
  }
  func.func @transform_11(%arg0: i32) -> (i32, i32) {
    %c0_i32 = arith.constant 0 : i32
    %c0_i32_0 = arith.constant 0 : i32
    %c0_i32_1 = arith.constant 0 : i32
    return %c0_i32, %c0_i32_0 : i32, i32
  }
  func.func @transform_12(%arg0: i32) -> (i32, i32) {
    %c0_i32 = arith.constant 0 : i32
    %c0_i32_0 = arith.constant 0 : i32
    %c0_i32_1 = arith.constant 0 : i32
    return %c0_i32, %c0_i32_0 : i32, i32
  }
  func.func @transform_13(%arg0: i32) -> (i32, i32, i32) {
    %c0_i32 = arith.constant 0 : i32
    %c0_i32_0 = arith.constant 0 : i32
    %c0_i32_1 = arith.constant 0 : i32
    return %arg0, %c0_i32, %c0_i32_0 : i32, i32, i32
  }
}

</mosaic_0001>

<llo_original>
// kernel: _lambda_.1
$region0: #{_lambda_.1}
  #allocation0 [shape = 'u32[]', space=smem, size = 0x4, offset = 0x4, fixed_abs, tag = 'smem constant byte address 0x4 - core index']
  #allocation1 [shape = 'u32[144,128]{1,0:T(1,128)}', space=vmem, size = 0x12000, scoped, tag = 'internal scratch']
  #allocation2 [shape = 'f32[1,8,64]{2,1,0:T(8,128)}', space=vmem, size = 0x1000, scoped, tag = 'scratch operand']
  %s0 = inlined_call_operand.vmem [shape: f32[2,8,64], index: 0, kind: input, shape index: {}]
  %s1 = inlined_call_operand.vmem [shape: s32[2,1,1], index: 1, kind: input, shape index: {}]
  %s2 = inlined_call_operand.vmem [shape: s32[2,1,1], index: 2, kind: input, shape index: {}]
  %s3 = inlined_call_operand.vmem [shape: f32[64,384], index: 3, kind: input, shape index: {}]
  %s4 = inlined_call_operand.vmem [shape: f32[64,384], index: 4, kind: input, shape index: {}]
  %s5 = inlined_call_operand.vmem [shape: f32[1,384], index: 5, kind: input, shape index: {}]
  %s6 = inlined_call_operand.vmem [shape: f32[1,64], index: 6, kind: input, shape index: {}]
  %s7 = inlined_call_operand.vmem [shape: f32[64,32], index: 7, kind: input, shape index: {}]
  %s8 = inlined_call_operand.vmem [shape: f32[64,32], index: 8, kind: input, shape index: {}]
  %s9 = inlined_call_operand.vmem [shape: f32[1,32], index: 9, kind: input, shape index: {}]
  %s10 = inlined_call_operand.vmem [shape: f32[32,32], index: 10, kind: input, shape index: {}]
  %s11 = inlined_call_operand.vmem [shape: f32[64,4], index: 11, kind: input, shape index: {}]
  %s12 = inlined_call_operand.vmem [shape: f32[1,4], index: 12, kind: input, shape index: {}]
  %s13 = inlined_call_operand.vmem [shape: f32[2,32,4], index: 13, kind: output, shape index: {}]
  %s14 = sld [smem:[#allocation0]]
  $region85: #{_lambda_.1} parent=0
    _
  %s16 = ssub.s32 1, %s14
  %s17 = scalar_select 0, %s16, %s14
  loop: start=0, step=1, limit=4
  $region2: #{_lambda_.1} parent=0 // loop_pre_header
    _
  $region3: #{_lambda_.1} parent=0 // loop_header
    %s19 = sphi 0, %s23
    %p20 = scmp.ge.s32.totalorder %s19, 4
    %s29 = sphi 0, %s31
    %s32 = sphi 0, %s29
    %s33 = sphi 0, %s32
    %s49 = sphi 0, %s33
    %s55 = sphi 0, %s57
    %s58 = sphi 0, %s55
    %s59 = sphi 0, %s58
    %s75 = sphi 0, %s59
    %s81 = sphi 0, %s83
    %s84 = sphi 0, %s81
    %s85 = sphi 0, %s84
    %s101 = sphi 0, %s85
    %s105 = sphi 0, %s105
    %s107 = sphi 0, %s105
    %s108 = sphi 0, %s107
    %s122 = sphi 0, %s108
    %s126 = sphi 0, %s126
    %s128 = sphi 0, %s126
    %s129 = sphi 0, %s128
    %s143 = sphi 0, %s129
    %s147 = sphi 0, %s147
    %s149 = sphi 0, %s147
    %s150 = sphi 0, %s149
    %s164 = sphi 0, %s150
    %s168 = sphi 0, %s168
    %s170 = sphi 0, %s168
    %s171 = sphi 0, %s170
    %s185 = sphi 0, %s171
    %s189 = sphi 0, %s189
    %s191 = sphi 0, %s189
    %s192 = sphi 0, %s191
    %s206 = sphi 0, %s192
    %s210 = sphi 0, %s210
    %s212 = sphi 0, %s210
    %s213 = sphi 0, %s212
    %s227 = sphi 0, %s213
    %s231 = sphi 0, %s231
    %s233 = sphi 0, %s231
    %s234 = sphi 0, %s233
    %s248 = sphi 0, %s234
    %s252 = sphi 0, %s252
    %s254 = sphi 0, %s252
    %s255 = sphi 0, %s254
    %s269 = sphi 0, %s255
    %s273 = sphi 0, %s273
    %s275 = sphi 0, %s273
    %s276 = sphi 0, %s275
    %s290 = sphi 0, %s276
    %s294 = sphi 0, %s294
    %s296 = sphi 0, %s294
    %s297 = sphi 0, %s296
    %s311 = sphi 0, %s297
    %s317 = sphi 0, %s319
    %s320 = sphi 0, %s317
    %s321 = sphi 0, %s320
    %s337 = sphi 0, %s321
  $region4: #{_lambda_.1} parent=0 // loop_header_branch
    %22 = sbr.rel (%p20) target = $region8
  $region5: #{_lambda_.1} parent=0 // loop_body
    %s24 = ssub.s32 %s19, 1
    %s25 = ssub.s32 %s19, 2
    %s26 = sadd.s32 %s19, 1
    %s27 = ssub.s32 %s19, %s26
    %p28 = scmp.eq.s32.totalorder %s27, 0
    %s30 = sadd.s32 %s29, 1
    %s31 = scalar_select %p28, %s29, %s30
    %p34 = pneg %p28
    %p35 = scmp.eq.s32.totalorder %s19, 1
    %p36 = por %p34, %p35
    %p37 = scmp.ne.s32.totalorder %s29, %s32
    %p38 = scmp.eq.s32.totalorder %s19, 0
    %p39 = por %p37, %p38
    %p40 = scmp.ne.s32.totalorder %s29, %s32
    %p41 = scmp.eq.s32.totalorder %s24, 1
    %p42 = por %p40, %p41
    %p43 = scmp.ne.s32.totalorder %s32, %s33
    %p44 = scmp.eq.s32.totalorder %s24, 0
    %p45 = por %p43, %p44
    %p46 = scmp.ne.s32.totalorder %s32, %s33
    %p47 = scmp.eq.s32.totalorder %s25, 1
    %p48 = por %p46, %p47
    %p50 = scmp.ne.s32.totalorder %s33, %s49
    %p51 = scmp.eq.s32.totalorder %s25, 0
    %p52 = por %p50, %p51
    %s53 = ssub.s32 %s19, %s26
    %p54 = scmp.eq.s32.totalorder %s53, 0
    %s56 = sadd.s32 %s55, 1
    %s57 = scalar_select %p54, %s55, %s56
    %p60 = pneg %p54
    %p61 = scmp.eq.s32.totalorder %s19, 1
    %p62 = por %p60, %p61
    %p63 = scmp.ne.s32.totalorder %s55, %s58
    %p64 = scmp.eq.s32.totalorder %s19, 0
    %p65 = por %p63, %p64
    %p66 = scmp.ne.s32.totalorder %s55, %s58
    %p67 = scmp.eq.s32.totalorder %s24, 1
    %p68 = por %p66, %p67
    %p69 = scmp.ne.s32.totalorder %s58, %s59
    %p70 = scmp.eq.s32.totalorder %s24, 0
    %p71 = por %p69, %p70
    %p72 = scmp.ne.s32.totalorder %s58, %s59
    %p73 = scmp.eq.s32.totalorder %s25, 1
    %p74 = por %p72, %p73
    %p76 = scmp.ne.s32.totalorder %s59, %s75
    %p77 = scmp.eq.s32.totalorder %s25, 0
    %p78 = por %p76, %p77
    %s79 = ssub.s32 %s19, %s26
    %p80 = scmp.eq.s32.totalorder %s79, 0
    %s82 = sadd.s32 %s81, 1
    %s83 = scalar_select %p80, %s81, %s82
    %p86 = pneg %p80
    %p87 = scmp.eq.s32.totalorder %s19, 1
    %p88 = por %p86, %p87
    %p89 = scmp.ne.s32.totalorder %s81, %s84
    %p90 = scmp.eq.s32.totalorder %s19, 0
    %p91 = por %p89, %p90
    %p92 = scmp.ne.s32.totalorder %s81, %s84
    %p93 = scmp.eq.s32.totalorder %s24, 1
    %p94 = por %p92, %p93
    %p95 = scmp.ne.s32.totalorder %s84, %s85
    %p96 = scmp.eq.s32.totalorder %s24, 0
    %p97 = por %p95, %p96
    %p98 = scmp.ne.s32.totalorder %s84, %s85
    %p99 = scmp.eq.s32.totalorder %s25, 1
    %p100 = por %p98, %p99
    %p102 = scmp.ne.s32.totalorder %s85, %s101
    %p103 = scmp.eq.s32.totalorder %s25, 0
    %p104 = por %p102, %p103
    %s106 = sadd.s32 %s105, 1
    %p109 = scmp.eq.s32.totalorder %s19, 1
    %p110 = scmp.ne.s32.totalorder %s105, %s107
    %p111 = scmp.eq.s32.totalorder %s19, 0
    %p112 = por %p110, %p111
    %p113 = scmp.ne.s32.totalorder %s105, %s107
    %p114 = scmp.eq.s32.totalorder %s24, 1
    %p115 = por %p113, %p114
    %p116 = scmp.ne.s32.totalorder %s107, %s108
    %p117 = scmp.eq.s32.totalorder %s24, 0
    %p118 = por %p116, %p117
    %p119 = scmp.ne.s32.totalorder %s107, %s108
    %p120 = scmp.eq.s32.totalorder %s25, 1
    %p121 = por %p119, %p120
    %p123 = scmp.ne.s32.totalorder %s108, %s122
    %p124 = scmp.eq.s32.totalorder %s25, 0
    %p125 = por %p123, %p124
    %s127 = sadd.s32 %s126, 1
    %p130 = scmp.eq.s32.totalorder %s19, 1
    %p131 = scmp.ne.s32.totalorder %s126, %s128
    %p132 = scmp.eq.s32.totalorder %s19, 0
    %p133 = por %p131, %p132
    %p134 = scmp.ne.s32.totalorder %s126, %s128
    %p135 = scmp.eq.s32.totalorder %s24, 1
    %p136 = por %p134, %p135
    %p137 = scmp.ne.s32.totalorder %s128, %s129
    %p138 = scmp.eq.s32.totalorder %s24, 0
    %p139 = por %p137, %p138
    %p140 = scmp.ne.s32.totalorder %s128, %s129
    %p141 = scmp.eq.s32.totalorder %s25, 1
    %p142 = por %p140, %p141
    %p144 = scmp.ne.s32.totalorder %s129, %s143
    %p145 = scmp.eq.s32.totalorder %s25, 0
    %p146 = por %p144, %p145
    %s148 = sadd.s32 %s147, 1
    %p151 = scmp.eq.s32.totalorder %s19, 1
    %p152 = scmp.ne.s32.totalorder %s147, %s149
    %p153 = scmp.eq.s32.totalorder %s19, 0
    %p154 = por %p152, %p153
    %p155 = scmp.ne.s32.totalorder %s147, %s149
    %p156 = scmp.eq.s32.totalorder %s24, 1
    %p157 = por %p155, %p156
    %p158 = scmp.ne.s32.totalorder %s149, %s150
    %p159 = scmp.eq.s32.totalorder %s24, 0
    %p160 = por %p158, %p159
    %p161 = scmp.ne.s32.totalorder %s149, %s150
    %p162 = scmp.eq.s32.totalorder %s25, 1
    %p163 = por %p161, %p162
    %p165 = scmp.ne.s32.totalorder %s150, %s164
    %p166 = scmp.eq.s32.totalorder %s25, 0
    %p167 = por %p165, %p166
    %s169 = sadd.s32 %s168, 1
    %p172 = scmp.eq.s32.totalorder %s19, 1
    %p173 = scmp.ne.s32.totalorder %s168, %s170
    %p174 = scmp.eq.s32.totalorder %s19, 0
    %p175 = por %p173, %p174
    %p176 = scmp.ne.s32.totalorder %s168, %s170
    %p177 = scmp.eq.s32.totalorder %s24, 1
    %p178 = por %p176, %p177
    %p179 = scmp.ne.s32.totalorder %s170, %s171
    %p180 = scmp.eq.s32.totalorder %s24, 0
    %p181 = por %p179, %p180
    %p182 = scmp.ne.s32.totalorder %s170, %s171
    %p183 = scmp.eq.s32.totalorder %s25, 1
    %p184 = por %p182, %p183
    %p186 = scmp.ne.s32.totalorder %s171, %s185
    %p187 = scmp.eq.s32.totalorder %s25, 0
    %p188 = por %p186, %p187
    %s190 = sadd.s32 %s189, 1
    %p193 = scmp.eq.s32.totalorder %s19, 1
    %p194 = scmp.ne.s32.totalorder %s189, %s191
    %p195 = scmp.eq.s32.totalorder %s19, 0
    %p196 = por %p194, %p195
    %p197 = scmp.ne.s32.totalorder %s189, %s191
    %p198 = scmp.eq.s32.totalorder %s24, 1
    %p199 = por %p197, %p198
    %p200 = scmp.ne.s32.totalorder %s191, %s192
    %p201 = scmp.eq.s32.totalorder %s24, 0
    %p202 = por %p200, %p201
    %p203 = scmp.ne.s32.totalorder %s191, %s192
    %p204 = scmp.eq.s32.totalorder %s25, 1
    %p205 = por %p203, %p204
    %p207 = scmp.ne.s32.totalorder %s192, %s206
    %p208 = scmp.eq.s32.totalorder %s25, 0
    %p209 = por %p207, %p208
    %s211 = sadd.s32 %s210, 1
    %p214 = scmp.eq.s32.totalorder %s19, 1
    %p215 = scmp.ne.s32.totalorder %s210, %s212
    %p216 = scmp.eq.s32.totalorder %s19, 0
    %p217 = por %p215, %p216
    %p218 = scmp.ne.s32.totalorder %s210, %s212
    %p219 = scmp.eq.s32.totalorder %s24, 1
    %p220 = por %p218, %p219
    %p221 = scmp.ne.s32.totalorder %s212, %s213
    %p222 = scmp.eq.s32.totalorder %s24, 0
    %p223 = por %p221, %p222
    %p224 = scmp.ne.s32.totalorder %s212, %s213
    %p225 = scmp.eq.s32.totalorder %s25, 1
    %p226 = por %p224, %p225
    %p228 = scmp.ne.s32.totalorder %s213, %s227
    %p229 = scmp.eq.s32.totalorder %s25, 0
    %p230 = por %p228, %p229
    %s232 = sadd.s32 %s231, 1
    %p235 = scmp.eq.s32.totalorder %s19, 1
    %p236 = scmp.ne.s32.totalorder %s231, %s233
    %p237 = scmp.eq.s32.totalorder %s19, 0
    %p238 = por %p236, %p237
    %p239 = scmp.ne.s32.totalorder %s231, %s233
    %p240 = scmp.eq.s32.totalorder %s24, 1
    %p241 = por %p239, %p240
    %p242 = scmp.ne.s32.totalorder %s233, %s234
    %p243 = scmp.eq.s32.totalorder %s24, 0
    %p244 = por %p242, %p243
    %p245 = scmp.ne.s32.totalorder %s233, %s234
    %p246 = scmp.eq.s32.totalorder %s25, 1
    %p247 = por %p245, %p246
    %p249 = scmp.ne.s32.totalorder %s234, %s248
    %p250 = scmp.eq.s32.totalorder %s25, 0
    %p251 = por %p249, %p250
    %s253 = sadd.s32 %s252, 1
    %p256 = scmp.eq.s32.totalorder %s19, 1
    %p257 = scmp.ne.s32.totalorder %s252, %s254
    %p258 = scmp.eq.s32.totalorder %s19, 0
    %p259 = por %p257, %p258
    %p260 = scmp.ne.s32.totalorder %s252, %s254
    %p261 = scmp.eq.s32.totalorder %s24, 1
    %p262 = por %p260, %p261
    %p263 = scmp.ne.s32.totalorder %s254, %s255
    %p264 = scmp.eq.s32.totalorder %s24, 0
    %p265 = por %p263, %p264
    %p266 = scmp.ne.s32.totalorder %s254, %s255
    %p267 = scmp.eq.s32.totalorder %s25, 1
    %p268 = por %p266, %p267
    %p270 = scmp.ne.s32.totalorder %s255, %s269
    %p271 = scmp.eq.s32.totalorder %s25, 0
    %p272 = por %p270, %p271
    %s274 = sadd.s32 %s273, 1
    %p277 = scmp.eq.s32.totalorder %s19, 1
    %p278 = scmp.ne.s32.totalorder %s273, %s275
    %p279 = scmp.eq.s32.totalorder %s19, 0
    %p280 = por %p278, %p279
    %p281 = scmp.ne.s32.totalorder %s273, %s275
    %p282 = scmp.eq.s32.totalorder %s24, 1
    %p283 = por %p281, %p282
    %p284 = scmp.ne.s32.totalorder %s275, %s276
    %p285 = scmp.eq.s32.totalorder %s24, 0
    %p286 = por %p284, %p285
    %p287 = scmp.ne.s32.totalorder %s275, %s276
    %p288 = scmp.eq.s32.totalorder %s25, 1
    %p289 = por %p287, %p288
    %p291 = scmp.ne.s32.totalorder %s276, %s290
    %p292 = scmp.eq.s32.totalorder %s25, 0
    %p293 = por %p291, %p292
    %s295 = sadd.s32 %s294, 1
    %p298 = scmp.eq.s32.totalorder %s19, 1
    %p299 = scmp.ne.s32.totalorder %s294, %s296
    %p300 = scmp.eq.s32.totalorder %s19, 0
    %p301 = por %p299, %p300
    %p302 = scmp.ne.s32.totalorder %s294, %s296
    %p303 = scmp.eq.s32.totalorder %s24, 1
    %p304 = por %p302, %p303
    %p305 = scmp.ne.s32.totalorder %s296, %s297
    %p306 = scmp.eq.s32.totalorder %s24, 0
    %p307 = por %p305, %p306
    %p308 = scmp.ne.s32.totalorder %s296, %s297
    %p309 = scmp.eq.s32.totalorder %s25, 1
    %p310 = por %p308, %p309
    %p312 = scmp.ne.s32.totalorder %s297, %s311
    %p313 = scmp.eq.s32.totalorder %s25, 0
    %p314 = por %p312, %p313
    %s315 = ssub.s32 %s19, %s26
    %p316 = scmp.eq.s32.totalorder %s315, 0
    %s318 = sadd.s32 %s317, 1
    %s319 = scalar_select %p316, %s317, %s318
    %p322 = pneg %p316
    %p323 = scmp.eq.s32.totalorder %s19, 1
    %p324 = por %p322, %p323
    %p325 = scmp.ne.s32.totalorder %s317, %s320
    %p326 = scmp.eq.s32.totalorder %s19, 0
    %p327 = por %p325, %p326
    %p328 = scmp.ne.s32.totalorder %s317, %s320
    %p329 = scmp.eq.s32.totalorder %s24, 1
    %p330 = por %p328, %p329
    %p331 = scmp.ne.s32.totalorder %s320, %s321
    %p332 = scmp.eq.s32.totalorder %s24, 0
    %p333 = por %p331, %p332
    %p334 = scmp.ne.s32.totalorder %s320, %s321
    %p335 = scmp.eq.s32.totalorder %s25, 1
    %p336 = por %p334, %p335
    %p338 = scmp.ne.s32.totalorder %s321, %s337
    %p339 = scmp.eq.s32.totalorder %s25, 0
    %p340 = por %p338, %p339
    %p341 = scmp.le.s32.totalorder 1, %s19
    %p342 = scmp.lt.s32.totalorder %s19, 3
    %p343 = pnand %p341, %p342
    %p344 = pneg %p343
    // Predicated region
    $region9: #{_lambda_.1} parent=5 // pred_check
      _
    $region10: #{_lambda_.1} parent=5 // pred_check_branch
      %346 = sbr.rel (%p343) target = $region12
    $region11: #{_lambda_.1} parent=5 // pred_region
      %s347 = ssub.s32 %s19, 1
      // Predicated region
      $region13: #{_lambda_.1} parent=11 // pred_check
        %p348 = pneg %p118
      $region14: #{_lambda_.1} parent=11 // pred_check_branch
        %350 = sbr.rel (%p348) target = $region16
      $region15: #{_lambda_.1} parent=11 // pred_region
        _
      $region16: #{_lambda_.1} parent=11 // pred_fallthru
        _
      // Predicated region
      $region17: #{_lambda_.1} parent=11 // pred_check
        %p351 = pneg %p139
      $region18: #{_lambda_.1} parent=11 // pred_check_branch
        %353 = sbr.rel (%p351) target = $region20
      $region19: #{_lambda_.1} parent=11 // pred_region
        _
      $region20: #{_lambda_.1} parent=11 // pred_fallthru
        _
      // Predicated region
      $region21: #{_lambda_.1} parent=11 // pred_check
        %p354 = pneg %p160
      $region22: #{_lambda_.1} parent=11 // pred_check_branch
        %356 = sbr.rel (%p354) target = $region24
      $region23: #{_lambda_.1} parent=11 // pred_region
        _
      $region24: #{_lambda_.1} parent=11 // pred_fallthru
        _
      // Predicated region
      $region25: #{_lambda_.1} parent=11 // pred_check
        %p357 = pneg %p181
      $region26: #{_lambda_.1} parent=11 // pred_check_branch
        %359 = sbr.rel (%p357) target = $region28
      $region27: #{_lambda_.1} parent=11 // pred_region
        _
      $region28: #{_lambda_.1} parent=11 // pred_fallthru
        _
      // Predicated region
      $region29: #{_lambda_.1} parent=11 // pred_check
        %p360 = pneg %p202
      $region30: #{_lambda_.1} parent=11 // pred_check_branch
        %362 = sbr.rel (%p360) target = $region32
      $region31: #{_lambda_.1} parent=11 // pred_region
        _
      $region32: #{_lambda_.1} parent=11 // pred_fallthru
        _
      // Predicated region
      $region33: #{_lambda_.1} parent=11 // pred_check
        %p363 = pneg %p223
      $region34: #{_lambda_.1} parent=11 // pred_check_branch
        %365 = sbr.rel (%p363) target = $region36
      $region35: #{_lambda_.1} parent=11 // pred_region
        _
      $region36: #{_lambda_.1} parent=11 // pred_fallthru
        _
      // Predicated region
      $region37: #{_lambda_.1} parent=11 // pred_check
        %p366 = pneg %p244
      $region38: #{_lambda_.1} parent=11 // pred_check_branch
        %368 = sbr.rel (%p366) target = $region40
      $region39: #{_lambda_.1} parent=11 // pred_region
        _
      $region40: #{_lambda_.1} parent=11 // pred_fallthru
        _
      // Predicated region
      $region41: #{_lambda_.1} parent=11 // pred_check
        %p369 = pneg %p265
      $region42: #{_lambda_.1} parent=11 // pred_check_branch
        %371 = sbr.rel (%p369) target = $region44
      $region43: #{_lambda_.1} parent=11 // pred_region
        _
      $region44: #{_lambda_.1} parent=11 // pred_fallthru
        _
      // Predicated region
      $region45: #{_lambda_.1} parent=11 // pred_check
        %p372 = pneg %p286
      $region46: #{_lambda_.1} parent=11 // pred_check_branch
        %374 = sbr.rel (%p372) target = $region48
      $region47: #{_lambda_.1} parent=11 // pred_region
        _
      $region48: #{_lambda_.1} parent=11 // pred_fallthru
        _
      // Predicated region
      $region49: #{_lambda_.1} parent=11 // pred_check
        %p375 = pneg %p307
      $region50: #{_lambda_.1} parent=11 // pred_check_branch
        %377 = sbr.rel (%p375) target = $region52
      $region51: #{_lambda_.1} parent=11 // pred_region
        _
      $region52: #{_lambda_.1} parent=11 // pred_fallthru
        _
    $region12: #{_lambda_.1} parent=5 // pred_fallthru
      _
    %p378 = scmp.lt.s32.totalorder %s19, 2
    // Predicated region
    $region53: #{_lambda_.1} parent=5 // pred_check
      %p379 = pneg %p378
    $region54: #{_lambda_.1} parent=5 // pred_check_branch
      %381 = sbr.rel (%p379) target = $region56
    $region55: #{_lambda_.1} parent=5 // pred_region
      // Predicated region
      $region57: #{_lambda_.1} parent=55 // pred_check
        %p382 = pneg %p39
      $region58: #{_lambda_.1} parent=55 // pred_check_branch
        %384 = sbr.rel (%p382) target = $region60
      $region59: #{_lambda_.1} parent=55 // pred_region
        %p385 = scmp.lt.s32.totalorder %s19, 1
        %s386 = scalar_select %p385, %s19, 1
        %s387 = smul.addr %s386, 8
        %s388 = scalar_lea.vmem %s0, %s387
      $region60: #{_lambda_.1} parent=55 // pred_fallthru
        _
      // Predicated region
      $region61: #{_lambda_.1} parent=55 // pred_check
        %p389 = pneg %p65
      $region62: #{_lambda_.1} parent=55 // pred_check_branch
        %391 = sbr.rel (%p389) target = $region64
      $region63: #{_lambda_.1} parent=55 // pred_region
        %p392 = scmp.lt.s32.totalorder %s19, 1
        %s393 = scalar_select %p392, %s19, 1
        %s394 = scalar_lea.vmem %s1, %s393
      $region64: #{_lambda_.1} parent=55 // pred_fallthru
        _
      // Predicated region
      $region65: #{_lambda_.1} parent=55 // pred_check
        %p395 = pneg %p91
      $region66: #{_lambda_.1} parent=55 // pred_check_branch
        %397 = sbr.rel (%p395) target = $region68
      $region67: #{_lambda_.1} parent=55 // pred_region
        %p398 = scmp.lt.s32.totalorder %s19, 1
        %s399 = scalar_select %p398, %s19, 1
        %s400 = scalar_lea.vmem %s2, %s399
      $region68: #{_lambda_.1} parent=55 // pred_fallthru
        _
    $region56: #{_lambda_.1} parent=5 // pred_fallthru
      _
    %p401 = scmp.le.s32.totalorder 1, %s19
    %p402 = scmp.lt.s32.totalorder %s19, 3
    %p403 = pnand %p401, %p402
    %p404 = pneg %p403
    // Predicated region
    $region69: #{_lambda_.1} parent=5 // pred_check
      _
    $region70: #{_lambda_.1} parent=5 // pred_check_branch
      %406 = sbr.rel (%p403) target = $region72
    $region71: #{_lambda_.1} parent=5 // pred_region
      %s407 = ssub.s32 %s19, 1
      %p408 = scmp.lt.s32.totalorder %s24, 1
      %s409 = scalar_select %p408, %s24, 1
      %s410 = smul.addr %s409, 8
      %s411 = scalar_lea.vmem %s0, %s410
      %p412 = pneg %p45
      %p413 = pneg %p42
      %p414 = scmp.lt.s32.totalorder %s24, 1
      %s415 = scalar_select %p414, %s24, 1
      %s416 = scalar_lea.vmem %s1, %s415
      %p417 = pneg %p71
      %p418 = pneg %p68
      %p419 = scmp.lt.s32.totalorder %s24, 1
      %s420 = scalar_select %p419, %s24, 1
      %s421 = scalar_lea.vmem %s2, %s420
      %p422 = pneg %p97
      %p423 = pneg %p94
      %p424 = pneg %p118
      %p425 = pneg %p115
      %p426 = pneg %p139
      %p427 = pneg %p136
      %p428 = pneg %p160
      %p429 = pneg %p157
      %p430 = pneg %p181
      %p431 = pneg %p178
      %p432 = pneg %p202
      %p433 = pneg %p199
      %p434 = pneg %p223
      %p435 = pneg %p220
      %p436 = pneg %p244
      %p437 = pneg %p241
      %p438 = pneg %p265
      %p439 = pneg %p262
      %p440 = pneg %p286
      %p441 = pneg %p283
      %p442 = pneg %p307
      %p443 = pneg %p304
      %p444 = pneg %p333
      %p445 = pneg %p330
      %p446 = scmp.lt.s32.totalorder %s24, 1
      %s447 = scalar_select %p446, %s24, 1
      %s448 = smul.addr %s447, 4
      %s449 = smul.addr %s448, 8
      %s450 = scalar_lea.vmem %s13, %s449
      %p451 = scmp.lt.s32.totalorder %s24, 1
      %s452 = scalar_select %p451, %s24, 1
      %s453 = smul.addr %s452, 8
      %s454 = scalar_lea.vmem %s0, %s453
      %p455 = scmp.lt.s32.totalorder %s24, 1
      %s456 = scalar_select %p455, %s24, 1
      %s457 = scalar_lea.vmem %s1, %s456
      %p458 = scmp.lt.s32.totalorder %s24, 1
      %s459 = scalar_select %p458, %s24, 1
      %s460 = scalar_lea.vmem %s2, %s459
      %p461 = scmp.lt.s32.totalorder %s24, 1
      %s462 = scalar_select %p461, %s24, 1
      %s463 = smul.addr %s462, 4
      %s464 = smul.addr %s463, 8
      %s465 = scalar_lea.vmem %s13, %s464
      %v466 = vld [vmem:[%s454] sm:$0xff]
      %v467 = vld [vmem:[%s3] sm:$0xff]
      %v468 = vld [vmem:[%s3 + $0x8] sm:$0xff]
      %v469 = vld [vmem:[%s3 + $0x10] sm:$0xff]
      %v470 = vld [vmem:[%s3 + $0x18] sm:$0xff]
      %v471 = vld [vmem:[%s3 + $0x20] sm:$0xff]
      %v472 = vld [vmem:[%s3 + $0x28] sm:$0xff]
      %v473 = vld [vmem:[%s3 + $0x30] sm:$0xff]
      %v474 = vld [vmem:[%s3 + $0x38] sm:$0xff]
      %v475 = vld [vmem:[%s3 + $0x40] sm:$0xff]
      %v476 = vld [vmem:[%s3 + $0x48] sm:$0xff]
      %v477 = vld [vmem:[%s3 + $0x50] sm:$0xff]
      %v478 = vld [vmem:[%s3 + $0x58] sm:$0xff]
      %v479 = vld [vmem:[%s3 + $0x60] sm:$0xff]
      %v480 = vld [vmem:[%s3 + $0x68] sm:$0xff]
      %v481 = vld [vmem:[%s3 + $0x70] sm:$0xff]
      %v482 = vld [vmem:[%s3 + $0x78] sm:$0xff]
      %v483 = vld [vmem:[%s3 + $0x80] sm:$0xff]
      %v484 = vld [vmem:[%s3 + $0x88] sm:$0xff]
      %v485 = vld [vmem:[%s3 + $0x90] sm:$0xff]
      %v486 = vld [vmem:[%s3 + $0x98] sm:$0xff]
      %v487 = vld [vmem:[%s3 + $0xa0] sm:$0xff]
      %v488 = vld [vmem:[%s3 + $0xa8] sm:$0xff]
      %v489 = vld [vmem:[%s3 + $0xb0] sm:$0xff]
      %v490 = vld [vmem:[%s3 + $0xb8] sm:$0xff]
      %v491 = vld [vmem:[%s5] sm:$0x7]
      %v493 = vlaneseq
      %v494 = vshrl.u32 %v493, 7
      %v495 = vsub.s32 0, %v494
      %v496 = vrot.slane %v491, %v495
      %v497 = vlaneseq
      %v498 = vshrl.u32 %v497, 7
      %v499 = vsub.s32 1, %v498
      %v500 = vrot.slane %v491, %v499
      %v501 = vlaneseq
      %v502 = vshrl.u32 %v501, 7
      %v503 = vsub.s32 2, %v502
      %v504 = vrot.slane %v491, %v503
      %vm508 = vcmask 523264
      %v510 = vsel %vm508, %v466, 0
      %512 = vmatprep.subr.mxu0 %v468
      %513 = vmatpush1.msra.mxu0 %v467
      %514 = vmatprep.subr.mxu0 %v471
      %515 = vmatpush1.msra.mxu0 %v470
      %516 = vmatprep.subr.mxu0 %v474
      %517 = vmatpush1.msra.mxu0 %v473
      %518 = vmatprep.subr.mxu0 %v477
      %519 = vmatpush1.msra.mxu0 %v476
      %520 = vmatprep.subr.mxu0 %v480
      %521 = vmatpush1.msra.mxu0 %v479
      %522 = vmatprep.subr.mxu0 %v483
      %523 = vmatpush1.msra.mxu0 %v482
      %524 = vmatprep.subr.mxu0 %v486
      %525 = vmatpush1.msra.mxu0 %v485
      %526 = vmatprep.subr.mxu0 %v489
      %527 = vmatpush1.msra.mxu0 %v488
      %528 = vmatprep.subr.mxu0 0.0
      %529 = vmatpush1.msra.mxu0 0.0
      %530 = vmatprep.subr.mxu0 0.0
      %531 = vmatpush1.msra.mxu0 0.0
      %532 = vmatprep.subr.mxu0 0.0
      %533 = vmatpush1.msra.mxu0 0.0
      %534 = vmatprep.subr.mxu0 0.0
      %535 = vmatpush1.msra.mxu0 0.0
      %536 = vmatprep.subr.mxu0 0.0
      %537 = vmatpush1.msra.mxu0 0.0
      %538 = vmatprep.subr.mxu0 0.0
      %539 = vmatpush1.msra.mxu0 0.0
      %540 = vmatprep.subr.mxu0 0.0
      %541 = vmatpush1.msra.mxu0 0.0
      %542 = vmatprep.subr.mxu0 0.0
      %543 = vmatpush1.msra.mxu0 0.0
      %544 = vmatprep.subr.mxu0 0.0
      %545 = vmatpush1.msra.mxu0 0.0
      %546 = vmatprep.subr.mxu0 0.0
      %547 = vmatpush1.msra.mxu0 0.0
      %548 = vmatprep.subr.mxu0 0.0
      %549 = vmatpush1.msra.mxu0 0.0
      %550 = vmatprep.subr.mxu0 0.0
      %551 = vmatpush1.msra.mxu0 0.0
      %552 = vmatprep.subr.mxu0 0.0
      %553 = vmatpush1.msra.mxu0 0.0
      %554 = vmatprep.subr.mxu0 0.0
      %555 = vmatpush1.msra.mxu0 0.0
      %556 = vmatprep.subr.mxu0 0.0
      %557 = vmatpush1.msra.mxu0 0.0
      %558 = vmatprep.subr.mxu0 0.0
      %559 = vmatpush1.msra.mxu0 0.0
      %560 = vmatprep.subr.mxu0 0.0
      %561 = vmatpush1.msra.mxu0 0.0
      %562 = vmatprep.subr.mxu0 0.0
      %563 = vmatpush1.msra.mxu0 0.0
      %564 = vmatprep.subr.mxu0 0.0
      %565 = vmatpush1.msra.mxu0 0.0
      %566 = vmatprep.subr.mxu0 0.0
      %567 = vmatpush1.msra.mxu0 0.0
      %568 = vmatprep.subr.mxu0 0.0
      %569 = vmatpush1.msra.mxu0 0.0
      %570 = vmatprep.subr.mxu0 0.0
      %571 = vmatpush1.msra.mxu0 0.0
      %572 = vmatprep.subr.mxu0 0.0
      %573 = vmatpush1.msra.mxu0 0.0
      %574 = vmatprep.subr.mxu0 0.0
      %575 = vmatpush1.msra.mxu0 0.0
      %576 = vmatprep.mubr.f32.mxu0 0.0
      %577 = vmatmul.mubr.f32.gmra.mrb[0].mxu0 %v510
      %v578 = vpop.f32.mrb[0].mxu0
      %v579 = vadd.f32 %v496, %v578
      %v580 = vpop.f32.mrb[0].mxu0
      %v581 = vadd.f32 %v500, %v580
      %582 = vdwg.mxu0
      %583 = vmatprep.subr.mxu0 0.0
      %584 = vmatpush1.msra.mxu0 %v469
      %585 = vmatprep.subr.mxu0 0.0
      %586 = vmatpush1.msra.mxu0 %v472
      %587 = vmatprep.subr.mxu0 0.0
      %588 = vmatpush1.msra.mxu0 %v475
      %589 = vmatprep.subr.mxu0 0.0
      %590 = vmatpush1.msra.mxu0 %v478
      %591 = vmatprep.subr.mxu0 0.0
      %592 = vmatpush1.msra.mxu0 %v481
      %593 = vmatprep.subr.mxu0 0.0
      %594 = vmatpush1.msra.mxu0 %v484
      %595 = vmatprep.subr.mxu0 0.0
      %596 = vmatpush1.msra.mxu0 %v487
      %597 = vmatprep.subr.mxu0 0.0
      %598 = vmatpush1.msra.mxu0 %v490
      %599 = vmatprep.subr.mxu0 0.0
      %600 = vmatpush1.msra.mxu0 0.0
      %601 = vmatprep.subr.mxu0 0.0
      %602 = vmatpush1.msra.mxu0 0.0
      %603 = vmatprep.subr.mxu0 0.0
      %604 = vmatpush1.msra.mxu0 0.0
      %605 = vmatprep.subr.mxu0 0.0
      %606 = vmatpush1.msra.mxu0 0.0
      %607 = vmatprep.subr.mxu0 0.0
      %608 = vmatpush1.msra.mxu0 0.0
      %609 = vmatprep.subr.mxu0 0.0
      %610 = vmatpush1.msra.mxu0 0.0
      %611 = vmatprep.subr.mxu0 0.0
      %612 = vmatpush1.msra.mxu0 0.0
      %613 = vmatprep.subr.mxu0 0.0
      %614 = vmatpush1.msra.mxu0 0.0
      %615 = vmatprep.subr.mxu0 0.0
      %616 = vmatpush1.msra.mxu0 0.0
      %617 = vmatprep.subr.mxu0 0.0
      %618 = vmatpush1.msra.mxu0 0.0
      %619 = vmatprep.subr.mxu0 0.0
      %620 = vmatpush1.msra.mxu0 0.0
      %621 = vmatprep.subr.mxu0 0.0
      %622 = vmatpush1.msra.mxu0 0.0
      %623 = vmatprep.subr.mxu0 0.0
      %624 = vmatpush1.msra.mxu0 0.0
      %625 = vmatprep.subr.mxu0 0.0
      %626 = vmatpush1.msra.mxu0 0.0
      %627 = vmatprep.subr.mxu0 0.0
      %628 = vmatpush1.msra.mxu0 0.0
      %629 = vmatprep.subr.mxu0 0.0
      %630 = vmatpush1.msra.mxu0 0.0
      %631 = vmatprep.subr.mxu0 0.0
      %632 = vmatpush1.msra.mxu0 0.0
      %633 = vmatprep.subr.mxu0 0.0
      %634 = vmatpush1.msra.mxu0 0.0
      %635 = vmatprep.subr.mxu0 0.0
      %636 = vmatpush1.msra.mxu0 0.0
      %637 = vmatprep.subr.mxu0 0.0
      %638 = vmatpush1.msra.mxu0 0.0
      %639 = vmatprep.subr.mxu0 0.0
      %640 = vmatpush1.msra.mxu0 0.0
      %641 = vmatprep.subr.mxu0 0.0
      %642 = vmatpush1.msra.mxu0 0.0
      %643 = vmatprep.subr.mxu0 0.0
      %644 = vmatpush1.msra.mxu0 0.0
      %645 = vmatprep.subr.mxu0 0.0
      %646 = vmatpush1.msra.mxu0 0.0
      %647 = vmatprep.mubr.f32.mxu0 0.0
      %648 = vmatmul.mubr.f32.gmra.mrb[0].mxu0 %v510
      %v649 = vpop.f32.mrb[0].mxu0
      %v650 = vadd.f32 %v504, %v649
      %v651 = vpop.f32.mrb[0].mxu0
      %652 = vdwg.mxu0
      %v653 = vld [vmem:[%s4] sm:$0xff]
      %v654 = vld [vmem:[%s4 + $0x8] sm:$0xff]
      %v655 = vld [vmem:[%s4 + $0x10] sm:$0xff]
      %v656 = vld [vmem:[%s4 + $0x18] sm:$0xff]
      %v657 = vld [vmem:[%s4 + $0x20] sm:$0xff]
      %v658 = vld [vmem:[%s4 + $0x28] sm:$0xff]
      %v659 = vld [vmem:[%s4 + $0x30] sm:$0xff]
      %v660 = vld [vmem:[%s4 + $0x38] sm:$0xff]
      %v661 = vld [vmem:[%s4 + $0x40] sm:$0xff]
      %v662 = vld [vmem:[%s4 + $0x48] sm:$0xff]
      %v663 = vld [vmem:[%s4 + $0x50] sm:$0xff]
      %v664 = vld [vmem:[%s4 + $0x58] sm:$0xff]
      %v665 = vld [vmem:[%s4 + $0x60] sm:$0xff]
      %v666 = vld [vmem:[%s4 + $0x68] sm:$0xff]
      %v667 = vld [vmem:[%s4 + $0x70] sm:$0xff]
      %v668 = vld [vmem:[%s4 + $0x78] sm:$0xff]
      %v669 = vld [vmem:[%s4 + $0x80] sm:$0xff]
      %v670 = vld [vmem:[%s4 + $0x88] sm:$0xff]
      %v671 = vld [vmem:[%s4 + $0x90] sm:$0xff]
      %v672 = vld [vmem:[%s4 + $0x98] sm:$0xff]
      %v673 = vld [vmem:[%s4 + $0xa0] sm:$0xff]
      %v674 = vld [vmem:[%s4 + $0xa8] sm:$0xff]
      %v675 = vld [vmem:[%s4 + $0xb0] sm:$0xff]
      %v676 = vld [vmem:[%s4 + $0xb8] sm:$0xff]
      %v677 = vld [vmem:[%s6] sm:$0x1]
      %v679 = vsel %vm508, 0.0, 0
      %681 = vmatprep.subr.mxu0 %v654
      %682 = vmatpush1.msra.mxu0 %v653
      %683 = vmatprep.subr.mxu0 %v657
      %684 = vmatpush1.msra.mxu0 %v656
      %685 = vmatprep.subr.mxu0 %v660
      %686 = vmatpush1.msra.mxu0 %v659
      %687 = vmatprep.subr.mxu0 %v663
      %688 = vmatpush1.msra.mxu0 %v662
      %689 = vmatprep.subr.mxu0 %v666
      %690 = vmatpush1.msra.mxu0 %v665
      %691 = vmatprep.subr.mxu0 %v669
      %692 = vmatpush1.msra.mxu0 %v668
      %693 = vmatprep.subr.mxu0 %v672
      %694 = vmatpush1.msra.mxu0 %v671
      %695 = vmatprep.subr.mxu0 %v675
      %696 = vmatpush1.msra.mxu0 %v674
      %697 = vmatprep.subr.mxu0 0.0
      %698 = vmatpush1.msra.mxu0 0.0
      %699 = vmatprep.subr.mxu0 0.0
      %700 = vmatpush1.msra.mxu0 0.0
      %701 = vmatprep.subr.mxu0 0.0
      %702 = vmatpush1.msra.mxu0 0.0
      %703 = vmatprep.subr.mxu0 0.0
      %704 = vmatpush1.msra.mxu0 0.0
      %705 = vmatprep.subr.mxu0 0.0
      %706 = vmatpush1.msra.mxu0 0.0
      %707 = vmatprep.subr.mxu0 0.0
      %708 = vmatpush1.msra.mxu0 0.0
      %709 = vmatprep.subr.mxu0 0.0
      %710 = vmatpush1.msra.mxu0 0.0
      %711 = vmatprep.subr.mxu0 0.0
      %712 = vmatpush1.msra.mxu0 0.0
      %713 = vmatprep.subr.mxu0 0.0
      %714 = vmatpush1.msra.mxu0 0.0
      %715 = vmatprep.subr.mxu0 0.0
      %716 = vmatpush1.msra.mxu0 0.0
      %717 = vmatprep.subr.mxu0 0.0
      %718 = vmatpush1.msra.mxu0 0.0
      %719 = vmatprep.subr.mxu0 0.0
      %720 = vmatpush1.msra.mxu0 0.0
      %721 = vmatprep.subr.mxu0 0.0
      %722 = vmatpush1.msra.mxu0 0.0
      %723 = vmatprep.subr.mxu0 0.0
      %724 = vmatpush1.msra.mxu0 0.0
      %725 = vmatprep.subr.mxu0 0.0
      %726 = vmatpush1.msra.mxu0 0.0
      %727 = vmatprep.subr.mxu0 0.0
      %728 = vmatpush1.msra.mxu0 0.0
      %729 = vmatprep.subr.mxu0 0.0
      %730 = vmatpush1.msra.mxu0 0.0
      %731 = vmatprep.subr.mxu0 0.0
      %732 = vmatpush1.msra.mxu0 0.0
      %733 = vmatprep.subr.mxu0 0.0
      %734 = vmatpush1.msra.mxu0 0.0
      %735 = vmatprep.subr.mxu0 0.0
      %736 = vmatpush1.msra.mxu0 0.0
      %737 = vmatprep.subr.mxu0 0.0
      %738 = vmatpush1.msra.mxu0 0.0
      %739 = vmatprep.subr.mxu0 0.0
      %740 = vmatpush1.msra.mxu0 0.0
      %741 = vmatprep.subr.mxu0 0.0
      %742 = vmatpush1.msra.mxu0 0.0
      %743 = vmatprep.subr.mxu0 0.0
      %744 = vmatpush1.msra.mxu0 0.0
      %745 = vmatprep.mubr.f32.mxu0 0.0
      %746 = vmatmul.mubr.f32.gmra.mrb[0].mxu0 %v679
      %v747 = vpop.f32.mrb[0].mxu0
      %v748 = vadd.f32 0.0, %v747
      %v749 = vpop.f32.mrb[0].mxu0
      %v750 = vadd.f32 0.0, %v749
      %751 = vdwg.mxu0
      %752 = vmatprep.subr.mxu0 0.0
      %753 = vmatpush1.msra.mxu0 %v655
      %754 = vmatprep.subr.mxu0 0.0
      %755 = vmatpush1.msra.mxu0 %v658
      %756 = vmatprep.subr.mxu0 0.0
      %757 = vmatpush1.msra.mxu0 %v661
      %758 = vmatprep.subr.mxu0 0.0
      %759 = vmatpush1.msra.mxu0 %v664
      %760 = vmatprep.subr.mxu0 0.0
      %761 = vmatpush1.msra.mxu0 %v667
      %762 = vmatprep.subr.mxu0 0.0
      %763 = vmatpush1.msra.mxu0 %v670
      %764 = vmatprep.subr.mxu0 0.0
      %765 = vmatpush1.msra.mxu0 %v673
      %766 = vmatprep.subr.mxu0 0.0
      %767 = vmatpush1.msra.mxu0 %v676
      %768 = vmatprep.subr.mxu0 0.0
      %769 = vmatpush1.msra.mxu0 0.0
      %770 = vmatprep.subr.mxu0 0.0
      %771 = vmatpush1.msra.mxu0 0.0
      %772 = vmatprep.subr.mxu0 0.0
      %773 = vmatpush1.msra.mxu0 0.0
      %774 = vmatprep.subr.mxu0 0.0
      %775 = vmatpush1.msra.mxu0 0.0
      %776 = vmatprep.subr.mxu0 0.0
      %777 = vmatpush1.msra.mxu0 0.0
      %778 = vmatprep.subr.mxu0 0.0
      %779 = vmatpush1.msra.mxu0 0.0
      %780 = vmatprep.subr.mxu0 0.0
      %781 = vmatpush1.msra.mxu0 0.0
      %782 = vmatprep.subr.mxu0 0.0
      %783 = vmatpush1.msra.mxu0 0.0
      %784 = vmatprep.subr.mxu0 0.0
      %785 = vmatpush1.msra.mxu0 0.0
      %786 = vmatprep.subr.mxu0 0.0
      %787 = vmatpush1.msra.mxu0 0.0
      %788 = vmatprep.subr.mxu0 0.0
      %789 = vmatpush1.msra.mxu0 0.0
      %790 = vmatprep.subr.mxu0 0.0
      %791 = vmatpush1.msra.mxu0 0.0
      %792 = vmatprep.subr.mxu0 0.0
      %793 = vmatpush1.msra.mxu0 0.0
      %794 = vmatprep.subr.mxu0 0.0
      %795 = vmatpush1.msra.mxu0 0.0
      %796 = vmatprep.subr.mxu0 0.0
      %797 = vmatpush1.msra.mxu0 0.0
      %798 = vmatprep.subr.mxu0 0.0
      %799 = vmatpush1.msra.mxu0 0.0
      %800 = vmatprep.subr.mxu0 0.0
      %801 = vmatpush1.msra.mxu0 0.0
      %802 = vmatprep.subr.mxu0 0.0
      %803 = vmatpush1.msra.mxu0 0.0
      %804 = vmatprep.subr.mxu0 0.0
      %805 = vmatpush1.msra.mxu0 0.0
      %806 = vmatprep.subr.mxu0 0.0
      %807 = vmatpush1.msra.mxu0 0.0
      %808 = vmatprep.subr.mxu0 0.0
      %809 = vmatpush1.msra.mxu0 0.0
      %810 = vmatprep.subr.mxu0 0.0
      %811 = vmatpush1.msra.mxu0 0.0
      %812 = vmatprep.subr.mxu0 0.0
      %813 = vmatpush1.msra.mxu0 0.0
      %814 = vmatprep.subr.mxu0 0.0
      %815 = vmatpush1.msra.mxu0 0.0
      %816 = vmatprep.mubr.f32.mxu0 0.0
      %817 = vmatmul.mubr.f32.gmra.mrb[0].mxu0 %v679
      %v818 = vpop.f32.mrb[0].mxu0
      %v819 = vadd.f32 0.0, %v818
      %v820 = vpop.f32.mrb[0].mxu0
      %821 = vdwg.mxu0
      %v822 = vadd.f32 %v579, %v748
      %v823 = vxor.u32 %v822, 2147483648
      %v824 = vmul.f32 %v823, 1.442695
      %v825 = vpow.pop %v824
      %v826 = vadd.f32 %v825, 1.0
      %v827 = vrcp.pop %v826
      %v828 = vmul.f32 1.0, %v827
      %v829 = vadd.f32 %v581, %v750
      %v830 = vxor.u32 %v829, 2147483648
      %v831 = vmul.f32 %v830, 1.442695
      %v832 = vpow.pop %v831
      %v833 = vadd.f32 %v832, 1.0
      %v834 = vrcp.pop %v833
      %v835 = vmul.f32 1.0, %v834
      %v836 = vadd.f32 %v819, %v677
      %v837 = vmul.f32 %v828, %v836
      %v838 = vadd.f32 %v650, %v837
      %v839 = vtanh.pop %v838
      %v840 = vsub.f32 1.0, %v835
      %v841 = vmul.f32 %v840, %v839
      %v842 = vmul.f32 %v835, 0.0
      %v843 = vadd.f32 %v841, %v842
      %v845 = vsel %vm508, %v843, 0
      %847 = vmatprep.subr.mxu0 %v654
      %848 = vmatpush1.msra.mxu0 %v653
      %849 = vmatprep.subr.mxu0 %v657
      %850 = vmatpush1.msra.mxu0 %v656
      %851 = vmatprep.subr.mxu0 %v660
      %852 = vmatpush1.msra.mxu0 %v659
      %853 = vmatprep.subr.mxu0 %v663
      %854 = vmatpush1.msra.mxu0 %v662
      %855 = vmatprep.subr.mxu0 %v666
      %856 = vmatpush1.msra.mxu0 %v665
      %857 = vmatprep.subr.mxu0 %v669
      %858 = vmatpush1.msra.mxu0 %v668
      %859 = vmatprep.subr.mxu0 %v672
      %860 = vmatpush1.msra.mxu0 %v671
      %861 = vmatprep.subr.mxu0 %v675
      %862 = vmatpush1.msra.mxu0 %v674
      %863 = vmatprep.subr.mxu0 0.0
      %864 = vmatpush1.msra.mxu0 0.0
      %865 = vmatprep.subr.mxu0 0.0
      %866 = vmatpush1.msra.mxu0 0.0
      %867 = vmatprep.subr.mxu0 0.0
      %868 = vmatpush1.msra.mxu0 0.0
      %869 = vmatprep.subr.mxu0 0.0
      %870 = vmatpush1.msra.mxu0 0.0
      %871 = vmatprep.subr.mxu0 0.0
      %872 = vmatpush1.msra.mxu0 0.0
      %873 = vmatprep.subr.mxu0 0.0
      %874 = vmatpush1.msra.mxu0 0.0
      %875 = vmatprep.subr.mxu0 0.0
      %876 = vmatpush1.msra.mxu0 0.0
      %877 = vmatprep.subr.mxu0 0.0
      %878 = vmatpush1.msra.mxu0 0.0
      %879 = vmatprep.subr.mxu0 0.0
      %880 = vmatpush1.msra.mxu0 0.0
      %881 = vmatprep.subr.mxu0 0.0
      %882 = vmatpush1.msra.mxu0 0.0
      %883 = vmatprep.subr.mxu0 0.0
      %884 = vmatpush1.msra.mxu0 0.0
      %885 = vmatprep.subr.mxu0 0.0
      %886 = vmatpush1.msra.mxu0 0.0
      %887 = vmatprep.subr.mxu0 0.0
      %888 = vmatpush1.msra.mxu0 0.0
      %889 = vmatprep.subr.mxu0 0.0
      %890 = vmatpush1.msra.mxu0 0.0
      %891 = vmatprep.subr.mxu0 0.0
      %892 = vmatpush1.msra.mxu0 0.0
      %893 = vmatprep.subr.mxu0 0.0
      %894 = vmatpush1.msra.mxu0 0.0
      %895 = vmatprep.subr.mxu0 0.0
      %896 = vmatpush1.msra.mxu0 0.0
      %897 = vmatprep.subr.mxu0 0.0
      %898 = vmatpush1.msra.mxu0 0.0
      %899 = vmatprep.subr.mxu0 0.0
      %900 = vmatpush1.msra.mxu0 0.0
      %901 = vmatprep.subr.mxu0 0.0
      %902 = vmatpush1.msra.mxu0 0.0
      %903 = vmatprep.subr.mxu0 0.0
      %904 = vmatpush1.msra.mxu0 0.0
      %905 = vmatprep.subr.mxu0 0.0
      %906 = vmatpush1.msra.mxu0 0.0
      %907 = vmatprep.subr.mxu0 0.0
      %908 = vmatpush1.msra.mxu0 0.0
      %909 = vmatprep.subr.mxu0 0.0
      %910 = vmatpush1.msra.mxu0 0.0
      %911 = vmatprep.mubr.f32.mxu0 0.0
      %912 = vmatmul.mubr.f32.gmra.mrb[0].mxu0 %v845
      %v913 = vpop.f32.mrb[0].mxu0
      %v914 = vadd.f32 0.0, %v913
      %v915 = vpop.f32.mrb[0].mxu0
      %v916 = vadd.f32 0.0, %v915
      %917 = vdwg.mxu0
      %918 = vmatprep.subr.mxu0 0.0
      %919 = vmatpush1.msra.mxu0 %v655
      %920 = vmatprep.subr.mxu0 0.0
      %921 = vmatpush1.msra.mxu0 %v658
      %922 = vmatprep.subr.mxu0 0.0
      %923 = vmatpush1.msra.mxu0 %v661
      %924 = vmatprep.subr.mxu0 0.0
      %925 = vmatpush1.msra.mxu0 %v664
      %926 = vmatprep.subr.mxu0 0.0
      %927 = vmatpush1.msra.mxu0 %v667
      %928 = vmatprep.subr.mxu0 0.0
      %929 = vmatpush1.msra.mxu0 %v670
      %930 = vmatprep.subr.mxu0 0.0
      %931 = vmatpush1.msra.mxu0 %v673
      %932 = vmatprep.subr.mxu0 0.0
      %933 = vmatpush1.msra.mxu0 %v676
      %934 = vmatprep.subr.mxu0 0.0
      %935 = vmatpush1.msra.mxu0 0.0
      %936 = vmatprep.subr.mxu0 0.0
      %937 = vmatpush1.msra.mxu0 0.0
      %938 = vmatprep.subr.mxu0 0.0
      %939 = vmatpush1.msra.mxu0 0.0
      %940 = vmatprep.subr.mxu0 0.0
      %941 = vmatpush1.msra.mxu0 0.0
      %942 = vmatprep.subr.mxu0 0.0
      %943 = vmatpush1.msra.mxu0 0.0
      %944 = vmatprep.subr.mxu0 0.0
      %945 = vmatpush1.msra.mxu0 0.0
      %946 = vmatprep.subr.mxu0 0.0
      %947 = vmatpush1.msra.mxu0 0.0
      %948 = vmatprep.subr.mxu0 0.0
      %949 = vmatpush1.msra.mxu0 0.0
      %950 = vmatprep.subr.mxu0 0.0
      %951 = vmatpush1.msra.mxu0 0.0
      %952 = vmatprep.subr.mxu0 0.0
      %953 = vmatpush1.msra.mxu0 0.0
      %954 = vmatprep.subr.mxu0 0.0
      %955 = vmatpush1.msra.mxu0 0.0
      %956 = vmatprep.subr.mxu0 0.0
      %957 = vmatpush1.msra.mxu0 0.0
      %958 = vmatprep.subr.mxu0 0.0
      %959 = vmatpush1.msra.mxu0 0.0
      %960 = vmatprep.subr.mxu0 0.0
      %961 = vmatpush1.msra.mxu0 0.0
      %962 = vmatprep.subr.mxu0 0.0
      %963 = vmatpush1.msra.mxu0 0.0
      %964 = vmatprep.subr.mxu0 0.0
      %965 = vmatpush1.msra.mxu0 0.0
      %966 = vmatprep.subr.mxu0 0.0
      %967 = vmatpush1.msra.mxu0 0.0
      %968 = vmatprep.subr.mxu0 0.0
      %969 = vmatpush1.msra.mxu0 0.0
      %970 = vmatprep.subr.mxu0 0.0
      %971 = vmatpush1.msra.mxu0 0.0
      %972 = vmatprep.subr.mxu0 0.0
      %973 = vmatpush1.msra.mxu0 0.0
      %974 = vmatprep.subr.mxu0 0.0
      %975 = vmatpush1.msra.mxu0 0.0
      %976 = vmatprep.subr.mxu0 0.0
      %977 = vmatpush1.msra.mxu0 0.0
      %978 = vmatprep.subr.mxu0 0.0
      %979 = vmatpush1.msra.mxu0 0.0
      %980 = vmatprep.subr.mxu0 0.0
      %981 = vmatpush1.msra.mxu0 0.0
      %982 = vmatprep.mubr.f32.mxu0 0.0
      %983 = vmatmul.mubr.f32.gmra.mrb[0].mxu0 %v845
      %v984 = vpop.f32.mrb[0].mxu0
      %v985 = vadd.f32 0.0, %v984
      %v986 = vpop.f32.mrb[0].mxu0
      %987 = vdwg.mxu0
      %v989 = vrot.slane %v914, 7
      %v991 = vadd.f32 %v579, %v989
      %v992 = vxor.u32 %v991, 2147483648
      %v993 = vmul.f32 %v992, 1.442695
      %v994 = vpow.pop %v993
      %v995 = vadd.f32 %v994, 1.0
      %v996 = vrcp.pop %v995
      %v997 = vmul.f32 1.0, %v996
      %v999 = vrot.slane %v916, 7
      %v1001 = vadd.f32 %v581, %v999
      %v1002 = vxor.u32 %v1001, 2147483648
      %v1003 = vmul.f32 %v1002, 1.442695
      %v1004 = vpow.pop %v1003
      %v1005 = vadd.f32 %v1004, 1.0
      %v1006 = vrcp.pop %v1005
      %v1007 = vmul.f32 1.0, %v1006
      %v1008 = vadd.f32 %v985, %v677
      %v1010 = vrot.slane %v1008, 7
      %v1012 = vmul.f32 %v997, %v1010
      %v1013 = vadd.f32 %v650, %v1012
      %v1014 = vtanh.pop %v1013
      %v1015 = vsub.f32 1.0, %v1007
      %v1016 = vmul.f32 %v1015, %v1014
      %v1017 = vrot.slane %v843, 7
      %v1019 = vmul.f32 %v1007, %v1017
      %v1020 = vadd.f32 %v1016, %v1019
      %v1022 = vrot.slane %v1020, 1
      %v1023 = vsel %vm508, %v1022, 0
      %1025 = vmatprep.subr.mxu0 %v654
      %1026 = vmatpush1.msra.mxu0 %v653
      %1027 = vmatprep.subr.mxu0 %v657
      %1028 = vmatpush1.msra.mxu0 %v656
      %1029 = vmatprep.subr.mxu0 %v660
      %1030 = vmatpush1.msra.mxu0 %v659
      %1031 = vmatprep.subr.mxu0 %v663
      %1032 = vmatpush1.msra.mxu0 %v662
      %1033 = vmatprep.subr.mxu0 %v666
      %1034 = vmatpush1.msra.mxu0 %v665
      %1035 = vmatprep.subr.mxu0 %v669
      %1036 = vmatpush1.msra.mxu0 %v668
      %1037 = vmatprep.subr.mxu0 %v672
      %1038 = vmatpush1.msra.mxu0 %v671
      %1039 = vmatprep.subr.mxu0 %v675
      %1040 = vmatpush1.msra.mxu0 %v674
      %1041 = vmatprep.subr.mxu0 0.0
      %1042 = vmatpush1.msra.mxu0 0.0
      %1043 = vmatprep.subr.mxu0 0.0
      %1044 = vmatpush1.msra.mxu0 0.0
      %1045 = vmatprep.subr.mxu0 0.0
      %1046 = vmatpush1.msra.mxu0 0.0
      %1047 = vmatprep.subr.mxu0 0.0
      %1048 = vmatpush1.msra.mxu0 0.0
      %1049 = vmatprep.subr.mxu0 0.0
      %1050 = vmatpush1.msra.mxu0 0.0
      %1051 = vmatprep.subr.mxu0 0.0
      %1052 = vmatpush1.msra.mxu0 0.0
      %1053 = vmatprep.subr.mxu0 0.0
      %1054 = vmatpush1.msra.mxu0 0.0
      %1055 = vmatprep.subr.mxu0 0.0
      %1056 = vmatpush1.msra.mxu0 0.0
      %1057 = vmatprep.subr.mxu0 0.0
      %1058 = vmatpush1.msra.mxu0 0.0
      %1059 = vmatprep.subr.mxu0 0.0
      %1060 = vmatpush1.msra.mxu0 0.0
      %1061 = vmatprep.subr.mxu0 0.0
      %1062 = vmatpush1.msra.mxu0 0.0
      %1063 = vmatprep.subr.mxu0 0.0
      %1064 = vmatpush1.msra.mxu0 0.0
      %1065 = vmatprep.subr.mxu0 0.0
      %1066 = vmatpush1.msra.mxu0 0.0
      %1067 = vmatprep.subr.mxu0 0.0
      %1068 = vmatpush1.msra.mxu0 0.0
      %1069 = vmatprep.subr.mxu0 0.0
      %1070 = vmatpush1.msra.mxu0 0.0
      %1071 = vmatprep.subr.mxu0 0.0
      %1072 = vmatpush1.msra.mxu0 0.0
      %1073 = vmatprep.subr.mxu0 0.0
      %1074 = vmatpush1.msra.mxu0 0.0
      %1075 = vmatprep.subr.mxu0 0.0
      %1076 = vmatpush1.msra.mxu0 0.0
      %1077 = vmatprep.subr.mxu0 0.0
      %1078 = vmatpush1.msra.mxu0 0.0
      %1079 = vmatprep.subr.mxu0 0.0
      %1080 = vmatpush1.msra.mxu0 0.0
      %1081 = vmatprep.subr.mxu0 0.0
      %1082 = vmatpush1.msra.mxu0 0.0
      %1083 = vmatprep.subr.mxu0 0.0
      %1084 = vmatpush1.msra.mxu0 0.0
      %1085 = vmatprep.subr.mxu0 0.0
      %1086 = vmatpush1.msra.mxu0 0.0
      %1087 = vmatprep.subr.mxu0 0.0
      %1088 = vmatpush1.msra.mxu0 0.0
      %1089 = vmatprep.mubr.f32.mxu0 0.0
      %1090 = vmatmul.mubr.f32.gmra.mrb[0].mxu0 %v1023
      %v1091 = vpop.f32.mrb[0].mxu0
      %v1092 = vadd.f32 0.0, %v1091
      %v1093 = vpop.f32.mrb[0].mxu0
      %v1094 = vadd.f32 0.0, %v1093
      %1095 = vdwg.mxu0
      %1096 = vmatprep.subr.mxu0 0.0
      %1097 = vmatpush1.msra.mxu0 %v655
      %1098 = vmatprep.subr.mxu0 0.0
      %1099 = vmatpush1.msra.mxu0 %v658
      %1100 = vmatprep.subr.mxu0 0.0
      %1101 = vmatpush1.msra.mxu0 %v661
      %1102 = vmatprep.subr.mxu0 0.0
      %1103 = vmatpush1.msra.mxu0 %v664
      %1104 = vmatprep.subr.mxu0 0.0
      %1105 = vmatpush1.msra.mxu0 %v667
      %1106 = vmatprep.subr.mxu0 0.0
      %1107 = vmatpush1.msra.mxu0 %v670
      %1108 = vmatprep.subr.mxu0 0.0
      %1109 = vmatpush1.msra.mxu0 %v673
      %1110 = vmatprep.subr.mxu0 0.0
      %1111 = vmatpush1.msra.mxu0 %v676
      %1112 = vmatprep.subr.mxu0 0.0
      %1113 = vmatpush1.msra.mxu0 0.0
      %1114 = vmatprep.subr.mxu0 0.0
      %1115 = vmatpush1.msra.mxu0 0.0
      %1116 = vmatprep.subr.mxu0 0.0
      %1117 = vmatpush1.msra.mxu0 0.0
      %1118 = vmatprep.subr.mxu0 0.0
      %1119 = vmatpush1.msra.mxu0 0.0
      %1120 = vmatprep.subr.mxu0 0.0
      %1121 = vmatpush1.msra.mxu0 0.0
      %1122 = vmatprep.subr.mxu0 0.0
      %1123 = vmatpush1.msra.mxu0 0.0
      %1124 = vmatprep.subr.mxu0 0.0
      %1125 = vmatpush1.msra.mxu0 0.0
      %1126 = vmatprep.subr.mxu0 0.0
      %1127 = vmatpush1.msra.mxu0 0.0
      %1128 = vmatprep.subr.mxu0 0.0
      %1129 = vmatpush1.msra.mxu0 0.0
      %1130 = vmatprep.subr.mxu0 0.0
      %1131 = vmatpush1.msra.mxu0 0.0
      %1132 = vmatprep.subr.mxu0 0.0
      %1133 = vmatpush1.msra.mxu0 0.0
      %1134 = vmatprep.subr.mxu0 0.0
      %1135 = vmatpush1.msra.mxu0 0.0
      %1136 = vmatprep.subr.mxu0 0.0
      %1137 = vmatpush1.msra.mxu0 0.0
      %1138 = vmatprep.subr.mxu0 0.0
      %1139 = vmatpush1.msra.mxu0 0.0
      %1140 = vmatprep.subr.mxu0 0.0
      %1141 = vmatpush1.msra.mxu0 0.0
      %1142 = vmatprep.subr.mxu0 0.0
      %1143 = vmatpush1.msra.mxu0 0.0
      %1144 = vmatprep.subr.mxu0 0.0
      %1145 = vmatpush1.msra.mxu0 0.0
      %1146 = vmatprep.subr.mxu0 0.0
      %1147 = vmatpush1.msra.mxu0 0.0
      %1148 = vmatprep.subr.mxu0 0.0
      %1149 = vmatpush1.msra.mxu0 0.0
      %1150 = vmatprep.subr.mxu0 0.0
      %1151 = vmatpush1.msra.mxu0 0.0
      %1152 = vmatprep.subr.mxu0 0.0
      %1153 = vmatpush1.msra.mxu0 0.0
      %1154 = vmatprep.subr.mxu0 0.0
      %1155 = vmatpush1.msra.mxu0 0.0
      %1156 = vmatprep.subr.mxu0 0.0
      %1157 = vmatpush1.msra.mxu0 0.0
      %1158 = vmatprep.subr.mxu0 0.0
      %1159 = vmatpush1.msra.mxu0 0.0
      %1160 = vmatprep.mubr.f32.mxu0 0.0
      %1161 = vmatmul.mubr.f32.gmra.mrb[0].mxu0 %v1023
      %v1162 = vpop.f32.mrb[0].mxu0
      %v1163 = vadd.f32 0.0, %v1162
      %v1164 = vpop.f32.mrb[0].mxu0
      %1165 = vdwg.mxu0
      %v1167 = vrot.slane %v1092, 6
      %v1169 = vadd.f32 %v579, %v1167
      %v1170 = vxor.u32 %v1169, 2147483648
      %v1171 = vmul.f32 %v1170, 1.442695
      %v1172 = vpow.pop %v1171
      %v1173 = vadd.f32 %v1172, 1.0
      %v1174 = vrcp.pop %v1173
      %v1175 = vmul.f32 1.0, %v1174
      %v1177 = vrot.slane %v1094, 6
      %v1179 = vadd.f32 %v581, %v1177
      %v1180 = vxor.u32 %v1179, 2147483648
      %v1181 = vmul.f32 %v1180, 1.442695
      %v1182 = vpow.pop %v1181
      %v1183 = vadd.f32 %v1182, 1.0
      %v1184 = vrcp.pop %v1183
      %v1185 = vmul.f32 1.0, %v1184
      %v1186 = vadd.f32 %v1163, %v677
      %v1188 = vrot.slane %v1186, 6
      %v1190 = vmul.f32 %v1175, %v1188
      %v1191 = vadd.f32 %v650, %v1190
      %v1192 = vtanh.pop %v1191
      %v1193 = vsub.f32 1.0, %v1185
      %v1194 = vmul.f32 %v1193, %v1192
      %v1195 = vrot.slane %v1020, 7
      %v1197 = vmul.f32 %v1185, %v1195
      %v1198 = vadd.f32 %v1194, %v1197
      %v1200 = vrot.slane %v1198, 2
      %v1201 = vsel %vm508, %v1200, 0
      %1203 = vmatprep.subr.mxu0 %v654
      %1204 = vmatpush1.msra.mxu0 %v653
      %1205 = vmatprep.subr.mxu0 %v657
      %1206 = vmatpush1.msra.mxu0 %v656
      %1207 = vmatprep.subr.mxu0 %v660
      %1208 = vmatpush1.msra.mxu0 %v659
      %1209 = vmatprep.subr.mxu0 %v663
      %1210 = vmatpush1.msra.mxu0 %v662
      %1211 = vmatprep.subr.mxu0 %v666
      %1212 = vmatpush1.msra.mxu0 %v665
      %1213 = vmatprep.subr.mxu0 %v669
      %1214 = vmatpush1.msra.mxu0 %v668
      %1215 = vmatprep.subr.mxu0 %v672
      %1216 = vmatpush1.msra.mxu0 %v671
      %1217 = vmatprep.subr.mxu0 %v675
      %1218 = vmatpush1.msra.mxu0 %v674
      %1219 = vmatprep.subr.mxu0 0.0
      %1220 = vmatpush1.msra.mxu0 0.0
      %1221 = vmatprep.subr.mxu0 0.0
      %1222 = vmatpush1.msra.mxu0 0.0
      %1223 = vmatprep.subr.mxu0 0.0
      %1224 = vmatpush1.msra.mxu0 0.0
      %1225 = vmatprep.subr.mxu0 0.0
      %1226 = vmatpush1.msra.mxu0 0.0
      %1227 = vmatprep.subr.mxu0 0.0
      %1228 = vmatpush1.msra.mxu0 0.0
      %1229 = vmatprep.subr.mxu0 0.0
      %1230 = vmatpush1.msra.mxu0 0.0
      %1231 = vmatprep.subr.mxu0 0.0
      %1232 = vmatpush1.msra.mxu0 0.0
      %1233 = vmatprep.subr.mxu0 0.0
      %1234 = vmatpush1.msra.mxu0 0.0
      %1235 = vmatprep.subr.mxu0 0.0
      %1236 = vmatpush1.msra.mxu0 0.0
      %1237 = vmatprep.subr.mxu0 0.0
      %1238 = vmatpush1.msra.mxu0 0.0
      %1239 = vmatprep.subr.mxu0 0.0
      %1240 = vmatpush1.msra.mxu0 0.0
      %1241 = vmatprep.subr.mxu0 0.0
      %1242 = vmatpush1.msra.mxu0 0.0
      %1243 = vmatprep.subr.mxu0 0.0
      %1244 = vmatpush1.msra.mxu0 0.0
      %1245 = vmatprep.subr.mxu0 0.0
      %1246 = vmatpush1.msra.mxu0 0.0
      %1247 = vmatprep.subr.mxu0 0.0
      %1248 = vmatpush1.msra.mxu0 0.0
      %1249 = vmatprep.subr.mxu0 0.0
      %1250 = vmatpush1.msra.mxu0 0.0
      %1251 = vmatprep.subr.mxu0 0.0
      %1252 = vmatpush1.msra.mxu0 0.0
      %1253 = vmatprep.subr.mxu0 0.0
      %1254 = vmatpush1.msra.mxu0 0.0
      %1255 = vmatprep.subr.mxu0 0.0
      %1256 = vmatpush1.msra.mxu0 0.0
      %1257 = vmatprep.subr.mxu0 0.0
      %1258 = vmatpush1.msra.mxu0 0.0
      %1259 = vmatprep.subr.mxu0 0.0
      %1260 = vmatpush1.msra.mxu0 0.0
      %1261 = vmatprep.subr.mxu0 0.0
      %1262 = vmatpush1.msra.mxu0 0.0
      %1263 = vmatprep.subr.mxu0 0.0
      %1264 = vmatpush1.msra.mxu0 0.0
      %1265 = vmatprep.subr.mxu0 0.0
      %1266 = vmatpush1.msra.mxu0 0.0
      %1267 = vmatprep.mubr.f32.mxu0 0.0
      %1268 = vmatmul.mubr.f32.gmra.mrb[0].mxu0 %v1201
      %v1269 = vpop.f32.mrb[0].mxu0
      %v1270 = vadd.f32 0.0, %v1269
      %v1271 = vpop.f32.mrb[0].mxu0
      %v1272 = vadd.f32 0.0, %v1271
      %1273 = vdwg.mxu0
      %1274 = vmatprep.subr.mxu0 0.0
      %1275 = vmatpush1.msra.mxu0 %v655
      %1276 = vmatprep.subr.mxu0 0.0
      %1277 = vmatpush1.msra.mxu0 %v658
      %1278 = vmatprep.subr.mxu0 0.0
      %1279 = vmatpush1.msra.mxu0 %v661
      %1280 = vmatprep.subr.mxu0 0.0
      %1281 = vmatpush1.msra.mxu0 %v664
      %1282 = vmatprep.subr.mxu0 0.0
      %1283 = vmatpush1.msra.mxu0 %v667
      %1284 = vmatprep.subr.mxu0 0.0
      %1285 = vmatpush1.msra.mxu0 %v670
      %1286 = vmatprep.subr.mxu0 0.0
      %1287 = vmatpush1.msra.mxu0 %v673
      %1288 = vmatprep.subr.mxu0 0.0
      %1289 = vmatpush1.msra.mxu0 %v676
      %1290 = vmatprep.subr.mxu0 0.0
      %1291 = vmatpush1.msra.mxu0 0.0
      %1292 = vmatprep.subr.mxu0 0.0
      %1293 = vmatpush1.msra.mxu0 0.0
      %1294 = vmatprep.subr.mxu0 0.0
      %1295 = vmatpush1.msra.mxu0 0.0
      %1296 = vmatprep.subr.mxu0 0.0
      %1297 = vmatpush1.msra.mxu0 0.0
      %1298 = vmatprep.subr.mxu0 0.0
      %1299 = vmatpush1.msra.mxu0 0.0
      %1300 = vmatprep.subr.mxu0 0.0
      %1301 = vmatpush1.msra.mxu0 0.0
      %1302 = vmatprep.subr.mxu0 0.0
      %1303 = vmatpush1.msra.mxu0 0.0
      %1304 = vmatprep.subr.mxu0 0.0
      %1305 = vmatpush1.msra.mxu0 0.0
      %1306 = vmatprep.subr.mxu0 0.0
      %1307 = vmatpush1.msra.mxu0 0.0
      %1308 = vmatprep.subr.mxu0 0.0
      %1309 = vmatpush1.msra.mxu0 0.0
      %1310 = vmatprep.subr.mxu0 0.0
      %1311 = vmatpush1.msra.mxu0 0.0
      %1312 = vmatprep.subr.mxu0 0.0
      %1313 = vmatpush1.msra.mxu0 0.0
      %1314 = vmatprep.subr.mxu0 0.0
      %1315 = vmatpush1.msra.mxu0 0.0
      %1316 = vmatprep.subr.mxu0 0.0
      %1317 = vmatpush1.msra.mxu0 0.0
      %1318 = vmatprep.subr.mxu0 0.0
      %1319 = vmatpush1.msra.mxu0 0.0
      %1320 = vmatprep.subr.mxu0 0.0
      %1321 = vmatpush1.msra.mxu0 0.0
      %1322 = vmatprep.subr.mxu0 0.0
      %1323 = vmatpush1.msra.mxu0 0.0
      %1324 = vmatprep.subr.mxu0 0.0
      %1325 = vmatpush1.msra.mxu0 0.0
      %1326 = vmatprep.subr.mxu0 0.0
      %1327 = vmatpush1.msra.mxu0 0.0
      %1328 = vmatprep.subr.mxu0 0.0
      %1329 = vmatpush1.msra.mxu0 0.0
      %1330 = vmatprep.subr.mxu0 0.0
      %1331 = vmatpush1.msra.mxu0 0.0
      %1332 = vmatprep.subr.mxu0 0.0
      %1333 = vmatpush1.msra.mxu0 0.0
      %1334 = vmatprep.subr.mxu0 0.0
      %1335 = vmatpush1.msra.mxu0 0.0
      %1336 = vmatprep.subr.mxu0 0.0
      %1337 = vmatpush1.msra.mxu0 0.0
      %1338 = vmatprep.mubr.f32.mxu0 0.0
      %1339 = vmatmul.mubr.f32.gmra.mrb[0].mxu0 %v1201
      %v1340 = vpop.f32.mrb[0].mxu0
      %v1341 = vadd.f32 0.0, %v1340
      %v1342 = vpop.f32.mrb[0].mxu0
      %1343 = vdwg.mxu0
      %v1345 = vrot.slane %v1270, 5
      %v1347 = vadd.f32 %v579, %v1345
      %v1348 = vxor.u32 %v1347, 2147483648
      %v1349 = vmul.f32 %v1348, 1.442695
      %v1350 = vpow.pop %v1349
      %v1351 = vadd.f32 %v1350, 1.0
      %v1352 = vrcp.pop %v1351
      %v1353 = vmul.f32 1.0, %v1352
      %v1355 = vrot.slane %v1272, 5
      %v1357 = vadd.f32 %v581, %v1355
      %v1358 = vxor.u32 %v1357, 2147483648
      %v1359 = vmul.f32 %v1358, 1.442695
      %v1360 = vpow.pop %v1359
      %v1361 = vadd.f32 %v1360, 1.0
      %v1362 = vrcp.pop %v1361
      %v1363 = vmul.f32 1.0, %v1362
      %v1364 = vadd.f32 %v1341, %v677
      %v1366 = vrot.slane %v1364, 5
      %v1368 = vmul.f32 %v1353, %v1366
      %v1369 = vadd.f32 %v650, %v1368
      %v1370 = vtanh.pop %v1369
      %v1371 = vsub.f32 1.0, %v1363
      %v1372 = vmul.f32 %v1371, %v1370
      %v1373 = vrot.slane %v1198, 7
      %v1375 = vmul.f32 %v1363, %v1373
      %v1376 = vadd.f32 %v1372, %v1375
      %v1378 = vrot.slane %v1376, 3
      %v1379 = vsel %vm508, %v1378, 0
      %1381 = vmatprep.subr.mxu0 %v654
      %1382 = vmatpush1.msra.mxu0 %v653
      %1383 = vmatprep.subr.mxu0 %v657
      %1384 = vmatpush1.msra.mxu0 %v656
      %1385 = vmatprep.subr.mxu0 %v660
      %1386 = vmatpush1.msra.mxu0 %v659
      %1387 = vmatprep.subr.mxu0 %v663
      %1388 = vmatpush1.msra.mxu0 %v662
      %1389 = vmatprep.subr.mxu0 %v666
      %1390 = vmatpush1.msra.mxu0 %v665
      %1391 = vmatprep.subr.mxu0 %v669
      %1392 = vmatpush1.msra.mxu0 %v668
      %1393 = vmatprep.subr.mxu0 %v672
      %1394 = vmatpush1.msra.mxu0 %v671
      %1395 = vmatprep.subr.mxu0 %v675
      %1396 = vmatpush1.msra.mxu0 %v674
      %1397 = vmatprep.subr.mxu0 0.0
      %1398 = vmatpush1.msra.mxu0 0.0
      %1399 = vmatprep.subr.mxu0 0.0
      %1400 = vmatpush1.msra.mxu0 0.0
      %1401 = vmatprep.subr.mxu0 0.0
      %1402 = vmatpush1.msra.mxu0 0.0
      %1403 = vmatprep.subr.mxu0 0.0
      %1404 = vmatpush1.msra.mxu0 0.0
      %1405 = vmatprep.subr.mxu0 0.0
      %1406 = vmatpush1.msra.mxu0 0.0
      %1407 = vmatprep.subr.mxu0 0.0
      %1408 = vmatpush1.msra.mxu0 0.0
      %1409 = vmatprep.subr.mxu0 0.0
      %1410 = vmatpush1.msra.mxu0 0.0
      %1411 = vmatprep.subr.mxu0 0.0
      %1412 = vmatpush1.msra.mxu0 0.0
      %1413 = vmatprep.subr.mxu0 0.0
      %1414 = vmatpush1.msra.mxu0 0.0
      %1415 = vmatprep.subr.mxu0 0.0
      %1416 = vmatpush1.msra.mxu0 0.0
      %1417 = vmatprep.subr.mxu0 0.0
      %1418 = vmatpush1.msra.mxu0 0.0
      %1419 = vmatprep.subr.mxu0 0.0
      %1420 = vmatpush1.msra.mxu0 0.0
      %1421 = vmatprep.subr.mxu0 0.0
      %1422 = vmatpush1.msra.mxu0 0.0
      %1423 = vmatprep.subr.mxu0 0.0
      %1424 = vmatpush1.msra.mxu0 0.0
      %1425 = vmatprep.subr.mxu0 0.0
      %1426 = vmatpush1.msra.mxu0 0.0
      %1427 = vmatprep.subr.mxu0 0.0
      %1428 = vmatpush1.msra.mxu0 0.0
      %1429 = vmatprep.subr.mxu0 0.0
      %1430 = vmatpush1.msra.mxu0 0.0
      %1431 = vmatprep.subr.mxu0 0.0
      %1432 = vmatpush1.msra.mxu0 0.0
      %1433 = vmatprep.subr.mxu0 0.0
      %1434 = vmatpush1.msra.mxu0 0.0
      %1435 = vmatprep.subr.mxu0 0.0
      %1436 = vmatpush1.msra.mxu0 0.0
      %1437 = vmatprep.subr.mxu0 0.0
      %1438 = vmatpush1.msra.mxu0 0.0
      %1439 = vmatprep.subr.mxu0 0.0
      %1440 = vmatpush1.msra.mxu0 0.0
      %1441 = vmatprep.subr.mxu0 0.0
      %1442 = vmatpush1.msra.mxu0 0.0
      %1443 = vmatprep.subr.mxu0 0.0
      %1444 = vmatpush1.msra.mxu0 0.0
      %1445 = vmatprep.mubr.f32.mxu0 0.0
      %1446 = vmatmul.mubr.f32.gmra.mrb[0].mxu0 %v1379
      %v1447 = vpop.f32.mrb[0].mxu0
      %v1448 = vadd.f32 0.0, %v1447
      %v1449 = vpop.f32.mrb[0].mxu0
      %v1450 = vadd.f32 0.0, %v1449
      %1451 = vdwg.mxu0
      %1452 = vmatprep.subr.mxu0 0.0
      %1453 = vmatpush1.msra.mxu0 %v655
      %1454 = vmatprep.subr.mxu0 0.0
      %1455 = vmatpush1.msra.mxu0 %v658
      %1456 = vmatprep.subr.mxu0 0.0
      %1457 = vmatpush1.msra.mxu0 %v661
      %1458 = vmatprep.subr.mxu0 0.0
      %1459 = vmatpush1.msra.mxu0 %v664
      %1460 = vmatprep.subr.mxu0 0.0
      %1461 = vmatpush1.msra.mxu0 %v667
      %1462 = vmatprep.subr.mxu0 0.0
      %1463 = vmatpush1.msra.mxu0 %v670
      %1464 = vmatprep.subr.mxu0 0.0
      %1465 = vmatpush1.msra.mxu0 %v673
      %1466 = vmatprep.subr.mxu0 0.0
      %1467 = vmatpush1.msra.mxu0 %v676
      %1468 = vmatprep.subr.mxu0 0.0
      %1469 = vmatpush1.msra.mxu0 0.0
      %1470 = vmatprep.subr.mxu0 0.0
      %1471 = vmatpush1.msra.mxu0 0.0
      %1472 = vmatprep.subr.mxu0 0.0
      %1473 = vmatpush1.msra.mxu0 0.0
      %1474 = vmatprep.subr.mxu0 0.0
      %1475 = vmatpush1.msra.mxu0 0.0
      %1476 = vmatprep.subr.mxu0 0.0
      %1477 = vmatpush1.msra.mxu0 0.0
      %1478 = vmatprep.subr.mxu0 0.0
      %1479 = vmatpush1.msra.mxu0 0.0
      %1480 = vmatprep.subr.mxu0 0.0
      %1481 = vmatpush1.msra.mxu0 0.0
      %1482 = vmatprep.subr.mxu0 0.0
      %1483 = vmatpush1.msra.mxu0 0.0
      %1484 = vmatprep.subr.mxu0 0.0
      %1485 = vmatpush1.msra.mxu0 0.0
      %1486 = vmatprep.subr.mxu0 0.0
      %1487 = vmatpush1.msra.mxu0 0.0
      %1488 = vmatprep.subr.mxu0 0.0
      %1489 = vmatpush1.msra.mxu0 0.0
      %1490 = vmatprep.subr.mxu0 0.0
      %1491 = vmatpush1.msra.mxu0 0.0
      %1492 = vmatprep.subr.mxu0 0.0
      %1493 = vmatpush1.msra.mxu0 0.0
      %1494 = vmatprep.subr.mxu0 0.0
      %1495 = vmatpush1.msra.mxu0 0.0
      %1496 = vmatprep.subr.mxu0 0.0
      %1497 = vmatpush1.msra.mxu0 0.0
      %1498 = vmatprep.subr.mxu0 0.0
      %1499 = vmatpush1.msra.mxu0 0.0
      %1500 = vmatprep.subr.mxu0 0.0
      %1501 = vmatpush1.msra.mxu0 0.0
      %1502 = vmatprep.subr.mxu0 0.0
      %1503 = vmatpush1.msra.mxu0 0.0
      %1504 = vmatprep.subr.mxu0 0.0
      %1505 = vmatpush1.msra.mxu0 0.0
      %1506 = vmatprep.subr.mxu0 0.0
      %1507 = vmatpush1.msra.mxu0 0.0
      %1508 = vmatprep.subr.mxu0 0.0
      %1509 = vmatpush1.msra.mxu0 0.0
      %1510 = vmatprep.subr.mxu0 0.0
      %1511 = vmatpush1.msra.mxu0 0.0
      %1512 = vmatprep.subr.mxu0 0.0
      %1513 = vmatpush1.msra.mxu0 0.0
      %1514 = vmatprep.subr.mxu0 0.0
      %1515 = vmatpush1.msra.mxu0 0.0
      %1516 = vmatprep.mubr.f32.mxu0 0.0
      %1517 = vmatmul.mubr.f32.gmra.mrb[0].mxu0 %v1379
      %v1518 = vpop.f32.mrb[0].mxu0
      %v1519 = vadd.f32 0.0, %v1518
      %v1520 = vpop.f32.mrb[0].mxu0
      %1521 = vdwg.mxu0
      %v1523 = vrot.slane %v1448, 4
      %v1525 = vadd.f32 %v579, %v1523
      %v1526 = vxor.u32 %v1525, 2147483648
      %v1527 = vmul.f32 %v1526, 1.442695
      %v1528 = vpow.pop %v1527
      %v1529 = vadd.f32 %v1528, 1.0
      %v1530 = vrcp.pop %v1529
      %v1531 = vmul.f32 1.0, %v1530
      %v1533 = vrot.slane %v1450, 4
      %v1535 = vadd.f32 %v581, %v1533
      %v1536 = vxor.u32 %v1535, 2147483648
      %v1537 = vmul.f32 %v1536, 1.442695
      %v1538 = vpow.pop %v1537
      %v1539 = vadd.f32 %v1538, 1.0
      %v1540 = vrcp.pop %v1539
      %v1541 = vmul.f32 1.0, %v1540
      %v1542 = vadd.f32 %v1519, %v677
      %v1544 = vrot.slane %v1542, 4
      %v1546 = vmul.f32 %v1531, %v1544
      %v1547 = vadd.f32 %v650, %v1546
      %v1548 = vtanh.pop %v1547
      %v1549 = vsub.f32 1.0, %v1541
      %v1550 = vmul.f32 %v1549, %v1548
      %v1551 = vrot.slane %v1376, 7
      %v1553 = vmul.f32 %v1541, %v1551
      %v1554 = vadd.f32 %v1550, %v1553
      %v1556 = vrot.slane %v1554, 4
      %v1557 = vsel %vm508, %v1556, 0
      %1559 = vmatprep.subr.mxu0 %v654
      %1560 = vmatpush1.msra.mxu0 %v653
      %1561 = vmatprep.subr.mxu0 %v657
      %1562 = vmatpush1.msra.mxu0 %v656
      %1563 = vmatprep.subr.mxu0 %v660
      %1564 = vmatpush1.msra.mxu0 %v659
      %1565 = vmatprep.subr.mxu0 %v663
      %1566 = vmatpush1.msra.mxu0 %v662
      %1567 = vmatprep.subr.mxu0 %v666
      %1568 = vmatpush1.msra.mxu0 %v665
      %1569 = vmatprep.subr.mxu0 %v669
      %1570 = vmatpush1.msra.mxu0 %v668
      %1571 = vmatprep.subr.mxu0 %v672
      %1572 = vmatpush1.msra.mxu0 %v671
      %1573 = vmatprep.subr.mxu0 %v675
      %1574 = vmatpush1.msra.mxu0 %v674
      %1575 = vmatprep.subr.mxu0 0.0
      %1576 = vmatpush1.msra.mxu0 0.0
      %1577 = vmatprep.subr.mxu0 0.0
      %1578 = vmatpush1.msra.mxu0 0.0
      %1579 = vmatprep.subr.mxu0 0.0
      %1580 = vmatpush1.msra.mxu0 0.0
      %1581 = vmatprep.subr.mxu0 0.0
      %1582 = vmatpush1.msra.mxu0 0.0
      %1583 = vmatprep.subr.mxu0 0.0
      %1584 = vmatpush1.msra.mxu0 0.0
      %1585 = vmatprep.subr.mxu0 0.0
      %1586 = vmatpush1.msra.mxu0 0.0
      %1587 = vmatprep.subr.mxu0 0.0
      %1588 = vmatpush1.msra.mxu0 0.0
      %1589 = vmatprep.subr.mxu0 0.0
      %1590 = vmatpush1.msra.mxu0 0.0
      %1591 = vmatprep.subr.mxu0 0.0
      %1592 = vmatpush1.msra.mxu0 0.0
      %1593 = vmatprep.subr.mxu0 0.0
      %1594 = vmatpush1.msra.mxu0 0.0
      %1595 = vmatprep.subr.mxu0 0.0
      %1596 = vmatpush1.msra.mxu0 0.0
      %1597 = vmatprep.subr.mxu0 0.0
      %1598 = vmatpush1.msra.mxu0 0.0
      %1599 = vmatprep.subr.mxu0 0.0
      %1600 = vmatpush1.msra.mxu0 0.0
      %1601 = vmatprep.subr.mxu0 0.0
      %1602 = vmatpush1.msra.mxu0 0.0
      %1603 = vmatprep.subr.mxu0 0.0
      %1604 = vmatpush1.msra.mxu0 0.0
      %1605 = vmatprep.subr.mxu0 0.0
      %1606 = vmatpush1.msra.mxu0 0.0
      %1607 = vmatprep.subr.mxu0 0.0
      %1608 = vmatpush1.msra.mxu0 0.0
      %1609 = vmatprep.subr.mxu0 0.0
      %1610 = vmatpush1.msra.mxu0 0.0
      %1611 = vmatprep.subr.mxu0 0.0
      %1612 = vmatpush1.msra.mxu0 0.0
      %1613 = vmatprep.subr.mxu0 0.0
      %1614 = vmatpush1.msra.mxu0 0.0
      %1615 = vmatprep.subr.mxu0 0.0
      %1616 = vmatpush1.msra.mxu0 0.0
      %1617 = vmatprep.subr.mxu0 0.0
      %1618 = vmatpush1.msra.mxu0 0.0
      %1619 = vmatprep.subr.mxu0 0.0
      %1620 = vmatpush1.msra.mxu0 0.0
      %1621 = vmatprep.subr.mxu0 0.0
      %1622 = vmatpush1.msra.mxu0 0.0
      %1623 = vmatprep.mubr.f32.mxu0 0.0
      %1624 = vmatmul.mubr.f32.gmra.mrb[0].mxu0 %v1557
      %v1625 = vpop.f32.mrb[0].mxu0
      %v1626 = vadd.f32 0.0, %v1625
      %v1627 = vpop.f32.mrb[0].mxu0
      %v1628 = vadd.f32 0.0, %v1627
      %1629 = vdwg.mxu0
      %1630 = vmatprep.subr.mxu0 0.0
      %1631 = vmatpush1.msra.mxu0 %v655
      %1632 = vmatprep.subr.mxu0 0.0
      %1633 = vmatpush1.msra.mxu0 %v658
      %1634 = vmatprep.subr.mxu0 0.0
      %1635 = vmatpush1.msra.mxu0 %v661
      %1636 = vmatprep.subr.mxu0 0.0
      %1637 = vmatpush1.msra.mxu0 %v664
      %1638 = vmatprep.subr.mxu0 0.0
      %1639 = vmatpush1.msra.mxu0 %v667
      %1640 = vmatprep.subr.mxu0 0.0
      %1641 = vmatpush1.msra.mxu0 %v670
      %1642 = vmatprep.subr.mxu0 0.0
      %1643 = vmatpush1.msra.mxu0 %v673
      %1644 = vmatprep.subr.mxu0 0.0
      %1645 = vmatpush1.msra.mxu0 %v676
      %1646 = vmatprep.subr.mxu0 0.0
      %1647 = vmatpush1.msra.mxu0 0.0
      %1648 = vmatprep.subr.mxu0 0.0
      %1649 = vmatpush1.msra.mxu0 0.0
      %1650 = vmatprep.subr.mxu0 0.0
      %1651 = vmatpush1.msra.mxu0 0.0
      %1652 = vmatprep.subr.mxu0 0.0
      %1653 = vmatpush1.msra.mxu0 0.0
      %1654 = vmatprep.subr.mxu0 0.0
      %1655 = vmatpush1.msra.mxu0 0.0
      %1656 = vmatprep.subr.mxu0 0.0
      %1657 = vmatpush1.msra.mxu0 0.0
      %1658 = vmatprep.subr.mxu0 0.0
      %1659 = vmatpush1.msra.mxu0 0.0
      %1660 = vmatprep.subr.mxu0 0.0
      %1661 = vmatpush1.msra.mxu0 0.0
      %1662 = vmatprep.subr.mxu0 0.0
      %1663 = vmatpush1.msra.mxu0 0.0
      %1664 = vmatprep.subr.mxu0 0.0
      %1665 = vmatpush1.msra.mxu0 0.0
      %1666 = vmatprep.subr.mxu0 0.0
      %1667 = vmatpush1.msra.mxu0 0.0
      %1668 = vmatprep.subr.mxu0 0.0
      %1669 = vmatpush1.msra.mxu0 0.0
      %1670 = vmatprep.subr.mxu0 0.0
      %1671 = vmatpush1.msra.mxu0 0.0
      %1672 = vmatprep.subr.mxu0 0.0
      %1673 = vmatpush1.msra.mxu0 0.0
      %1674 = vmatprep.subr.mxu0 0.0
      %1675 = vmatpush1.msra.mxu0 0.0
      %1676 = vmatprep.subr.mxu0 0.0
      %1677 = vmatpush1.msra.mxu0 0.0
      %1678 = vmatprep.subr.mxu0 0.0
      %1679 = vmatpush1.msra.mxu0 0.0
      %1680 = vmatprep.subr.mxu0 0.0
      %1681 = vmatpush1.msra.mxu0 0.0
      %1682 = vmatprep.subr.mxu0 0.0
      %1683 = vmatpush1.msra.mxu0 0.0
      %1684 = vmatprep.subr.mxu0 0.0
      %1685 = vmatpush1.msra.mxu0 0.0
      %1686 = vmatprep.subr.mxu0 0.0
      %1687 = vmatpush1.msra.mxu0 0.0
      %1688 = vmatprep.subr.mxu0 0.0
      %1689 = vmatpush1.msra.mxu0 0.0
      %1690 = vmatprep.subr.mxu0 0.0
      %1691 = vmatpush1.msra.mxu0 0.0
      %1692 = vmatprep.subr.mxu0 0.0
      %1693 = vmatpush1.msra.mxu0 0.0
      %1694 = vmatprep.mubr.f32.mxu0 0.0
      %1695 = vmatmul.mubr.f32.gmra.mrb[0].mxu0 %v1557
      %v1696 = vpop.f32.mrb[0].mxu0
      %v1697 = vadd.f32 0.0, %v1696
      %v1698 = vpop.f32.mrb[0].mxu0
      %1699 = vdwg.mxu0
      %v1701 = vrot.slane %v1626, 3
      %v1703 = vadd.f32 %v579, %v1701
      %v1704 = vxor.u32 %v1703, 2147483648
      %v1705 = vmul.f32 %v1704, 1.442695
      %v1706 = vpow.pop %v1705
      %v1707 = vadd.f32 %v1706, 1.0
      %v1708 = vrcp.pop %v1707
      %v1709 = vmul.f32 1.0, %v1708
      %v1711 = vrot.slane %v1628, 3
      %v1713 = vadd.f32 %v581, %v1711
      %v1714 = vxor.u32 %v1713, 2147483648
      %v1715 = vmul.f32 %v1714, 1.442695
      %v1716 = vpow.pop %v1715
      %v1717 = vadd.f32 %v1716, 1.0
      %v1718 = vrcp.pop %v1717
      %v1719 = vmul.f32 1.0, %v1718
      %v1720 = vadd.f32 %v1697, %v677
      %v1722 = vrot.slane %v1720, 3
      %v1724 = vmul.f32 %v1709, %v1722
      %v1725 = vadd.f32 %v650, %v1724
      %v1726 = vtanh.pop %v1725
      %v1727 = vsub.f32 1.0, %v1719
      %v1728 = vmul.f32 %v1727, %v1726
      %v1729 = vrot.slane %v1554, 7
      %v1731 = vmul.f32 %v1719, %v1729
      %v1732 = vadd.f32 %v1728, %v1731
      %v1734 = vrot.slane %v1732, 5
      %v1735 = vsel %vm508, %v1734, 0
      %1737 = vmatprep.subr.mxu0 %v654
      %1738 = vmatpush1.msra.mxu0 %v653
      %1739 = vmatprep.subr.mxu0 %v657
      %1740 = vmatpush1.msra.mxu0 %v656
      %1741 = vmatprep.subr.mxu0 %v660
      %1742 = vmatpush1.msra.mxu0 %v659
      %1743 = vmatprep.subr.mxu0 %v663
      %1744 = vmatpush1.msra.mxu0 %v662
      %1745 = vmatprep.subr.mxu0 %v666
      %1746 = vmatpush1.msra.mxu0 %v665
      %1747 = vmatprep.subr.mxu0 %v669
      %1748 = vmatpush1.msra.mxu0 %v668
      %1749 = vmatprep.subr.mxu0 %v672
      %1750 = vmatpush1.msra.mxu0 %v671
      %1751 = vmatprep.subr.mxu0 %v675
      %1752 = vmatpush1.msra.mxu0 %v674
      %1753 = vmatprep.subr.mxu0 0.0
      %1754 = vmatpush1.msra.mxu0 0.0
      %1755 = vmatprep.subr.mxu0 0.0
      %1756 = vmatpush1.msra.mxu0 0.0
      %1757 = vmatprep.subr.mxu0 0.0
      %1758 = vmatpush1.msra.mxu0 0.0
      %1759 = vmatprep.subr.mxu0 0.0
      %1760 = vmatpush1.msra.mxu0 0.0
      %1761 = vmatprep.subr.mxu0 0.0
      %1762 = vmatpush1.msra.mxu0 0.0
      %1763 = vmatprep.subr.mxu0 0.0
      %1764 = vmatpush1.msra.mxu0 0.0
      %1765 = vmatprep.subr.mxu0 0.0
      %1766 = vmatpush1.msra.mxu0 0.0
      %1767 = vmatprep.subr.mxu0 0.0
      %1768 = vmatpush1.msra.mxu0 0.0
      %1769 = vmatprep.subr.mxu0 0.0
      %1770 = vmatpush1.msra.mxu0 0.0
      %1771 = vmatprep.subr.mxu0 0.0
      %1772 = vmatpush1.msra.mxu0 0.0
      %1773 = vmatprep.subr.mxu0 0.0
      %1774 = vmatpush1.msra.mxu0 0.0
      %1775 = vmatprep.subr.mxu0 0.0
      %1776 = vmatpush1.msra.mxu0 0.0
      %1777 = vmatprep.subr.mxu0 0.0
      %1778 = vmatpush1.msra.mxu0 0.0
      %1779 = vmatprep.subr.mxu0 0.0
      %1780 = vmatpush1.msra.mxu0 0.0
      %1781 = vmatprep.subr.mxu0 0.0
      %1782 = vmatpush1.msra.mxu0 0.0
      %1783 = vmatprep.subr.mxu0 0.0
      %1784 = vmatpush1.msra.mxu0 0.0
      %1785 = vmatprep.subr.mxu0 0.0
      %1786 = vmatpush1.msra.mxu0 0.0
      %1787 = vmatprep.subr.mxu0 0.0
      %1788 = vmatpush1.msra.mxu0 0.0
      %1789 = vmatprep.subr.mxu0 0.0
      %1790 = vmatpush1.msra.mxu0 0.0
      %1791 = vmatprep.subr.mxu0 0.0
      %1792 = vmatpush1.msra.mxu0 0.0
      %1793 = vmatprep.subr.mxu0 0.0
      %1794 = vmatpush1.msra.mxu0 0.0
      %1795 = vmatprep.subr.mxu0 0.0
      %1796 = vmatpush1.msra.mxu0 0.0
      %1797 = vmatprep.subr.mxu0 0.0
      %1798 = vmatpush1.msra.mxu0 0.0
      %1799 = vmatprep.subr.mxu0 0.0
      %1800 = vmatpush1.msra.mxu0 0.0
      %1801 = vmatprep.mubr.f32.mxu0 0.0
      %1802 = vmatmul.mubr.f32.gmra.mrb[0].mxu0 %v1735
      %v1803 = vpop.f32.mrb[0].mxu0
      %v1804 = vadd.f32 0.0, %v1803
      %v1805 = vpop.f32.mrb[0].mxu0
      %v1806 = vadd.f32 0.0, %v1805
      %1807 = vdwg.mxu0
      %1808 = vmatprep.subr.mxu0 0.0
      %1809 = vmatpush1.msra.mxu0 %v655
      %1810 = vmatprep.subr.mxu0 0.0
      %1811 = vmatpush1.msra.mxu0 %v658
      %1812 = vmatprep.subr.mxu0 0.0
      %1813 = vmatpush1.msra.mxu0 %v661
      %1814 = vmatprep.subr.mxu0 0.0
      %1815 = vmatpush1.msra.mxu0 %v664
      %1816 = vmatprep.subr.mxu0 0.0
      %1817 = vmatpush1.msra.mxu0 %v667
      %1818 = vmatprep.subr.mxu0 0.0
      %1819 = vmatpush1.msra.mxu0 %v670
      %1820 = vmatprep.subr.mxu0 0.0
      %1821 = vmatpush1.msra.mxu0 %v673
      %1822 = vmatprep.subr.mxu0 0.0
      %1823 = vmatpush1.msra.mxu0 %v676
      %1824 = vmatprep.subr.mxu0 0.0
      %1825 = vmatpush1.msra.mxu0 0.0
      %1826 = vmatprep.subr.mxu0 0.0
      %1827 = vmatpush1.msra.mxu0 0.0
      %1828 = vmatprep.subr.mxu0 0.0
      %1829 = vmatpush1.msra.mxu0 0.0
      %1830 = vmatprep.subr.mxu0 0.0
      %1831 = vmatpush1.msra.mxu0 0.0
      %1832 = vmatprep.subr.mxu0 0.0
      %1833 = vmatpush1.msra.mxu0 0.0
      %1834 = vmatprep.subr.mxu0 0.0
      %1835 = vmatpush1.msra.mxu0 0.0
      %1836 = vmatprep.subr.mxu0 0.0
      %1837 = vmatpush1.msra.mxu0 0.0
      %1838 = vmatprep.subr.mxu0 0.0
      %1839 = vmatpush1.msra.mxu0 0.0
      %1840 = vmatprep.subr.mxu0 0.0
      %1841 = vmatpush1.msra.mxu0 0.0
      %1842 = vmatprep.subr.mxu0 0.0
      %1843 = vmatpush1.msra.mxu0 0.0
      %1844 = vmatprep.subr.mxu0 0.0
      %1845 = vmatpush1.msra.mxu0 0.0
      %1846 = vmatprep.subr.mxu0 0.0
      %1847 = vmatpush1.msra.mxu0 0.0
      %1848 = vmatprep.subr.mxu0 0.0
      %1849 = vmatpush1.msra.mxu0 0.0
      %1850 = vmatprep.subr.mxu0 0.0
      %1851 = vmatpush1.msra.mxu0 0.0
      %1852 = vmatprep.subr.mxu0 0.0
      %1853 = vmatpush1.msra.mxu0 0.0
      %1854 = vmatprep.subr.mxu0 0.0
      %1855 = vmatpush1.msra.mxu0 0.0
      %1856 = vmatprep.subr.mxu0 0.0
      %1857 = vmatpush1.msra.mxu0 0.0
      %1858 = vmatprep.subr.mxu0 0.0
      %1859 = vmatpush1.msra.mxu0 0.0
      %1860 = vmatprep.subr.mxu0 0.0
      %1861 = vmatpush1.msra.mxu0 0.0
      %1862 = vmatprep.subr.mxu0 0.0
      %1863 = vmatpush1.msra.mxu0 0.0
      %1864 = vmatprep.subr.mxu0 0.0
      %1865 = vmatpush1.msra.mxu0 0.0
      %1866 = vmatprep.subr.mxu0 0.0
      %1867 = vmatpush1.msra.mxu0 0.0
      %1868 = vmatprep.subr.mxu0 0.0
      %1869 = vmatpush1.msra.mxu0 0.0
      %1870 = vmatprep.subr.mxu0 0.0
      %1871 = vmatpush1.msra.mxu0 0.0
      %1872 = vmatprep.mubr.f32.mxu0 0.0
      %1873 = vmatmul.mubr.f32.gmra.mrb[0].mxu0 %v1735
      %v1874 = vpop.f32.mrb[0].mxu0
      %v1875 = vadd.f32 0.0, %v1874
      %v1876 = vpop.f32.mrb[0].mxu0
      %1877 = vdwg.mxu0
      %v1879 = vrot.slane %v1804, 2
      %v1881 = vadd.f32 %v579, %v1879
      %v1882 = vxor.u32 %v1881, 2147483648
      %v1883 = vmul.f32 %v1882, 1.442695
      %v1884 = vpow.pop %v1883
      %v1885 = vadd.f32 %v1884, 1.0
      %v1886 = vrcp.pop %v1885
      %v1887 = vmul.f32 1.0, %v1886
      %v1889 = vrot.slane %v1806, 2
      %v1891 = vadd.f32 %v581, %v1889
      %v1892 = vxor.u32 %v1891, 2147483648
      %v1893 = vmul.f32 %v1892, 1.442695
      %v1894 = vpow.pop %v1893
      %v1895 = vadd.f32 %v1894, 1.0
      %v1896 = vrcp.pop %v1895
      %v1897 = vmul.f32 1.0, %v1896
      %v1898 = vadd.f32 %v1875, %v677
      %v1900 = vrot.slane %v1898, 2
      %v1902 = vmul.f32 %v1887, %v1900
      %v1903 = vadd.f32 %v650, %v1902
      %v1904 = vtanh.pop %v1903
      %v1905 = vsub.f32 1.0, %v1897
      %v1906 = vmul.f32 %v1905, %v1904
      %v1907 = vrot.slane %v1732, 7
      %v1909 = vmul.f32 %v1897, %v1907
      %v1910 = vadd.f32 %v1906, %v1909
      %v1912 = vrot.slane %v1910, 6
      %v1913 = vsel %vm508, %v1912, 0
      %1915 = vmatprep.subr.mxu0 %v654
      %1916 = vmatpush1.msra.mxu0 %v653
      %1917 = vmatprep.subr.mxu0 %v657
      %1918 = vmatpush1.msra.mxu0 %v656
      %1919 = vmatprep.subr.mxu0 %v660
      %1920 = vmatpush1.msra.mxu0 %v659
      %1921 = vmatprep.subr.mxu0 %v663
      %1922 = vmatpush1.msra.mxu0 %v662
      %1923 = vmatprep.subr.mxu0 %v666
      %1924 = vmatpush1.msra.mxu0 %v665
      %1925 = vmatprep.subr.mxu0 %v669
      %1926 = vmatpush1.msra.mxu0 %v668
      %1927 = vmatprep.subr.mxu0 %v672
      %1928 = vmatpush1.msra.mxu0 %v671
      %1929 = vmatprep.subr.mxu0 %v675
      %1930 = vmatpush1.msra.mxu0 %v674
      %1931 = vmatprep.subr.mxu0 0.0
      %1932 = vmatpush1.msra.mxu0 0.0
      %1933 = vmatprep.subr.mxu0 0.0
      %1934 = vmatpush1.msra.mxu0 0.0
      %1935 = vmatprep.subr.mxu0 0.0
      %1936 = vmatpush1.msra.mxu0 0.0
      %1937 = vmatprep.subr.mxu0 0.0
      %1938 = vmatpush1.msra.mxu0 0.0
      %1939 = vmatprep.subr.mxu0 0.0
      %1940 = vmatpush1.msra.mxu0 0.0
      %1941 = vmatprep.subr.mxu0 0.0
      %1942 = vmatpush1.msra.mxu0 0.0
      %1943 = vmatprep.subr.mxu0 0.0
      %1944 = vmatpush1.msra.mxu0 0.0
      %1945 = vmatprep.subr.mxu0 0.0
      %1946 = vmatpush1.msra.mxu0 0.0
      %1947 = vmatprep.subr.mxu0 0.0
      %1948 = vmatpush1.msra.mxu0 0.0
      %1949 = vmatprep.subr.mxu0 0.0
      %1950 = vmatpush1.msra.mxu0 0.0
      %1951 = vmatprep.subr.mxu0 0.0
      %1952 = vmatpush1.msra.mxu0 0.0
      %1953 = vmatprep.subr.mxu0 0.0
      %1954 = vmatpush1.msra.mxu0 0.0
      %1955 = vmatprep.subr.mxu0 0.0
      %1956 = vmatpush1.msra.mxu0 0.0
      %1957 = vmatprep.subr.mxu0 0.0
      %1958 = vmatpush1.msra.mxu0 0.0
      %1959 = vmatprep.subr.mxu0 0.0
      %1960 = vmatpush1.msra.mxu0 0.0
      %1961 = vmatprep.subr.mxu0 0.0
      %1962 = vmatpush1.msra.mxu0 0.0
      %1963 = vmatprep.subr.mxu0 0.0
      %1964 = vmatpush1.msra.mxu0 0.0
      %1965 = vmatprep.subr.mxu0 0.0
      %1966 = vmatpush1.msra.mxu0 0.0
      %1967 = vmatprep.subr.mxu0 0.0
      %1968 = vmatpush1.msra.mxu0 0.0
      %1969 = vmatprep.subr.mxu0 0.0
      %1970 = vmatpush1.msra.mxu0 0.0
      %1971 = vmatprep.subr.mxu0 0.0
      %1972 = vmatpush1.msra.mxu0 0.0
      %1973 = vmatprep.subr.mxu0 0.0
      %1974 = vmatpush1.msra.mxu0 0.0
      %1975 = vmatprep.subr.mxu0 0.0
      %1976 = vmatpush1.msra.mxu0 0.0
      %1977 = vmatprep.subr.mxu0 0.0
      %1978 = vmatpush1.msra.mxu0 0.0
      %1979 = vmatprep.mubr.f32.mxu0 0.0
      %1980 = vmatmul.mubr.f32.gmra.mrb[0].mxu0 %v1913
      %v1981 = vpop.f32.mrb[0].mxu0
      %v1982 = vadd.f32 0.0, %v1981
      %v1983 = vpop.f32.mrb[0].mxu0
      %v1984 = vadd.f32 0.0, %v1983
      %1985 = vdwg.mxu0
      %1986 = vmatprep.subr.mxu0 0.0
      %1987 = vmatpush1.msra.mxu0 %v655
      %1988 = vmatprep.subr.mxu0 0.0
      %1989 = vmatpush1.msra.mxu0 %v658
      %1990 = vmatprep.subr.mxu0 0.0
      %1991 = vmatpush1.msra.mxu0 %v661
      %1992 = vmatprep.subr.mxu0 0.0
      %1993 = vmatpush1.msra.mxu0 %v664
      %1994 = vmatprep.subr.mxu0 0.0
      %1995 = vmatpush1.msra.mxu0 %v667
      %1996 = vmatprep.subr.mxu0 0.0
      %1997 = vmatpush1.msra.mxu0 %v670
      %1998 = vmatprep.subr.mxu0 0.0
      %1999 = vmatpush1.msra.mxu0 %v673
      %2000 = vmatprep.subr.mxu0 0.0
      %2001 = vmatpush1.msra.mxu0 %v676
      %2002 = vmatprep.subr.mxu0 0.0
      %2003 = vmatpush1.msra.mxu0 0.0
      %2004 = vmatprep.subr.mxu0 0.0
      %2005 = vmatpush1.msra.mxu0 0.0
      %2006 = vmatprep.subr.mxu0 0.0
      %2007 = vmatpush1.msra.mxu0 0.0
      %2008 = vmatprep.subr.mxu0 0.0
      %2009 = vmatpush1.msra.mxu0 0.0
      %2010 = vmatprep.subr.mxu0 0.0
      %2011 = vmatpush1.msra.mxu0 0.0
      %2012 = vmatprep.subr.mxu0 0.0
      %2013 = vmatpush1.msra.mxu0 0.0
      %2014 = vmatprep.subr.mxu0 0.0
      %2015 = vmatpush1.msra.mxu0 0.0
      %2016 = vmatprep.subr.mxu0 0.0
      %2017 = vmatpush1.msra.mxu0 0.0
      %2018 = vmatprep.subr.mxu0 0.0
      %2019 = vmatpush1.msra.mxu0 0.0
      %2020 = vmatprep.subr.mxu0 0.0
      %2021 = vmatpush1.msra.mxu0 0.0
      %2022 = vmatprep.subr.mxu0 0.0
      %2023 = vmatpush1.msra.mxu0 0.0
      %2024 = vmatprep.subr.mxu0 0.0
      %2025 = vmatpush1.msra.mxu0 0.0
      %2026 = vmatprep.subr.mxu0 0.0
      %2027 = vmatpush1.msra.mxu0 0.0
      %2028 = vmatprep.subr.mxu0 0.0
      %2029 = vmatpush1.msra.mxu0 0.0
      %2030 = vmatprep.subr.mxu0 0.0
      %2031 = vmatpush1.msra.mxu0 0.0
      %2032 = vmatprep.subr.mxu0 0.0
      %2033 = vmatpush1.msra.mxu0 0.0
      %2034 = vmatprep.subr.mxu0 0.0
      %2035 = vmatpush1.msra.mxu0 0.0
      %2036 = vmatprep.subr.mxu0 0.0
      %2037 = vmatpush1.msra.mxu0 0.0
      %2038 = vmatprep.subr.mxu0 0.0
      %2039 = vmatpush1.msra.mxu0 0.0
      %2040 = vmatprep.subr.mxu0 0.0
      %2041 = vmatpush1.msra.mxu0 0.0
      %2042 = vmatprep.subr.mxu0 0.0
      %2043 = vmatpush1.msra.mxu0 0.0
      %2044 = vmatprep.subr.mxu0 0.0
      %2045 = vmatpush1.msra.mxu0 0.0
      %2046 = vmatprep.subr.mxu0 0.0
      %2047 = vmatpush1.msra.mxu0 0.0
      %2048 = vmatprep.subr.mxu0 0.0
      %2049 = vmatpush1.msra.mxu0 0.0
      %2050 = vmatprep.mubr.f32.mxu0 0.0
      %2051 = vmatmul.mubr.f32.gmra.mrb[0].mxu0 %v1913
      %v2052 = vpop.f32.mrb[0].mxu0
      %v2053 = vadd.f32 0.0, %v2052
      %v2054 = vpop.f32.mrb[0].mxu0
      %2055 = vdwg.mxu0
      %v2057 = vrot.slane %v1982, 1
      %v2059 = vadd.f32 %v579, %v2057
      %v2060 = vxor.u32 %v2059, 2147483648
      %v2061 = vmul.f32 %v2060, 1.442695
      %v2062 = vpow.pop %v2061
      %v2063 = vadd.f32 %v2062, 1.0
      %v2064 = vrcp.pop %v2063
      %v2065 = vmul.f32 1.0, %v2064
      %v2067 = vrot.slane %v1984, 1
      %v2069 = vadd.f32 %v581, %v2067
      %v2070 = vxor.u32 %v2069, 2147483648
      %v2071 = vmul.f32 %v2070, 1.442695
      %v2072 = vpow.pop %v2071
      %v2073 = vadd.f32 %v2072, 1.0
      %v2074 = vrcp.pop %v2073
      %v2075 = vmul.f32 1.0, %v2074
      %v2076 = vadd.f32 %v2053, %v677
      %v2078 = vrot.slane %v2076, 1
      %v2080 = vmul.f32 %v2065, %v2078
      %v2081 = vadd.f32 %v650, %v2080
      %v2082 = vtanh.pop %v2081
      %v2083 = vsub.f32 1.0, %v2075
      %v2084 = vmul.f32 %v2083, %v2082
      %v2085 = vrot.slane %v1910, 7
      %v2087 = vmul.f32 %v2075, %v2085
      %v2088 = vadd.f32 %v2084, %v2087
      %v2089 = vlaneseq
      %v2090 = vand.u32 %v2089, 127
      %vm2091 = vcmp.lt.s32.totalorder %v2090, 32
      %v2093 = vrot.slane %v2088, 7
      %v2095 = vsel %vm2091, %v843, %v2093
      %vm2096 = vcmask 516096
      %2097 = vst.msk [vmem:[#allocation2] sm:$0x1] %vm2096, %v2095
      %v2098 = vrot.slane %v1910, 5
      %v2100 = vsel %vm2091, %v1020, %v2098
      %vm2101 = vcmask 517121
      %2102 = vst.msk [vmem:[#allocation2] sm:$0x2] %vm2101, %v2100
      %v2103 = vrot.slane %v1732, 3
      %v2105 = vsel %vm2091, %v1198, %v2103
      %vm2106 = vcmask 518146
      %2107 = vst.msk [vmem:[#allocation2] sm:$0x4] %vm2106, %v2105
      %v2108 = vrot.slane %v1554, 1
      %v2110 = vsel %vm2091, %v1376, %v2108
      %vm2111 = vcmask 519171
      %2112 = vst.msk [vmem:[#allocation2] sm:$0x8] %vm2111, %v2110
      %v2113 = vsel %vm2091, %v1554, %v1551
      %vm2114 = vcmask 520196
      %2115 = vst.msk [vmem:[#allocation2] sm:$0x10] %vm2114, %v2113
      %v2116 = vrot.slane %v1198, 5
      %v2118 = vsel %vm2091, %v1732, %v2116
      %vm2119 = vcmask 521221
      %2120 = vst.msk [vmem:[#allocation2] sm:$0x20] %vm2119, %v2118
      %v2121 = vrot.slane %v1020, 3
      %v2123 = vsel %vm2091, %v1910, %v2121
      %vm2124 = vcmask 522246
      %2125 = vst.msk [vmem:[#allocation2] sm:$0x40] %vm2124, %v2123
      %v2126 = vrot.slane %v843, 1
      %v2128 = vsel %vm2091, %v2088, %v2126
      %vm2129 = vcmask 523271
      %2130 = vst.msk [vmem:[#allocation2] sm:$0x80] %vm2129, %v2128
      %v2131 = vld [vmem:[#allocation2] sm:$0xff]
      %v2132 = vld [vmem:[%s457] sm:$0x1]
      %v2133 = vld [vmem:[%s460] sm:$0x1]
      %v2134 = vlaneseq
      %v2135 = vshrl.u32 %v2134, 7
      %v2136 = vlaneseq
      %v2137 = vshrl.u32 %v2136, 7
      %v2138 = vsub.s32 0, %v2137
      %v2139 = vrot.slane %v2132, %v2138
      %vm2140 = vcmp.ge.s32.totalorder %v2135, %v2139
      %v2141 = vlaneseq
      %v2142 = vshrl.u32 %v2141, 7
      %v2143 = vsub.s32 0, %v2142
      %v2144 = vrot.slane %v2133, %v2143
      %vm2145 = vcmp.le.s32.totalorder %v2135, %v2144
      %vm2146 = vmand %vm2140, %vm2145
      %v2147 = vsub.s32 %v2133, %v2132
      %v2148 = vadd.s32 %v2147, 1
      %v2149 = vcvt.s32.f32 %v2148
      %v2150 = vsel %vm2146, 1, 0
      %2151 = vset.pattern.permute.xlu0 0
      %2152 = vperm.xlu0 %2151, %v2150
      %v2153 = vpop.permute.xlu0 %2152
      %vm2154 = vcmp.eq.s32.totalorder %v2153, 1
      %v2155 = vsel %vm2154, %v2131, 0.0
      %v2156 = vsel %vm508, %v2155, 0.0
      %v2157 = vrot.slane %v2156, 4
      %v2158 = vadd.f32 %v2156, %v2157
      %v2159 = vrot.slane %v2158, 2
      %v2160 = vadd.f32 %v2158, %v2159
      %v2161 = vrot.slane %v2160, 1
      %v2162 = vadd.f32 %v2160, %v2161
      %2164 = vset.pattern.permute.xlu0 0
      %2165 = vperm.xlu0 %2164, %v2149
      %v2166 = vpop.permute.xlu0 %2165
      %v2168 = vlaneseq
      %v2169 = vshrl.u32 %v2168, 7
      %v2170 = vsub.s32 0, %v2169
      %v2171 = vrot.slane %v2166, %v2170
      %v2172 = vrcp.pop %v2171
      %v2173 = vmul.f32 %v2162, %v2172
      %v2174 = vld [vmem:[%s7] sm:$0xff]
      %v2175 = vld [vmem:[%s7 + $0x8] sm:$0xff]
      %v2176 = vld [vmem:[%s7 + $0x10] sm:$0xff]
      %v2177 = vld [vmem:[%s7 + $0x18] sm:$0xff]
      %v2178 = vld [vmem:[%s7 + $0x20] sm:$0xff]
      %v2179 = vld [vmem:[%s7 + $0x28] sm:$0xff]
      %v2180 = vld [vmem:[%s7 + $0x30] sm:$0xff]
      %v2181 = vld [vmem:[%s7 + $0x38] sm:$0xff]
      %v2183 = vsel %vm508, %v2131, 0
      %2185 = vmatprep.subr.mxu0 0.0
      %2186 = vmatpush1.msra.mxu0 %v2174
      %2187 = vmatprep.subr.mxu0 0.0
      %2188 = vmatpush1.msra.mxu0 %v2175
      %2189 = vmatprep.subr.mxu0 0.0
      %2190 = vmatpush1.msra.mxu0 %v2176
      %2191 = vmatprep.subr.mxu0 0.0
      %2192 = vmatpush1.msra.mxu0 %v2177
      %2193 = vmatprep.subr.mxu0 0.0
      %2194 = vmatpush1.msra.mxu0 %v2178
      %2195 = vmatprep.subr.mxu0 0.0
      %2196 = vmatpush1.msra.mxu0 %v2179
      %2197 = vmatprep.subr.mxu0 0.0
      %2198 = vmatpush1.msra.mxu0 %v2180
      %2199 = vmatprep.subr.mxu0 0.0
      %2200 = vmatpush1.msra.mxu0 %v2181
      %2201 = vmatprep.subr.mxu0 0.0
      %2202 = vmatpush1.msra.mxu0 0.0
      %2203 = vmatprep.subr.mxu0 0.0
      %2204 = vmatpush1.msra.mxu0 0.0
      %2205 = vmatprep.subr.mxu0 0.0
      %2206 = vmatpush1.msra.mxu0 0.0
      %2207 = vmatprep.subr.mxu0 0.0
      %2208 = vmatpush1.msra.mxu0 0.0
      %2209 = vmatprep.subr.mxu0 0.0
      %2210 = vmatpush1.msra.mxu0 0.0
      %2211 = vmatprep.subr.mxu0 0.0
      %2212 = vmatpush1.msra.mxu0 0.0
      %2213 = vmatprep.subr.mxu0 0.0
      %2214 = vmatpush1.msra.mxu0 0.0
      %2215 = vmatprep.subr.mxu0 0.0
      %2216 = vmatpush1.msra.mxu0 0.0
      %2217 = vmatprep.subr.mxu0 0.0
      %2218 = vmatpush1.msra.mxu0 0.0
      %2219 = vmatprep.subr.mxu0 0.0
      %2220 = vmatpush1.msra.mxu0 0.0
      %2221 = vmatprep.subr.mxu0 0.0
      %2222 = vmatpush1.msra.mxu0 0.0
      %2223 = vmatprep.subr.mxu0 0.0
      %2224 = vmatpush1.msra.mxu0 0.0
      %2225 = vmatprep.subr.mxu0 0.0
      %2226 = vmatpush1.msra.mxu0 0.0
      %2227 = vmatprep.subr.mxu0 0.0
      %2228 = vmatpush1.msra.mxu0 0.0
      %2229 = vmatprep.subr.mxu0 0.0
      %2230 = vmatpush1.msra.mxu0 0.0
      %2231 = vmatprep.subr.mxu0 0.0
      %2232 = vmatpush1.msra.mxu0 0.0
      %2233 = vmatprep.subr.mxu0 0.0
      %2234 = vmatpush1.msra.mxu0 0.0
      %2235 = vmatprep.subr.mxu0 0.0
      %2236 = vmatpush1.msra.mxu0 0.0
      %2237 = vmatprep.subr.mxu0 0.0
      %2238 = vmatpush1.msra.mxu0 0.0
      %2239 = vmatprep.subr.mxu0 0.0
      %2240 = vmatpush1.msra.mxu0 0.0
      %2241 = vmatprep.subr.mxu0 0.0
      %2242 = vmatpush1.msra.mxu0 0.0
      %2243 = vmatprep.subr.mxu0 0.0
      %2244 = vmatpush1.msra.mxu0 0.0
      %2245 = vmatprep.subr.mxu0 0.0
      %2246 = vmatpush1.msra.mxu0 0.0
      %2247 = vmatprep.subr.mxu0 0.0
      %2248 = vmatpush1.msra.mxu0 0.0
      %2249 = vmatprep.mubr.f32.mxu0 0.0
      %2250 = vmatmul.mubr.f32.gmra.mrb[0].mxu0 %v2183
      %v2251 = vpop.f32.mrb[0].mxu0
      %v2252 = vadd.f32 0.0, %v2251
      %v2253 = vpop.f32.mrb[0].mxu0
      %2254 = vdwg.mxu0
      %v2255 = vld [vmem:[%s8] sm:$0xff]
      %v2256 = vld [vmem:[%s8 + $0x8] sm:$0xff]
      %v2257 = vld [vmem:[%s8 + $0x10] sm:$0xff]
      %v2258 = vld [vmem:[%s8 + $0x18] sm:$0xff]
      %v2259 = vld [vmem:[%s8 + $0x20] sm:$0xff]
      %v2260 = vld [vmem:[%s8 + $0x28] sm:$0xff]
      %v2261 = vld [vmem:[%s8 + $0x30] sm:$0xff]
      %v2262 = vld [vmem:[%s8 + $0x38] sm:$0xff]
      %v2264 = vsel %vm508, %v2173, 0
      %2266 = vmatprep.subr.mxu0 0.0
      %2267 = vmatpush1.msra.mxu0 %v2255
      %2268 = vmatprep.subr.mxu0 0.0
      %2269 = vmatpush1.msra.mxu0 %v2256
      %2270 = vmatprep.subr.mxu0 0.0
      %2271 = vmatpush1.msra.mxu0 %v2257
      %2272 = vmatprep.subr.mxu0 0.0
      %2273 = vmatpush1.msra.mxu0 %v2258
      %2274 = vmatprep.subr.mxu0 0.0
      %2275 = vmatpush1.msra.mxu0 %v2259
      %2276 = vmatprep.subr.mxu0 0.0
      %2277 = vmatpush1.msra.mxu0 %v2260
      %2278 = vmatprep.subr.mxu0 0.0
      %2279 = vmatpush1.msra.mxu0 %v2261
      %2280 = vmatprep.subr.mxu0 0.0
      %2281 = vmatpush1.msra.mxu0 %v2262
      %2282 = vmatprep.subr.mxu0 0.0
      %2283 = vmatpush1.msra.mxu0 0.0
      %2284 = vmatprep.subr.mxu0 0.0
      %2285 = vmatpush1.msra.mxu0 0.0
      %2286 = vmatprep.subr.mxu0 0.0
      %2287 = vmatpush1.msra.mxu0 0.0
      %2288 = vmatprep.subr.mxu0 0.0
      %2289 = vmatpush1.msra.mxu0 0.0
      %2290 = vmatprep.subr.mxu0 0.0
      %2291 = vmatpush1.msra.mxu0 0.0
      %2292 = vmatprep.subr.mxu0 0.0
      %2293 = vmatpush1.msra.mxu0 0.0
      %2294 = vmatprep.subr.mxu0 0.0
      %2295 = vmatpush1.msra.mxu0 0.0
      %2296 = vmatprep.subr.mxu0 0.0
      %2297 = vmatpush1.msra.mxu0 0.0
      %2298 = vmatprep.subr.mxu0 0.0
      %2299 = vmatpush1.msra.mxu0 0.0
      %2300 = vmatprep.subr.mxu0 0.0
      %2301 = vmatpush1.msra.mxu0 0.0
      %2302 = vmatprep.subr.mxu0 0.0
      %2303 = vmatpush1.msra.mxu0 0.0
      %2304 = vmatprep.subr.mxu0 0.0
      %2305 = vmatpush1.msra.mxu0 0.0
      %2306 = vmatprep.subr.mxu0 0.0
      %2307 = vmatpush1.msra.mxu0 0.0
      %2308 = vmatprep.subr.mxu0 0.0
      %2309 = vmatpush1.msra.mxu0 0.0
      %2310 = vmatprep.subr.mxu0 0.0
      %2311 = vmatpush1.msra.mxu0 0.0
      %2312 = vmatprep.subr.mxu0 0.0
      %2313 = vmatpush1.msra.mxu0 0.0
      %2314 = vmatprep.subr.mxu0 0.0
      %2315 = vmatpush1.msra.mxu0 0.0
      %2316 = vmatprep.subr.mxu0 0.0
      %2317 = vmatpush1.msra.mxu0 0.0
      %2318 = vmatprep.subr.mxu0 0.0
      %2319 = vmatpush1.msra.mxu0 0.0
      %2320 = vmatprep.subr.mxu0 0.0
      %2321 = vmatpush1.msra.mxu0 0.0
      %2322 = vmatprep.subr.mxu0 0.0
      %2323 = vmatpush1.msra.mxu0 0.0
      %2324 = vmatprep.subr.mxu0 0.0
      %2325 = vmatpush1.msra.mxu0 0.0
      %2326 = vmatprep.subr.mxu0 0.0
      %2327 = vmatpush1.msra.mxu0 0.0
      %2328 = vmatprep.subr.mxu0 0.0
      %2329 = vmatpush1.msra.mxu0 0.0
      %2330 = vmatprep.mubr.f32.mxu0 0.0
      %2331 = vmatmul.mubr.f32.gmra.mrb[0].mxu0 %v2264
      %v2332 = vpop.f32.mrb[0].mxu0
      %v2333 = vadd.f32 0.0, %v2332
      %v2334 = vpop.f32.mrb[0].mxu0
      %2335 = vdwg.mxu0
      %v2336 = vlaneseq
      %v2337 = vshrl.u32 %v2336, 7
      %v2338 = vsub.s32 0, %v2337
      %v2339 = vrot.slane %v2333, %v2338
      %v2340 = vadd.f32 %v2252, %v2339
      %v2341 = vld [vmem:[%s9] sm:$0x1]
      %v2343 = vlaneseq
      %v2344 = vshrl.u32 %v2343, 7
      %v2345 = vsub.s32 0, %v2344
      %v2346 = vrot.slane %v2341, %v2345
      %v2348 = vadd.f32 %v2340, %v2346
      %v2349 = vtanh.pop %v2348
      %v2350 = vld [vmem:[%s10] sm:$0xff]
      %v2351 = vld [vmem:[%s10 + $0x8] sm:$0xff]
      %v2352 = vld [vmem:[%s10 + $0x10] sm:$0xff]
      %v2353 = vld [vmem:[%s10 + $0x18] sm:$0xff]
      %vm2354 = vcmask 261120
      %v2356 = vsel %vm2354, %v2350, 0
      %v2359 = vsel %vm2354, %v2351, 0
      %v2362 = vsel %vm2354, %v2352, 0
      %v2365 = vsel %vm2354, %v2353, 0
      %v2368 = vsel %vm2354, %v2349, 0
      %2370 = vmatprep.subr.mxu0 0.0
      %2371 = vmatpush1.xpose.msra.mxu0 %v2368
      %2372 = vmatprep.subr.mxu0 0.0
      %2373 = vmatpush1.xpose.msra.mxu0 0.0
      %2374 = vmatprep.subr.mxu0 0.0
      %2375 = vmatpush1.xpose.msra.mxu0 0.0
      %2376 = vmatprep.subr.mxu0 0.0
      %2377 = vmatpush1.xpose.msra.mxu0 0.0
      %2378 = vmatprep.subr.mxu0 0.0
      %2379 = vmatpush1.xpose.msra.mxu0 0.0
      %2380 = vmatprep.subr.mxu0 0.0
      %2381 = vmatpush1.xpose.msra.mxu0 0.0
      %2382 = vmatprep.subr.mxu0 0.0
      %2383 = vmatpush1.xpose.msra.mxu0 0.0
      %2384 = vmatprep.subr.mxu0 0.0
      %2385 = vmatpush1.xpose.msra.mxu0 0.0
      %2386 = vmatprep.subr.mxu0 0.0
      %2387 = vmatpush1.xpose.msra.mxu0 0.0
      %2388 = vmatprep.subr.mxu0 0.0
      %2389 = vmatpush1.xpose.msra.mxu0 0.0
      %2390 = vmatprep.subr.mxu0 0.0
      %2391 = vmatpush1.xpose.msra.mxu0 0.0
      %2392 = vmatprep.subr.mxu0 0.0
      %2393 = vmatpush1.xpose.msra.mxu0 0.0
      %2394 = vmatprep.subr.mxu0 0.0
      %2395 = vmatpush1.xpose.msra.mxu0 0.0
      %2396 = vmatprep.subr.mxu0 0.0
      %2397 = vmatpush1.xpose.msra.mxu0 0.0
      %2398 = vmatprep.subr.mxu0 0.0
      %2399 = vmatpush1.xpose.msra.mxu0 0.0
      %2400 = vmatprep.subr.mxu0 0.0
      %2401 = vmatpush1.xpose.msra.mxu0 0.0
      %2402 = vmatprep.subr.mxu0 0.0
      %2403 = vmatpush1.xpose.msra.mxu0 0.0
      %2404 = vmatprep.subr.mxu0 0.0
      %2405 = vmatpush1.xpose.msra.mxu0 0.0
      %2406 = vmatprep.subr.mxu0 0.0
      %2407 = vmatpush1.xpose.msra.mxu0 0.0
      %2408 = vmatprep.subr.mxu0 0.0
      %2409 = vmatpush1.xpose.msra.mxu0 0.0
      %2410 = vmatprep.subr.mxu0 0.0
      %2411 = vmatpush1.xpose.msra.mxu0 0.0
      %2412 = vmatprep.subr.mxu0 0.0
      %2413 = vmatpush1.xpose.msra.mxu0 0.0
      %2414 = vmatprep.subr.mxu0 0.0
      %2415 = vmatpush1.xpose.msra.mxu0 0.0
      %2416 = vmatprep.subr.mxu0 0.0
      %2417 = vmatpush1.xpose.msra.mxu0 0.0
      %2418 = vmatprep.subr.mxu0 0.0
      %2419 = vmatpush1.xpose.msra.mxu0 0.0
      %2420 = vmatprep.subr.mxu0 0.0
      %2421 = vmatpush1.xpose.msra.mxu0 0.0
      %2422 = vmatprep.subr.mxu0 0.0
      %2423 = vmatpush1.xpose.msra.mxu0 0.0
      %2424 = vmatprep.subr.mxu0 0.0
      %2425 = vmatpush1.xpose.msra.mxu0 0.0
      %2426 = vmatprep.subr.mxu0 0.0
      %2427 = vmatpush1.xpose.msra.mxu0 0.0
      %2428 = vmatprep.subr.mxu0 0.0
      %2429 = vmatpush1.xpose.msra.mxu0 0.0
      %2430 = vmatprep.subr.mxu0 0.0
      %2431 = vmatpush1.xpose.msra.mxu0 0.0
      %2432 = vmatprep.subr.mxu0 0.0
      %2433 = vmatpush1.xpose.msra.mxu0 0.0
      %2434 = vmatprep.mubr.f32.mxu0 0.0
      %2435 = vmatmul.mubr.f32.gmra.mrb[0].mxu0 %v2356
      %v2436 = vpop.f32.mrb[0].mxu0
      %v2437 = vadd.f32 0.0, %v2436
      %v2438 = vpop.f32.mrb[0].mxu0
      %2439 = vmatprep.mubr.f32.mxu0 0.0
      %2440 = vmatmul.mubr.f32.gmra.mrb[0].mxu0 %v2359
      %v2441 = vpop.f32.mrb[0].mxu0
      %v2442 = vadd.f32 0.0, %v2441
      %v2443 = vpop.f32.mrb[0].mxu0
      %2444 = vmatprep.mubr.f32.mxu0 0.0
      %2445 = vmatmul.mubr.f32.gmra.mrb[0].mxu0 %v2362
      %v2446 = vpop.f32.mrb[0].mxu0
      %v2447 = vadd.f32 0.0, %v2446
      %v2448 = vpop.f32.mrb[0].mxu0
      %2449 = vmatprep.mubr.f32.mxu0 0.0
      %2450 = vmatmul.mubr.f32.gmra.mrb[0].mxu0 %v2365
      %v2451 = vpop.f32.mrb[0].mxu0
      %v2452 = vadd.f32 0.0, %v2451
      %v2453 = vpop.f32.mrb[0].mxu0
      %2454 = vdwg.mxu0
      %vm2455 = vcmask 64512
      %v2456 = vsel %vm2455, %v2437, -inf
      %2457 = vmax.xlane.f32.xlu0 %v2456
      %v2458 = vpop.xlane.xlu0 %2457
      %v2459 = vsel %vm2455, %v2442, -inf
      %2460 = vmax.xlane.f32.xlu0 %v2459
      %v2461 = vpop.xlane.xlu0 %2460
      %v2462 = vsel %vm2455, %v2447, -inf
      %2463 = vmax.xlane.f32.xlu0 %v2462
      %v2464 = vpop.xlane.xlu0 %2463
      %v2465 = vsel %vm2455, %v2452, -inf
      %2466 = vmax.xlane.f32.xlu0 %v2465
      %v2467 = vpop.xlane.xlu0 %2466
      %v2468 = vsub.f32 %v2437, %v2458
      %v2469 = vsub.f32 %v2442, %v2461
      %v2470 = vsub.f32 %v2447, %v2464
      %v2471 = vsub.f32 %v2452, %v2467
      %v2472 = vmul.f32 %v2468, 1.442695
      %v2473 = vpow.pop %v2472
      %v2474 = vmul.f32 %v2469, 1.442695
      %v2475 = vpow.pop %v2474
      %v2476 = vmul.f32 %v2470, 1.442695
      %v2477 = vpow.pop %v2476
      %v2478 = vmul.f32 %v2471, 1.442695
      %v2479 = vpow.pop %v2478
      %v2480 = vsel %vm2455, %v2473, 0.0
      %2481 = vadd.xlane.f32.xlu0 %v2480
      %v2482 = vpop.xlane.xlu0 %2481
      %v2483 = vsel %vm2455, %v2475, 0.0
      %2484 = vadd.xlane.f32.xlu0 %v2483
      %v2485 = vpop.xlane.xlu0 %2484
      %v2486 = vsel %vm2455, %v2477, 0.0
      %2487 = vadd.xlane.f32.xlu0 %v2486
      %v2488 = vpop.xlane.xlu0 %2487
      %v2489 = vsel %vm2455, %v2479, 0.0
      %2490 = vadd.xlane.f32.xlu0 %v2489
      %v2491 = vpop.xlane.xlu0 %2490
      %v2492 = vrcp.pop %v2482
      %v2493 = vrcp.pop %v2485
      %v2494 = vrcp.pop %v2488
      %v2495 = vrcp.pop %v2491
      %v2496 = vmul.f32 %v2473, %v2492
      %v2497 = vmul.f32 %v2475, %v2493
      %v2498 = vmul.f32 %v2477, %v2494
      %v2499 = vmul.f32 %v2479, %v2495
      %v2501 = vsel %vm2455, %v2496, 0
      %v2504 = vsel %vm2455, %v2497, 0
      %v2507 = vsel %vm2455, %v2498, 0
      %v2510 = vsel %vm2455, %v2499, 0
      %2512 = vmatprep.subr.mxu0 0.0
      %2513 = vmatpush1.msra.mxu0 %v2131
      %2514 = vmatprep.subr.mxu0 0.0
      %2515 = vmatpush1.msra.mxu0 0.0
      %2516 = vmatprep.subr.mxu0 0.0
      %2517 = vmatpush1.msra.mxu0 0.0
      %2518 = vmatprep.subr.mxu0 0.0
      %2519 = vmatpush1.msra.mxu0 0.0
      %2520 = vmatprep.subr.mxu0 0.0
      %2521 = vmatpush1.msra.mxu0 0.0
      %2522 = vmatprep.subr.mxu0 0.0
      %2523 = vmatpush1.msra.mxu0 0.0
      %2524 = vmatprep.subr.mxu0 0.0
      %2525 = vmatpush1.msra.mxu0 0.0
      %2526 = vmatprep.subr.mxu0 0.0
      %2527 = vmatpush1.msra.mxu0 0.0
      %2528 = vmatprep.subr.mxu0 0.0
      %2529 = vmatpush1.msra.mxu0 0.0
      %2530 = vmatprep.subr.mxu0 0.0
      %2531 = vmatpush1.msra.mxu0 0.0
      %2532 = vmatprep.subr.mxu0 0.0
      %2533 = vmatpush1.msra.mxu0 0.0
      %2534 = vmatprep.subr.mxu0 0.0
      %2535 = vmatpush1.msra.mxu0 0.0
      %2536 = vmatprep.subr.mxu0 0.0
      %2537 = vmatpush1.msra.mxu0 0.0
      %2538 = vmatprep.subr.mxu0 0.0
      %2539 = vmatpush1.msra.mxu0 0.0
      %2540 = vmatprep.subr.mxu0 0.0
      %2541 = vmatpush1.msra.mxu0 0.0
      %2542 = vmatprep.subr.mxu0 0.0
      %2543 = vmatpush1.msra.mxu0 0.0
      %2544 = vmatprep.subr.mxu0 0.0
      %2545 = vmatpush1.msra.mxu0 0.0
      %2546 = vmatprep.subr.mxu0 0.0
      %2547 = vmatpush1.msra.mxu0 0.0
      %2548 = vmatprep.subr.mxu0 0.0
      %2549 = vmatpush1.msra.mxu0 0.0
      %2550 = vmatprep.subr.mxu0 0.0
      %2551 = vmatpush1.msra.mxu0 0.0
      %2552 = vmatprep.subr.mxu0 0.0
      %2553 = vmatpush1.msra.mxu0 0.0
      %2554 = vmatprep.subr.mxu0 0.0
      %2555 = vmatpush1.msra.mxu0 0.0
      %2556 = vmatprep.subr.mxu0 0.0
      %2557 = vmatpush1.msra.mxu0 0.0
      %2558 = vmatprep.subr.mxu0 0.0
      %2559 = vmatpush1.msra.mxu0 0.0
      %2560 = vmatprep.subr.mxu0 0.0
      %2561 = vmatpush1.msra.mxu0 0.0
      %2562 = vmatprep.subr.mxu0 0.0
      %2563 = vmatpush1.msra.mxu0 0.0
      %2564 = vmatprep.subr.mxu0 0.0
      %2565 = vmatpush1.msra.mxu0 0.0
      %2566 = vmatprep.subr.mxu0 0.0
      %2567 = vmatpush1.msra.mxu0 0.0
      %2568 = vmatprep.subr.mxu0 0.0
      %2569 = vmatpush1.msra.mxu0 0.0
      %2570 = vmatprep.subr.mxu0 0.0
      %2571 = vmatpush1.msra.mxu0 0.0
      %2572 = vmatprep.subr.mxu0 0.0
      %2573 = vmatpush1.msra.mxu0 0.0
      %2574 = vmatprep.subr.mxu0 0.0
      %2575 = vmatpush1.msra.mxu0 0.0
      %2576 = vmatprep.mubr.f32.mxu0 0.0
      %2577 = vmatmul.mubr.f32.gmra.mrb[0].mxu0 %v2501
      %v2578 = vpop.f32.mrb[0].mxu0
      %v2579 = vadd.f32 0.0, %v2578
      %v2580 = vpop.f32.mrb[0].mxu0
      %2581 = vmatprep.mubr.f32.mxu0 0.0
      %2582 = vmatmul.mubr.f32.gmra.mrb[0].mxu0 %v2504
      %v2583 = vpop.f32.mrb[0].mxu0
      %v2584 = vadd.f32 0.0, %v2583
      %v2585 = vpop.f32.mrb[0].mxu0
      %2586 = vmatprep.mubr.f32.mxu0 0.0
      %2587 = vmatmul.mubr.f32.gmra.mrb[0].mxu0 %v2507
      %v2588 = vpop.f32.mrb[0].mxu0
      %v2589 = vadd.f32 0.0, %v2588
      %v2590 = vpop.f32.mrb[0].mxu0
      %2591 = vmatprep.mubr.f32.mxu0 0.0
      %2592 = vmatmul.mubr.f32.gmra.mrb[0].mxu0 %v2510
      %v2593 = vpop.f32.mrb[0].mxu0
      %v2594 = vadd.f32 0.0, %v2593
      %v2595 = vpop.f32.mrb[0].mxu0
      %2596 = vdwg.mxu0
      %v2597 = vld [vmem:[%s11] sm:$0xff]
      %v2598 = vld [vmem:[%s11 + $0x8] sm:$0xff]
      %v2599 = vld [vmem:[%s11 + $0x10] sm:$0xff]
      %v2600 = vld [vmem:[%s11 + $0x18] sm:$0xff]
      %v2601 = vld [vmem:[%s11 + $0x20] sm:$0xff]
      %v2602 = vld [vmem:[%s11 + $0x28] sm:$0xff]
      %v2603 = vld [vmem:[%s11 + $0x30] sm:$0xff]
      %v2604 = vld [vmem:[%s11 + $0x38] sm:$0xff]
      %v2605 = vld [vmem:[%s12] sm:$0x1]
      %v2607 = vlaneseq
      %v2608 = vshrl.u32 %v2607, 7
      %v2609 = vsub.s32 0, %v2608
      %v2610 = vrot.slane %v2605, %v2609
      %v2613 = vsel %vm508, %v2579, 0
      %v2616 = vsel %vm508, %v2584, 0
      %v2619 = vsel %vm508, %v2589, 0
      %v2622 = vsel %vm508, %v2594, 0
      %2624 = vmatprep.subr.mxu0 0.0
      %2625 = vmatpush1.msra.mxu0 %v2597
      %2626 = vmatprep.subr.mxu0 0.0
      %2627 = vmatpush1.msra.mxu0 %v2598
      %2628 = vmatprep.subr.mxu0 0.0
      %2629 = vmatpush1.msra.mxu0 %v2599
      %2630 = vmatprep.subr.mxu0 0.0
      %2631 = vmatpush1.msra.mxu0 %v2600
      %2632 = vmatprep.subr.mxu0 0.0
      %2633 = vmatpush1.msra.mxu0 %v2601
      %2634 = vmatprep.subr.mxu0 0.0
      %2635 = vmatpush1.msra.mxu0 %v2602
      %2636 = vmatprep.subr.mxu0 0.0
      %2637 = vmatpush1.msra.mxu0 %v2603
      %2638 = vmatprep.subr.mxu0 0.0
      %2639 = vmatpush1.msra.mxu0 %v2604
      %2640 = vmatprep.subr.mxu0 0.0
      %2641 = vmatpush1.msra.mxu0 0.0
      %2642 = vmatprep.subr.mxu0 0.0
      %2643 = vmatpush1.msra.mxu0 0.0
      %2644 = vmatprep.subr.mxu0 0.0
      %2645 = vmatpush1.msra.mxu0 0.0
      %2646 = vmatprep.subr.mxu0 0.0
      %2647 = vmatpush1.msra.mxu0 0.0
      %2648 = vmatprep.subr.mxu0 0.0
      %2649 = vmatpush1.msra.mxu0 0.0
      %2650 = vmatprep.subr.mxu0 0.0
      %2651 = vmatpush1.msra.mxu0 0.0
      %2652 = vmatprep.subr.mxu0 0.0
      %2653 = vmatpush1.msra.mxu0 0.0
      %2654 = vmatprep.subr.mxu0 0.0
      %2655 = vmatpush1.msra.mxu0 0.0
      %2656 = vmatprep.subr.mxu0 0.0
      %2657 = vmatpush1.msra.mxu0 0.0
      %2658 = vmatprep.subr.mxu0 0.0
      %2659 = vmatpush1.msra.mxu0 0.0
      %2660 = vmatprep.subr.mxu0 0.0
      %2661 = vmatpush1.msra.mxu0 0.0
      %2662 = vmatprep.subr.mxu0 0.0
      %2663 = vmatpush1.msra.mxu0 0.0
      %2664 = vmatprep.subr.mxu0 0.0
      %2665 = vmatpush1.msra.mxu0 0.0
      %2666 = vmatprep.subr.mxu0 0.0
      %2667 = vmatpush1.msra.mxu0 0.0
      %2668 = vmatprep.subr.mxu0 0.0
      %2669 = vmatpush1.msra.mxu0 0.0
      %2670 = vmatprep.subr.mxu0 0.0
      %2671 = vmatpush1.msra.mxu0 0.0
      %2672 = vmatprep.subr.mxu0 0.0
      %2673 = vmatpush1.msra.mxu0 0.0
      %2674 = vmatprep.subr.mxu0 0.0
      %2675 = vmatpush1.msra.mxu0 0.0
      %2676 = vmatprep.subr.mxu0 0.0
      %2677 = vmatpush1.msra.mxu0 0.0
      %2678 = vmatprep.subr.mxu0 0.0
      %2679 = vmatpush1.msra.mxu0 0.0
      %2680 = vmatprep.subr.mxu0 0.0
      %2681 = vmatpush1.msra.mxu0 0.0
      %2682 = vmatprep.subr.mxu0 0.0
      %2683 = vmatpush1.msra.mxu0 0.0
      %2684 = vmatprep.subr.mxu0 0.0
      %2685 = vmatpush1.msra.mxu0 0.0
      %2686 = vmatprep.subr.mxu0 0.0
      %2687 = vmatpush1.msra.mxu0 0.0
      %2688 = vmatprep.mubr.f32.mxu0 0.0
      %2689 = vmatmul.mubr.f32.gmra.mrb[0].mxu0 %v2613
      %v2690 = vpop.f32.mrb[0].mxu0
      %v2691 = vadd.f32 %v2610, %v2690
      %v2692 = vpop.f32.mrb[0].mxu0
      %2693 = vmatprep.mubr.f32.mxu0 0.0
      %2694 = vmatmul.mubr.f32.gmra.mrb[0].mxu0 %v2616
      %v2695 = vpop.f32.mrb[0].mxu0
      %v2696 = vadd.f32 %v2610, %v2695
      %v2697 = vpop.f32.mrb[0].mxu0
      %2698 = vmatprep.mubr.f32.mxu0 0.0
      %2699 = vmatmul.mubr.f32.gmra.mrb[0].mxu0 %v2619
      %v2700 = vpop.f32.mrb[0].mxu0
      %v2701 = vadd.f32 %v2610, %v2700
      %v2702 = vpop.f32.mrb[0].mxu0
      %2703 = vmatprep.mubr.f32.mxu0 0.0
      %2704 = vmatmul.mubr.f32.gmra.mrb[0].mxu0 %v2622
      %v2705 = vpop.f32.mrb[0].mxu0
      %v2706 = vadd.f32 %v2610, %v2705
      %v2707 = vpop.f32.mrb[0].mxu0
      %2708 = vdwg.mxu0
      %vm2709 = vcmask 31744
      %2710 = vst.msk [vmem:[%s465] sm:$0xff] %vm2709, %v2691
      %2711 = vst.msk [vmem:[%s465 + $0x8] sm:$0xff] %vm2709, %v2696
      %2712 = vst.msk [vmem:[%s465 + $0x10] sm:$0xff] %vm2709, %v2701
      %2713 = vst.msk [vmem:[%s465 + $0x18] sm:$0xff] %vm2709, %v2706
      %p2714 = scmp.lt.s32.totalorder %s24, 1
      %s2715 = scalar_select %p2714, %s24, 1
      %s2716 = smul.addr %s2715, 4
      %s2717 = smul.addr %s2716, 8
      %s2718 = scalar_lea.vmem %s13, %s2717
      // Predicated region
      $region73: #{_lambda_.1} parent=71 // pred_check
        %p2719 = pneg %p330
      $region74: #{_lambda_.1} parent=71 // pred_check_branch
        %2721 = sbr.rel (%p2719) target = $region76
      $region75: #{_lambda_.1} parent=71 // pred_region
        _
      $region76: #{_lambda_.1} parent=71 // pred_fallthru
        _
    $region72: #{_lambda_.1} parent=5 // pred_fallthru
      _
    %p2722 = scmp.le.s32.totalorder 2, %s19
    // Predicated region
    $region77: #{_lambda_.1} parent=5 // pred_check
      %p2723 = pneg %p2722
    $region78: #{_lambda_.1} parent=5 // pred_check_branch
      %2725 = sbr.rel (%p2723) target = $region80
    $region79: #{_lambda_.1} parent=5 // pred_region
      %s2726 = ssub.s32 %s19, 2
      // Predicated region
      $region81: #{_lambda_.1} parent=79 // pred_check
        %p2727 = pneg %p336
      $region82: #{_lambda_.1} parent=79 // pred_check_branch
        %2729 = sbr.rel (%p2727) target = $region84
      $region83: #{_lambda_.1} parent=79 // pred_region
        %p2730 = scmp.lt.s32.totalorder %s25, 1
        %s2731 = scalar_select %p2730, %s25, 1
        %s2732 = smul.addr %s2731, 4
        %s2733 = smul.addr %s2732, 8
        %s2734 = scalar_lea.vmem %s13, %s2733
      $region84: #{_lambda_.1} parent=79 // pred_fallthru
        _
    $region80: #{_lambda_.1} parent=5 // pred_fallthru
      _
  $region6: #{_lambda_.1} parent=0 // loop_footer
    %s23 = sadd.s32 1, %s19
  $region7: #{_lambda_.1} parent=0 // loop_footer_branch
    %18 = sbr.rel target = $region3
  $region8: #{_lambda_.1} parent=0 // loop_exit
    _

</llo_original>
